<compile_context>
chip_gen: v7x
topology: tpu7x:2x2x1
jax: 0.10.0
libtpu: 0.0.40
codegen_flags: <defaults>
</compile_context>

<pallas_src>
import math

import jax
import jax.numpy as jnp
from jax.experimental import pallas as pl
from jax.experimental.pallas import tpu as pltpu

# ---- tiny GPT-2 style config -------------------------------------------------
B = 2          # batch
S = 8          # sequence length (= max_position_embeddings)
H = 32         # hidden size
NH = 2         # heads
HD = H // NH   # head dim
NLAYER = 4     # transformer blocks (need >= 4 for last-4 concat)
VOCAB = 50
EPS = 1e-5     # layer_norm_epsilon


# ---- in-kernel helpers (f32 elementwise math: v5e-safe) ----------------------
def _layernorm(x, g, b):
    mu = jnp.mean(x, axis=-1, keepdims=True)
    var = jnp.mean((x - mu) ** 2, axis=-1, keepdims=True)
    return (x - mu) * jax.lax.rsqrt(var + EPS) * g + b


def _gelu(x):
    # GPT-2 "gelu_new" (tanh approximation)
    return 0.5 * x * (1.0 + jnp.tanh(math.sqrt(2.0 / math.pi) * (x + 0.044715 * x ** 3)))


# ---- fused Pallas kernel: full GPT-2 stack + embedding extraction ------------
def gpt2_fused_kernel(x_ref, bias_ref,
                      ln1g_ref, ln1b_ref, wqkv_ref, bqkv_ref, wap_ref, bap_ref,
                      ln2g_ref, ln2b_ref, wfc_ref, bfc_ref, wmp_ref, bmp_ref,
                      lnfg_ref, lnfb_ref,
                      sent_ref, tok_ref, attn_sc):
    x = x_ref[0]          # [S, H]  f32 embedding output for this batch element
    bias = bias_ref[0]    # [S, S]  additive attention bias (causal + pad mask)
    inv = 1.0 / math.sqrt(HD)

    block_outs = []       # outputs of each transformer block (kept in vregs/VMEM)
    for l in range(NLAYER):
        # ---- attention sub-block (pre-LN, GPT-2 style) ----
        n1 = _layernorm(x, ln1g_ref[l], ln1b_ref[l])
        qkv = jnp.dot(n1.astype(jnp.bfloat16), wqkv_ref[l],
                      preferred_element_type=jnp.float32) + bqkv_ref[l]   # [S, 3H]
        q = qkv[:, 0:H]
        k = qkv[:, H:2 * H]
        v = qkv[:, 2 * H:3 * H]
        for h in range(NH):
            qh = q[:, h * HD:(h + 1) * HD]
            kh = k[:, h * HD:(h + 1) * HD]
            vh = v[:, h * HD:(h + 1) * HD]
            sc = jnp.dot(qh, kh.T, preferred_element_type=jnp.float32) * inv + bias
            sc = sc - jnp.max(sc, axis=-1, keepdims=True)
            p = jnp.exp(sc)
            p = p * pl.reciprocal(jnp.sum(p, axis=-1, keepdims=True), approx=True)
            # write this head's context into fixed scratch columns (no concat)
            attn_sc[:, h * HD:(h + 1) * HD] = jnp.dot(
                p, vh, preferred_element_type=jnp.float32)
        a = jnp.dot(attn_sc[...].astype(jnp.bfloat16), wap_ref[l],
                    preferred_element_type=jnp.float32) + bap_ref[l]
        x = x + a

        # ---- MLP sub-block (pre-LN) ----
        n2 = _layernorm(x, ln2g_ref[l], ln2b_ref[l])
        ff = _gelu(jnp.dot(n2.astype(jnp.bfloat16), wfc_ref[l],
                           preferred_element_type=jnp.float32) + bfc_ref[l])
        m = jnp.dot(ff.astype(jnp.bfloat16), wmp_ref[l],
                    preferred_element_type=jnp.float32) + bmp_ref[l]
        x = x + m
        block_outs.append(x)

    final = _layernorm(x, lnfg_ref[...], lnfb_ref[...])   # ln_f -> hidden_states[-1]

    # HF GPT2Model hidden_states = [emb, out0, out1, ..., out_{N-2}, ln_f(out_{N-1})]
    h_m1 = final                      # hidden_states[-1]
    h_m2 = block_outs[NLAYER - 2]     # hidden_states[-2]
    h_m3 = block_outs[NLAYER - 3]     # hidden_states[-3]
    h_m4 = block_outs[NLAYER - 4]     # hidden_states[-4]

    # sentence_vector = mean over seq of hidden_states[-2]
    sent_ref[0] = jnp.mean(h_m2, axis=0, keepdims=True)                   # [1, H]
    # token_vectors = cat(h[-1], h[-2], h[-3], h[-4]) along features (lane-dense 4H=128)
    tok_ref[0] = jnp.concatenate([h_m1, h_m2, h_m3, h_m4], axis=-1)       # [S, 4H]


def _full_spec(shape):
    nd = len(shape)
    return pl.BlockSpec(shape, lambda b, _nd=nd: (0,) * _nd)


def gpt2_stack_and_embed(x, bias, params):
    w = params
    in_specs = [
        pl.BlockSpec((1, S, H), lambda b: (b, 0, 0)),     # embedding output
        pl.BlockSpec((1, S, S), lambda b: (b, 0, 0)),     # additive attention bias
        _full_spec(w['ln1g'].shape), _full_spec(w['ln1b'].shape),
        _full_spec(w['wqkv'].shape), _full_spec(w['bqkv'].shape),
        _full_spec(w['wap'].shape), _full_spec(w['bap'].shape),
        _full_spec(w['ln2g'].shape), _full_spec(w['ln2b'].shape),
        _full_spec(w['wfc'].shape), _full_spec(w['bfc'].shape),
        _full_spec(w['wmp'].shape), _full_spec(w['bmp'].shape),
        _full_spec(w['lnfg'].shape), _full_spec(w['lnfb'].shape),
    ]
    sent, tok = pl.pallas_call(
        gpt2_fused_kernel,
        out_shape=(jax.ShapeDtypeStruct((B, 1, H), jnp.float32),
                   jax.ShapeDtypeStruct((B, S, 4 * H), jnp.float32)),
        grid=(B,),
        in_specs=in_specs,
        out_specs=(pl.BlockSpec((1, 1, H), lambda b: (b, 0, 0)),
                   pl.BlockSpec((1, S, 4 * H), lambda b: (b, 0, 0))),
        scratch_shapes=[pltpu.VMEM((S, H), jnp.float32)],
        compiler_params=pltpu.CompilerParams(dimension_semantics=("parallel",)),
    )(x, bias,
      w['ln1g'], w['ln1b'], w['wqkv'], w['bqkv'], w['wap'], w['bap'],
      w['ln2g'], w['ln2b'], w['wfc'], w['bfc'], w['wmp'], w['bmp'],
      w['lnfg'], w['lnfb'])
    return sent[:, 0, :], tok


# ---- parameter init (deterministic, synthetic; weights stacked over layers) --
def init_params(key):
    k = jax.random.split(key, 6)
    f32, bf16 = jnp.float32, jnp.bfloat16
    return dict(
        wte=0.02 * jax.random.normal(k[0], (VOCAB, H), f32),
        wpe=0.01 * jax.random.normal(k[1], (S, H), f32),
        # matmul weights in bf16 (MXU inputs); biases / LN params stay f32
        wqkv=(0.02 * jax.random.normal(k[2], (NLAYER, H, 3 * H), f32)).astype(bf16),
        bqkv=jnp.zeros((NLAYER, 1, 3 * H), f32),
        wap=(0.02 * jax.random.normal(k[3], (NLAYER, H, H), f32)).astype(bf16),
        bap=jnp.zeros((NLAYER, 1, H), f32),
        ln1g=jnp.ones((NLAYER, 1, H), f32),
        ln1b=jnp.zeros((NLAYER, 1, H), f32),
        wfc=(0.02 * jax.random.normal(k[4], (NLAYER, H, 4 * H), f32)).astype(bf16),
        bfc=jnp.zeros((NLAYER, 1, 4 * H), f32),
        wmp=(0.02 * jax.random.normal(k[5], (NLAYER, 4 * H, H), f32)).astype(bf16),
        bmp=jnp.zeros((NLAYER, 1, H), f32),
        ln2g=jnp.ones((NLAYER, 1, H), f32),
        ln2b=jnp.zeros((NLAYER, 1, H), f32),
        lnfg=jnp.ones((1, H), f32),
        lnfb=jnp.zeros((1, H), f32),
    )


# ---- full GPT2Embedding.forward ----------------------------------------------
def gpt2_embedding_forward(input_ids, mask, params):
    # TODO(synk): token/position embedding gather is data-dependent row lookup;
    # done with plain JAX indexing in the wrapper (glue), not inside the kernel.
    pos = jnp.arange(S)
    x = params['wte'][input_ids] + params['wpe'][pos][None, :, :]    # [B, S, H]

    # Pre-combined additive attention bias: causal + key padding mask.
    causal = jnp.tril(jnp.ones((S, S), jnp.float32))
    key_mask = mask.astype(jnp.float32)                              # [B, S]
    bias = ((1.0 - causal)[None, :, :] * (-1e9)
            + (1.0 - key_mask)[:, None, :] * (-1e9))                 # [B, S, S]

    sentence_vector, token_vectors = gpt2_stack_and_embed(x, bias, params)
    # matches Embedding.get_embeddings: (sentence_vector, token_vectors)
    return sentence_vector, token_vectors


if __name__ == "__main__":
    key = jax.random.PRNGKey(0)
    pkey, ikey = jax.random.split(key)
    params = init_params(pkey)

    input_ids = jax.random.randint(ikey, (B, S), 0, VOCAB, dtype=jnp.int32)
    mask = jnp.ones((B, S), jnp.int32).at[1, -2:].set(0)   # pad last 2 tokens of batch 1

    sentence_vector, token_vectors = gpt2_embedding_forward(input_ids, mask, params)
    jax.block_until_ready((sentence_vector, token_vectors))

    assert sentence_vector.shape == (B, H)
    assert token_vectors.shape == (B, S, 4 * H)
    assert bool(jnp.all(jnp.isfinite(sentence_vector)))
    assert bool(jnp.all(jnp.isfinite(token_vectors)))
    print("KERNEL_OK")
</pallas_src>

<mosaic_0001>
module attributes {stable_mosaic.version = 11 : i64} {
  func.func @gpt2_fused_kernel(%arg0: i32, %arg1: memref<1x8x32xf32, #tpu.memory_space<vmem>>, %arg2: memref<1x8x8xf32, #tpu.memory_space<vmem>>, %arg3: memref<4x1x32xf32, #tpu.memory_space<vmem>>, %arg4: memref<4x1x32xf32, #tpu.memory_space<vmem>>, %arg5: memref<4x32x96xbf16, #tpu.memory_space<vmem>>, %arg6: memref<4x1x96xf32, #tpu.memory_space<vmem>>, %arg7: memref<4x32x32xbf16, #tpu.memory_space<vmem>>, %arg8: memref<4x1x32xf32, #tpu.memory_space<vmem>>, %arg9: memref<4x1x32xf32, #tpu.memory_space<vmem>>, %arg10: memref<4x1x32xf32, #tpu.memory_space<vmem>>, %arg11: memref<4x32x128xbf16, #tpu.memory_space<vmem>>, %arg12: memref<4x1x128xf32, #tpu.memory_space<vmem>>, %arg13: memref<4x128x32xbf16, #tpu.memory_space<vmem>>, %arg14: memref<4x1x32xf32, #tpu.memory_space<vmem>>, %arg15: memref<1x32xf32, #tpu.memory_space<vmem>>, %arg16: memref<1x32xf32, #tpu.memory_space<vmem>>, %arg17: memref<1x1x32xf32, #tpu.memory_space<vmem>>, %arg18: memref<1x8x128xf32, #tpu.memory_space<vmem>>, %arg19: memref<8x32xf32, #tpu.memory_space<vmem>>) attributes {dimension_semantics = [#tpu.dimension_semantics<parallel>], iteration_bounds = array<i64: 2>, scalar_prefetch = 0 : i64, scratch_operands = 1 : i64, tpu.core_type = #tpu.core_type<tc>, window_params = [{transform_indices = @transform_0, window_bounds = array<i64: 1, 8, 32>}, {transform_indices = @transform_1, window_bounds = array<i64: 1, 8, 8>}, {pipeline_mode = #tpu.pipeline_mode<synchronous>, transform_indices = @transform_2, window_bounds = array<i64: 4, 1, 32>}, {pipeline_mode = #tpu.pipeline_mode<synchronous>, transform_indices = @transform_3, window_bounds = array<i64: 4, 1, 32>}, {pipeline_mode = #tpu.pipeline_mode<synchronous>, transform_indices = @transform_4, window_bounds = array<i64: 4, 32, 96>}, {pipeline_mode = #tpu.pipeline_mode<synchronous>, transform_indices = @transform_5, window_bounds = array<i64: 4, 1, 96>}, {pipeline_mode = #tpu.pipeline_mode<synchronous>, transform_indices = @transform_6, window_bounds = array<i64: 4, 32, 32>}, {pipeline_mode = #tpu.pipeline_mode<synchronous>, transform_indices = @transform_7, window_bounds = array<i64: 4, 1, 32>}, {pipeline_mode = #tpu.pipeline_mode<synchronous>, transform_indices = @transform_8, window_bounds = array<i64: 4, 1, 32>}, {pipeline_mode = #tpu.pipeline_mode<synchronous>, transform_indices = @transform_9, window_bounds = array<i64: 4, 1, 32>}, {pipeline_mode = #tpu.pipeline_mode<synchronous>, transform_indices = @transform_10, window_bounds = array<i64: 4, 32, 128>}, {pipeline_mode = #tpu.pipeline_mode<synchronous>, transform_indices = @transform_11, window_bounds = array<i64: 4, 1, 128>}, {pipeline_mode = #tpu.pipeline_mode<synchronous>, transform_indices = @transform_12, window_bounds = array<i64: 4, 128, 32>}, {pipeline_mode = #tpu.pipeline_mode<synchronous>, transform_indices = @transform_13, window_bounds = array<i64: 4, 1, 32>}, {pipeline_mode = #tpu.pipeline_mode<synchronous>, transform_indices = @transform_14, window_bounds = array<i64: 1, 32>}, {pipeline_mode = #tpu.pipeline_mode<synchronous>, transform_indices = @transform_15, window_bounds = array<i64: 1, 32>}, {transform_indices = @transform_16, window_bounds = array<i64: 1, 1, 32>}, {transform_indices = @transform_17, window_bounds = array<i64: 1, 8, 128>}]} {
    %c0 = arith.constant 0 : index
    %c0_0 = arith.constant 0 : index
    %c0_1 = arith.constant 0 : index
    %0 = vector.load %arg1[%c0, %c0_0, %c0_1] : memref<1x8x32xf32, #tpu.memory_space<vmem>>, vector<1x8x32xf32>
    %1 = vector.shape_cast %0 : vector<1x8x32xf32> to vector<8x32xf32>
    %c0_2 = arith.constant 0 : index
    %c0_3 = arith.constant 0 : index
    %c0_4 = arith.constant 0 : index
    %2 = vector.load %arg2[%c0_2, %c0_3, %c0_4] : memref<1x8x8xf32, #tpu.memory_space<vmem>>, vector<1x8x8xf32>
    %3 = vector.shape_cast %2 : vector<1x8x8xf32> to vector<8x8xf32>
    %c0_5 = arith.constant 0 : index
    %c0_6 = arith.constant 0 : index
    %c0_7 = arith.constant 0 : index
    %4 = vector.load %arg3[%c0_5, %c0_6, %c0_7] : memref<4x1x32xf32, #tpu.memory_space<vmem>>, vector<1x1x32xf32>
    %5 = vector.shape_cast %4 : vector<1x1x32xf32> to vector<1x32xf32>
    %c0_8 = arith.constant 0 : index
    %c0_9 = arith.constant 0 : index
    %c0_10 = arith.constant 0 : index
    %6 = vector.load %arg4[%c0_8, %c0_9, %c0_10] : memref<4x1x32xf32, #tpu.memory_space<vmem>>, vector<1x1x32xf32>
    %7 = vector.shape_cast %6 : vector<1x1x32xf32> to vector<1x32xf32>
    %cst = arith.constant dense<0.000000e+00> : vector<8xf32>
    %8 = vector.multi_reduction <add>, %1, %cst [1] : vector<8x32xf32> to vector<8xf32>
    %9 = vector.shape_cast %8 : vector<8xf32> to vector<8x1xf32>
    %cst_11 = arith.constant 3.200000e+01 : f32
    %10 = vector.broadcast %cst_11 : f32 to vector<8x1xf32>
    %11 = arith.divf %9, %10 : vector<8x1xf32>
    %12 = vector.broadcast %11 : vector<8x1xf32> to vector<8x32xf32>
    %13 = arith.subf %1, %12 : vector<8x32xf32>
    %14 = arith.mulf %13, %13 : vector<8x32xf32>
    %cst_12 = arith.constant dense<0.000000e+00> : vector<8xf32>
    %15 = vector.multi_reduction <add>, %14, %cst_12 [1] : vector<8x32xf32> to vector<8xf32>
    %16 = vector.shape_cast %15 : vector<8xf32> to vector<8x1xf32>
    %cst_13 = arith.constant 3.200000e+01 : f32
    %17 = vector.broadcast %cst_13 : f32 to vector<8x1xf32>
    %18 = arith.divf %16, %17 : vector<8x1xf32>
    %19 = vector.broadcast %11 : vector<8x1xf32> to vector<8x32xf32>
    %20 = arith.subf %1, %19 : vector<8x32xf32>
    %cst_14 = arith.constant 9.99999974E-6 : f32
    %21 = vector.broadcast %cst_14 : f32 to vector<8x1xf32>
    %22 = arith.addf %18, %21 : vector<8x1xf32>
    %23 = math.rsqrt %22 : vector<8x1xf32>
    %24 = vector.broadcast %23 : vector<8x1xf32> to vector<8x32xf32>
    %25 = arith.mulf %20, %24 : vector<8x32xf32>
    %26 = vector.broadcast %5 : vector<1x32xf32> to vector<8x32xf32>
    %27 = arith.mulf %25, %26 : vector<8x32xf32>
    %28 = vector.broadcast %7 : vector<1x32xf32> to vector<8x32xf32>
    %29 = arith.addf %27, %28 : vector<8x32xf32>
    %30 = arith.truncf %29 : vector<8x32xf32> to vector<8x32xbf16>
    %c0_15 = arith.constant 0 : index
    %c0_16 = arith.constant 0 : index
    %c0_17 = arith.constant 0 : index
    %31 = vector.load %arg5[%c0_15, %c0_16, %c0_17] : memref<4x32x96xbf16, #tpu.memory_space<vmem>>, vector<1x32x96xbf16>
    %32 = vector.shape_cast %31 : vector<1x32x96xbf16> to vector<32x96xbf16>
    %cst_18 = arith.constant dense<0.000000e+00> : vector<8x96xf32>
    %33 = tpu.matmul %30, %32, %cst_18 {dimension_numbers = #tpu.dot_dimension_numbers<[1], [0], [0], [1], [0, 0, 1, 1], [], []>} : vector<8x32xbf16>, vector<32x96xbf16>, vector<8x96xf32> -> vector<8x96xf32>
    %c0_19 = arith.constant 0 : index
    %c0_20 = arith.constant 0 : index
    %c0_21 = arith.constant 0 : index
    %34 = vector.load %arg6[%c0_19, %c0_20, %c0_21] : memref<4x1x96xf32, #tpu.memory_space<vmem>>, vector<1x1x96xf32>
    %35 = vector.shape_cast %34 : vector<1x1x96xf32> to vector<1x96xf32>
    %36 = vector.broadcast %35 : vector<1x96xf32> to vector<8x96xf32>
    %37 = arith.addf %33, %36 : vector<8x96xf32>
    %38 = vector.extract_strided_slice %37 {offsets = [0, 0], sizes = [8, 32], strides = [1, 1]} : vector<8x96xf32> to vector<8x32xf32>
    %39 = vector.extract_strided_slice %37 {offsets = [0, 32], sizes = [8, 32], strides = [1, 1]} : vector<8x96xf32> to vector<8x32xf32>
    %40 = vector.extract_strided_slice %37 {offsets = [0, 64], sizes = [8, 32], strides = [1, 1]} : vector<8x96xf32> to vector<8x32xf32>
    %41 = vector.extract_strided_slice %38 {offsets = [0, 0], sizes = [8, 16], strides = [1, 1]} : vector<8x32xf32> to vector<8x16xf32>
    %42 = vector.extract_strided_slice %39 {offsets = [0, 0], sizes = [8, 16], strides = [1, 1]} : vector<8x32xf32> to vector<8x16xf32>
    %43 = vector.extract_strided_slice %40 {offsets = [0, 0], sizes = [8, 16], strides = [1, 1]} : vector<8x32xf32> to vector<8x16xf32>
    %44 = tpu.transpose %42, [1, 0] : vector<8x16xf32> -> vector<16x8xf32>
    %cst_22 = arith.constant dense<0.000000e+00> : vector<8x8xf32>
    %45 = tpu.matmul %41, %44, %cst_22 {dimension_numbers = #tpu.dot_dimension_numbers<[1], [0], [0], [1], [0, 0, 1, 1], [], []>} : vector<8x16xf32>, vector<16x8xf32>, vector<8x8xf32> -> vector<8x8xf32>
    %cst_23 = arith.constant 2.500000e-01 : f32
    %46 = vector.broadcast %cst_23 : f32 to vector<8x8xf32>
    %47 = arith.mulf %45, %46 : vector<8x8xf32>
    %48 = arith.addf %47, %3 : vector<8x8xf32>
    %cst_24 = arith.constant dense<0xFF800000> : vector<8xf32>
    %49 = vector.multi_reduction <maximumf>, %48, %cst_24 [1] : vector<8x8xf32> to vector<8xf32>
    %50 = vector.shape_cast %49 : vector<8xf32> to vector<8x1xf32>
    %51 = vector.broadcast %50 : vector<8x1xf32> to vector<8x8xf32>
    %52 = arith.subf %48, %51 : vector<8x8xf32>
    %53 = math.exp %52 : vector<8x8xf32>
    %cst_25 = arith.constant dense<0.000000e+00> : vector<8xf32>
    %54 = vector.multi_reduction <add>, %53, %cst_25 [1] : vector<8x8xf32> to vector<8xf32>
    %55 = vector.shape_cast %54 : vector<8xf32> to vector<8x1xf32>
    %56 = tpu.reciprocal %55 {approx = true} : vector<8x1xf32> -> vector<8x1xf32>
    %57 = vector.broadcast %56 : vector<8x1xf32> to vector<8x8xf32>
    %58 = arith.mulf %53, %57 : vector<8x8xf32>
    %cst_26 = arith.constant dense<0.000000e+00> : vector<8x16xf32>
    %59 = tpu.matmul %58, %43, %cst_26 {dimension_numbers = #tpu.dot_dimension_numbers<[1], [0], [0], [1], [0, 0, 1, 1], [], []>} : vector<8x8xf32>, vector<8x16xf32>, vector<8x16xf32> -> vector<8x16xf32>
    %c0_27 = arith.constant 0 : index
    %c0_28 = arith.constant 0 : index
    %60 = vector.load %arg19[%c0_27, %c0_28] : memref<8x32xf32, #tpu.memory_space<vmem>>, vector<8x16xf32>
    tpu.vector_store %arg19[%c0_27, %c0_28], %59 {strides = array<i32>} : memref<8x32xf32, #tpu.memory_space<vmem>>, vector<8x16xf32>,
    %61 = vector.extract_strided_slice %38 {offsets = [0, 16], sizes = [8, 16], strides = [1, 1]} : vector<8x32xf32> to vector<8x16xf32>
    %62 = vector.extract_strided_slice %39 {offsets = [0, 16], sizes = [8, 16], strides = [1, 1]} : vector<8x32xf32> to vector<8x16xf32>
    %63 = vector.extract_strided_slice %40 {offsets = [0, 16], sizes = [8, 16], strides = [1, 1]} : vector<8x32xf32> to vector<8x16xf32>
    %64 = tpu.transpose %62, [1, 0] : vector<8x16xf32> -> vector<16x8xf32>
    %cst_29 = arith.constant dense<0.000000e+00> : vector<8x8xf32>
    %65 = tpu.matmul %61, %64, %cst_29 {dimension_numbers = #tpu.dot_dimension_numbers<[1], [0], [0], [1], [0, 0, 1, 1], [], []>} : vector<8x16xf32>, vector<16x8xf32>, vector<8x8xf32> -> vector<8x8xf32>
    %cst_30 = arith.constant 2.500000e-01 : f32
    %66 = vector.broadcast %cst_30 : f32 to vector<8x8xf32>
    %67 = arith.mulf %65, %66 : vector<8x8xf32>
    %68 = arith.addf %67, %3 : vector<8x8xf32>
    %cst_31 = arith.constant dense<0xFF800000> : vector<8xf32>
    %69 = vector.multi_reduction <maximumf>, %68, %cst_31 [1] : vector<8x8xf32> to vector<8xf32>
    %70 = vector.shape_cast %69 : vector<8xf32> to vector<8x1xf32>
    %71 = vector.broadcast %70 : vector<8x1xf32> to vector<8x8xf32>
    %72 = arith.subf %68, %71 : vector<8x8xf32>
    %73 = math.exp %72 : vector<8x8xf32>
    %cst_32 = arith.constant dense<0.000000e+00> : vector<8xf32>
    %74 = vector.multi_reduction <add>, %73, %cst_32 [1] : vector<8x8xf32> to vector<8xf32>
    %75 = vector.shape_cast %74 : vector<8xf32> to vector<8x1xf32>
    %76 = tpu.reciprocal %75 {approx = true} : vector<8x1xf32> -> vector<8x1xf32>
    %77 = vector.broadcast %76 : vector<8x1xf32> to vector<8x8xf32>
    %78 = arith.mulf %73, %77 : vector<8x8xf32>
    %cst_33 = arith.constant dense<0.000000e+00> : vector<8x16xf32>
    %79 = tpu.matmul %78, %63, %cst_33 {dimension_numbers = #tpu.dot_dimension_numbers<[1], [0], [0], [1], [0, 0, 1, 1], [], []>} : vector<8x8xf32>, vector<8x16xf32>, vector<8x16xf32> -> vector<8x16xf32>
    %c0_34 = arith.constant 0 : index
    %c16 = arith.constant 16 : index
    %80 = vector.load %arg19[%c0_34, %c16] : memref<8x32xf32, #tpu.memory_space<vmem>>, vector<8x16xf32>
    tpu.vector_store %arg19[%c0_34, %c16], %79 {strides = array<i32>} : memref<8x32xf32, #tpu.memory_space<vmem>>, vector<8x16xf32>,
    %c0_35 = arith.constant 0 : index
    %c0_36 = arith.constant 0 : index
    %81 = vector.load %arg19[%c0_35, %c0_36] : memref<8x32xf32, #tpu.memory_space<vmem>>, vector<8x32xf32>
    %82 = arith.truncf %81 : vector<8x32xf32> to vector<8x32xbf16>
    %c0_37 = arith.constant 0 : index
    %c0_38 = arith.constant 0 : index
    %c0_39 = arith.constant 0 : index
    %83 = vector.load %arg7[%c0_37, %c0_38, %c0_39] : memref<4x32x32xbf16, #tpu.memory_space<vmem>>, vector<1x32x32xbf16>
    %84 = vector.shape_cast %83 : vector<1x32x32xbf16> to vector<32x32xbf16>
    %cst_40 = arith.constant dense<0.000000e+00> : vector<8x32xf32>
    %85 = tpu.matmul %82, %84, %cst_40 {dimension_numbers = #tpu.dot_dimension_numbers<[1], [0], [0], [1], [0, 0, 1, 1], [], []>} : vector<8x32xbf16>, vector<32x32xbf16>, vector<8x32xf32> -> vector<8x32xf32>
    %c0_41 = arith.constant 0 : index
    %c0_42 = arith.constant 0 : index
    %c0_43 = arith.constant 0 : index
    %86 = vector.load %arg8[%c0_41, %c0_42, %c0_43] : memref<4x1x32xf32, #tpu.memory_space<vmem>>, vector<1x1x32xf32>
    %87 = vector.shape_cast %86 : vector<1x1x32xf32> to vector<1x32xf32>
    %88 = vector.broadcast %87 : vector<1x32xf32> to vector<8x32xf32>
    %89 = arith.addf %85, %88 : vector<8x32xf32>
    %90 = arith.addf %1, %89 : vector<8x32xf32>
    %c0_44 = arith.constant 0 : index
    %c0_45 = arith.constant 0 : index
    %c0_46 = arith.constant 0 : index
    %91 = vector.load %arg9[%c0_44, %c0_45, %c0_46] : memref<4x1x32xf32, #tpu.memory_space<vmem>>, vector<1x1x32xf32>
    %92 = vector.shape_cast %91 : vector<1x1x32xf32> to vector<1x32xf32>
    %c0_47 = arith.constant 0 : index
    %c0_48 = arith.constant 0 : index
    %c0_49 = arith.constant 0 : index
    %93 = vector.load %arg10[%c0_47, %c0_48, %c0_49] : memref<4x1x32xf32, #tpu.memory_space<vmem>>, vector<1x1x32xf32>
    %94 = vector.shape_cast %93 : vector<1x1x32xf32> to vector<1x32xf32>
    %cst_50 = arith.constant dense<0.000000e+00> : vector<8xf32>
    %95 = vector.multi_reduction <add>, %90, %cst_50 [1] : vector<8x32xf32> to vector<8xf32>
    %96 = vector.shape_cast %95 : vector<8xf32> to vector<8x1xf32>
    %cst_51 = arith.constant 3.200000e+01 : f32
    %97 = vector.broadcast %cst_51 : f32 to vector<8x1xf32>
    %98 = arith.divf %96, %97 : vector<8x1xf32>
    %99 = vector.broadcast %98 : vector<8x1xf32> to vector<8x32xf32>
    %100 = arith.subf %90, %99 : vector<8x32xf32>
    %101 = arith.mulf %100, %100 : vector<8x32xf32>
    %cst_52 = arith.constant dense<0.000000e+00> : vector<8xf32>
    %102 = vector.multi_reduction <add>, %101, %cst_52 [1] : vector<8x32xf32> to vector<8xf32>
    %103 = vector.shape_cast %102 : vector<8xf32> to vector<8x1xf32>
    %cst_53 = arith.constant 3.200000e+01 : f32
    %104 = vector.broadcast %cst_53 : f32 to vector<8x1xf32>
    %105 = arith.divf %103, %104 : vector<8x1xf32>
    %106 = vector.broadcast %98 : vector<8x1xf32> to vector<8x32xf32>
    %107 = arith.subf %90, %106 : vector<8x32xf32>
    %cst_54 = arith.constant 9.99999974E-6 : f32
    %108 = vector.broadcast %cst_54 : f32 to vector<8x1xf32>
    %109 = arith.addf %105, %108 : vector<8x1xf32>
    %110 = math.rsqrt %109 : vector<8x1xf32>
    %111 = vector.broadcast %110 : vector<8x1xf32> to vector<8x32xf32>
    %112 = arith.mulf %107, %111 : vector<8x32xf32>
    %113 = vector.broadcast %92 : vector<1x32xf32> to vector<8x32xf32>
    %114 = arith.mulf %112, %113 : vector<8x32xf32>
    %115 = vector.broadcast %94 : vector<1x32xf32> to vector<8x32xf32>
    %116 = arith.addf %114, %115 : vector<8x32xf32>
    %117 = arith.truncf %116 : vector<8x32xf32> to vector<8x32xbf16>
    %c0_55 = arith.constant 0 : index
    %c0_56 = arith.constant 0 : index
    %c0_57 = arith.constant 0 : index
    %118 = vector.load %arg11[%c0_55, %c0_56, %c0_57] : memref<4x32x128xbf16, #tpu.memory_space<vmem>>, vector<1x32x128xbf16>
    %119 = vector.shape_cast %118 : vector<1x32x128xbf16> to vector<32x128xbf16>
    %cst_58 = arith.constant dense<0.000000e+00> : vector<8x128xf32>
    %120 = tpu.matmul %117, %119, %cst_58 {dimension_numbers = #tpu.dot_dimension_numbers<[1], [0], [0], [1], [0, 0, 1, 1], [], []>} : vector<8x32xbf16>, vector<32x128xbf16>, vector<8x128xf32> -> vector<8x128xf32>
    %c0_59 = arith.constant 0 : index
    %c0_60 = arith.constant 0 : index
    %c0_61 = arith.constant 0 : index
    %121 = vector.load %arg12[%c0_59, %c0_60, %c0_61] : memref<4x1x128xf32, #tpu.memory_space<vmem>>, vector<1x1x128xf32>
    %122 = vector.shape_cast %121 : vector<1x1x128xf32> to vector<1x128xf32>
    %123 = vector.broadcast %122 : vector<1x128xf32> to vector<8x128xf32>
    %124 = arith.addf %120, %123 : vector<8x128xf32>
    %cst_62 = arith.constant 5.000000e-01 : f32
    %125 = vector.broadcast %cst_62 : f32 to vector<8x128xf32>
    %126 = arith.mulf %125, %124 : vector<8x128xf32>
    %127 = arith.mulf %124, %124 : vector<8x128xf32>
    %128 = arith.mulf %124, %127 : vector<8x128xf32>
    %cst_63 = arith.constant 4.471500e-02 : f32
    %129 = vector.broadcast %cst_63 : f32 to vector<8x128xf32>
    %130 = arith.mulf %129, %128 : vector<8x128xf32>
    %131 = arith.addf %124, %130 : vector<8x128xf32>
    %cst_64 = arith.constant 0.797884583 : f32
    %132 = vector.broadcast %cst_64 : f32 to vector<8x128xf32>
    %133 = arith.mulf %132, %131 : vector<8x128xf32>
    %134 = math.tanh %133 : vector<8x128xf32>
    %cst_65 = arith.constant 1.000000e+00 : f32
    %135 = vector.broadcast %cst_65 : f32 to vector<8x128xf32>
    %136 = arith.addf %135, %134 : vector<8x128xf32>
    %137 = arith.mulf %126, %136 : vector<8x128xf32>
    %138 = arith.truncf %137 : vector<8x128xf32> to vector<8x128xbf16>
    %c0_66 = arith.constant 0 : index
    %c0_67 = arith.constant 0 : index
    %c0_68 = arith.constant 0 : index
    %139 = vector.load %arg13[%c0_66, %c0_67, %c0_68] : memref<4x128x32xbf16, #tpu.memory_space<vmem>>, vector<1x128x32xbf16>
    %140 = vector.shape_cast %139 : vector<1x128x32xbf16> to vector<128x32xbf16>
    %cst_69 = arith.constant dense<0.000000e+00> : vector<8x32xf32>
    %141 = tpu.matmul %138, %140, %cst_69 {dimension_numbers = #tpu.dot_dimension_numbers<[1], [0], [0], [1], [0, 0, 1, 1], [], []>} : vector<8x128xbf16>, vector<128x32xbf16>, vector<8x32xf32> -> vector<8x32xf32>
    %c0_70 = arith.constant 0 : index
    %c0_71 = arith.constant 0 : index
    %c0_72 = arith.constant 0 : index
    %142 = vector.load %arg14[%c0_70, %c0_71, %c0_72] : memref<4x1x32xf32, #tpu.memory_space<vmem>>, vector<1x1x32xf32>
    %143 = vector.shape_cast %142 : vector<1x1x32xf32> to vector<1x32xf32>
    %144 = vector.broadcast %143 : vector<1x32xf32> to vector<8x32xf32>
    %145 = arith.addf %141, %144 : vector<8x32xf32>
    %146 = arith.addf %90, %145 : vector<8x32xf32>
    %c1 = arith.constant 1 : index
    %c0_73 = arith.constant 0 : index
    %c0_74 = arith.constant 0 : index
    %147 = vector.load %arg3[%c1, %c0_73, %c0_74] : memref<4x1x32xf32, #tpu.memory_space<vmem>>, vector<1x1x32xf32>
    %148 = vector.shape_cast %147 : vector<1x1x32xf32> to vector<1x32xf32>
    %c1_75 = arith.constant 1 : index
    %c0_76 = arith.constant 0 : index
    %c0_77 = arith.constant 0 : index
    %149 = vector.load %arg4[%c1_75, %c0_76, %c0_77] : memref<4x1x32xf32, #tpu.memory_space<vmem>>, vector<1x1x32xf32>
    %150 = vector.shape_cast %149 : vector<1x1x32xf32> to vector<1x32xf32>
    %cst_78 = arith.constant dense<0.000000e+00> : vector<8xf32>
    %151 = vector.multi_reduction <add>, %146, %cst_78 [1] : vector<8x32xf32> to vector<8xf32>
    %152 = vector.shape_cast %151 : vector<8xf32> to vector<8x1xf32>
    %cst_79 = arith.constant 3.200000e+01 : f32
    %153 = vector.broadcast %cst_79 : f32 to vector<8x1xf32>
    %154 = arith.divf %152, %153 : vector<8x1xf32>
    %155 = vector.broadcast %154 : vector<8x1xf32> to vector<8x32xf32>
    %156 = arith.subf %146, %155 : vector<8x32xf32>
    %157 = arith.mulf %156, %156 : vector<8x32xf32>
    %cst_80 = arith.constant dense<0.000000e+00> : vector<8xf32>
    %158 = vector.multi_reduction <add>, %157, %cst_80 [1] : vector<8x32xf32> to vector<8xf32>
    %159 = vector.shape_cast %158 : vector<8xf32> to vector<8x1xf32>
    %cst_81 = arith.constant 3.200000e+01 : f32
    %160 = vector.broadcast %cst_81 : f32 to vector<8x1xf32>
    %161 = arith.divf %159, %160 : vector<8x1xf32>
    %162 = vector.broadcast %154 : vector<8x1xf32> to vector<8x32xf32>
    %163 = arith.subf %146, %162 : vector<8x32xf32>
    %cst_82 = arith.constant 9.99999974E-6 : f32
    %164 = vector.broadcast %cst_82 : f32 to vector<8x1xf32>
    %165 = arith.addf %161, %164 : vector<8x1xf32>
    %166 = math.rsqrt %165 : vector<8x1xf32>
    %167 = vector.broadcast %166 : vector<8x1xf32> to vector<8x32xf32>
    %168 = arith.mulf %163, %167 : vector<8x32xf32>
    %169 = vector.broadcast %148 : vector<1x32xf32> to vector<8x32xf32>
    %170 = arith.mulf %168, %169 : vector<8x32xf32>
    %171 = vector.broadcast %150 : vector<1x32xf32> to vector<8x32xf32>
    %172 = arith.addf %170, %171 : vector<8x32xf32>
    %173 = arith.truncf %172 : vector<8x32xf32> to vector<8x32xbf16>
    %c1_83 = arith.constant 1 : index
    %c0_84 = arith.constant 0 : index
    %c0_85 = arith.constant 0 : index
    %174 = vector.load %arg5[%c1_83, %c0_84, %c0_85] : memref<4x32x96xbf16, #tpu.memory_space<vmem>>, vector<1x32x96xbf16>
    %175 = vector.shape_cast %174 : vector<1x32x96xbf16> to vector<32x96xbf16>
    %cst_86 = arith.constant dense<0.000000e+00> : vector<8x96xf32>
    %176 = tpu.matmul %173, %175, %cst_86 {dimension_numbers = #tpu.dot_dimension_numbers<[1], [0], [0], [1], [0, 0, 1, 1], [], []>} : vector<8x32xbf16>, vector<32x96xbf16>, vector<8x96xf32> -> vector<8x96xf32>
    %c1_87 = arith.constant 1 : index
    %c0_88 = arith.constant 0 : index
    %c0_89 = arith.constant 0 : index
    %177 = vector.load %arg6[%c1_87, %c0_88, %c0_89] : memref<4x1x96xf32, #tpu.memory_space<vmem>>, vector<1x1x96xf32>
    %178 = vector.shape_cast %177 : vector<1x1x96xf32> to vector<1x96xf32>
    %179 = vector.broadcast %178 : vector<1x96xf32> to vector<8x96xf32>
    %180 = arith.addf %176, %179 : vector<8x96xf32>
    %181 = vector.extract_strided_slice %180 {offsets = [0, 0], sizes = [8, 32], strides = [1, 1]} : vector<8x96xf32> to vector<8x32xf32>
    %182 = vector.extract_strided_slice %180 {offsets = [0, 32], sizes = [8, 32], strides = [1, 1]} : vector<8x96xf32> to vector<8x32xf32>
    %183 = vector.extract_strided_slice %180 {offsets = [0, 64], sizes = [8, 32], strides = [1, 1]} : vector<8x96xf32> to vector<8x32xf32>
    %184 = vector.extract_strided_slice %181 {offsets = [0, 0], sizes = [8, 16], strides = [1, 1]} : vector<8x32xf32> to vector<8x16xf32>
    %185 = vector.extract_strided_slice %182 {offsets = [0, 0], sizes = [8, 16], strides = [1, 1]} : vector<8x32xf32> to vector<8x16xf32>
    %186 = vector.extract_strided_slice %183 {offsets = [0, 0], sizes = [8, 16], strides = [1, 1]} : vector<8x32xf32> to vector<8x16xf32>
    %187 = tpu.transpose %185, [1, 0] : vector<8x16xf32> -> vector<16x8xf32>
    %cst_90 = arith.constant dense<0.000000e+00> : vector<8x8xf32>
    %188 = tpu.matmul %184, %187, %cst_90 {dimension_numbers = #tpu.dot_dimension_numbers<[1], [0], [0], [1], [0, 0, 1, 1], [], []>} : vector<8x16xf32>, vector<16x8xf32>, vector<8x8xf32> -> vector<8x8xf32>
    %cst_91 = arith.constant 2.500000e-01 : f32
    %189 = vector.broadcast %cst_91 : f32 to vector<8x8xf32>
    %190 = arith.mulf %188, %189 : vector<8x8xf32>
    %191 = arith.addf %190, %3 : vector<8x8xf32>
    %cst_92 = arith.constant dense<0xFF800000> : vector<8xf32>
    %192 = vector.multi_reduction <maximumf>, %191, %cst_92 [1] : vector<8x8xf32> to vector<8xf32>
    %193 = vector.shape_cast %192 : vector<8xf32> to vector<8x1xf32>
    %194 = vector.broadcast %193 : vector<8x1xf32> to vector<8x8xf32>
    %195 = arith.subf %191, %194 : vector<8x8xf32>
    %196 = math.exp %195 : vector<8x8xf32>
    %cst_93 = arith.constant dense<0.000000e+00> : vector<8xf32>
    %197 = vector.multi_reduction <add>, %196, %cst_93 [1] : vector<8x8xf32> to vector<8xf32>
    %198 = vector.shape_cast %197 : vector<8xf32> to vector<8x1xf32>
    %199 = tpu.reciprocal %198 {approx = true} : vector<8x1xf32> -> vector<8x1xf32>
    %200 = vector.broadcast %199 : vector<8x1xf32> to vector<8x8xf32>
    %201 = arith.mulf %196, %200 : vector<8x8xf32>
    %cst_94 = arith.constant dense<0.000000e+00> : vector<8x16xf32>
    %202 = tpu.matmul %201, %186, %cst_94 {dimension_numbers = #tpu.dot_dimension_numbers<[1], [0], [0], [1], [0, 0, 1, 1], [], []>} : vector<8x8xf32>, vector<8x16xf32>, vector<8x16xf32> -> vector<8x16xf32>
    %c0_95 = arith.constant 0 : index
    %c0_96 = arith.constant 0 : index
    %203 = vector.load %arg19[%c0_95, %c0_96] : memref<8x32xf32, #tpu.memory_space<vmem>>, vector<8x16xf32>
    tpu.vector_store %arg19[%c0_95, %c0_96], %202 {strides = array<i32>} : memref<8x32xf32, #tpu.memory_space<vmem>>, vector<8x16xf32>,
    %204 = vector.extract_strided_slice %181 {offsets = [0, 16], sizes = [8, 16], strides = [1, 1]} : vector<8x32xf32> to vector<8x16xf32>
    %205 = vector.extract_strided_slice %182 {offsets = [0, 16], sizes = [8, 16], strides = [1, 1]} : vector<8x32xf32> to vector<8x16xf32>
    %206 = vector.extract_strided_slice %183 {offsets = [0, 16], sizes = [8, 16], strides = [1, 1]} : vector<8x32xf32> to vector<8x16xf32>
    %207 = tpu.transpose %205, [1, 0] : vector<8x16xf32> -> vector<16x8xf32>
    %cst_97 = arith.constant dense<0.000000e+00> : vector<8x8xf32>
    %208 = tpu.matmul %204, %207, %cst_97 {dimension_numbers = #tpu.dot_dimension_numbers<[1], [0], [0], [1], [0, 0, 1, 1], [], []>} : vector<8x16xf32>, vector<16x8xf32>, vector<8x8xf32> -> vector<8x8xf32>
    %cst_98 = arith.constant 2.500000e-01 : f32
    %209 = vector.broadcast %cst_98 : f32 to vector<8x8xf32>
    %210 = arith.mulf %208, %209 : vector<8x8xf32>
    %211 = arith.addf %210, %3 : vector<8x8xf32>
    %cst_99 = arith.constant dense<0xFF800000> : vector<8xf32>
    %212 = vector.multi_reduction <maximumf>, %211, %cst_99 [1] : vector<8x8xf32> to vector<8xf32>
    %213 = vector.shape_cast %212 : vector<8xf32> to vector<8x1xf32>
    %214 = vector.broadcast %213 : vector<8x1xf32> to vector<8x8xf32>
    %215 = arith.subf %211, %214 : vector<8x8xf32>
    %216 = math.exp %215 : vector<8x8xf32>
    %cst_100 = arith.constant dense<0.000000e+00> : vector<8xf32>
    %217 = vector.multi_reduction <add>, %216, %cst_100 [1] : vector<8x8xf32> to vector<8xf32>
    %218 = vector.shape_cast %217 : vector<8xf32> to vector<8x1xf32>
    %219 = tpu.reciprocal %218 {approx = true} : vector<8x1xf32> -> vector<8x1xf32>
    %220 = vector.broadcast %219 : vector<8x1xf32> to vector<8x8xf32>
    %221 = arith.mulf %216, %220 : vector<8x8xf32>
    %cst_101 = arith.constant dense<0.000000e+00> : vector<8x16xf32>
    %222 = tpu.matmul %221, %206, %cst_101 {dimension_numbers = #tpu.dot_dimension_numbers<[1], [0], [0], [1], [0, 0, 1, 1], [], []>} : vector<8x8xf32>, vector<8x16xf32>, vector<8x16xf32> -> vector<8x16xf32>
    %c0_102 = arith.constant 0 : index
    %c16_103 = arith.constant 16 : index
    %223 = vector.load %arg19[%c0_102, %c16_103] : memref<8x32xf32, #tpu.memory_space<vmem>>, vector<8x16xf32>
    tpu.vector_store %arg19[%c0_102, %c16_103], %222 {strides = array<i32>} : memref<8x32xf32, #tpu.memory_space<vmem>>, vector<8x16xf32>,
    %c0_104 = arith.constant 0 : index
    %c0_105 = arith.constant 0 : index
    %224 = vector.load %arg19[%c0_104, %c0_105] : memref<8x32xf32, #tpu.memory_space<vmem>>, vector<8x32xf32>
    %225 = arith.truncf %224 : vector<8x32xf32> to vector<8x32xbf16>
    %c1_106 = arith.constant 1 : index
    %c0_107 = arith.constant 0 : index
    %c0_108 = arith.constant 0 : index
    %226 = vector.load %arg7[%c1_106, %c0_107, %c0_108] : memref<4x32x32xbf16, #tpu.memory_space<vmem>>, vector<1x32x32xbf16>
    %227 = vector.shape_cast %226 : vector<1x32x32xbf16> to vector<32x32xbf16>
    %cst_109 = arith.constant dense<0.000000e+00> : vector<8x32xf32>
    %228 = tpu.matmul %225, %227, %cst_109 {dimension_numbers = #tpu.dot_dimension_numbers<[1], [0], [0], [1], [0, 0, 1, 1], [], []>} : vector<8x32xbf16>, vector<32x32xbf16>, vector<8x32xf32> -> vector<8x32xf32>
    %c1_110 = arith.constant 1 : index
    %c0_111 = arith.constant 0 : index
    %c0_112 = arith.constant 0 : index
    %229 = vector.load %arg8[%c1_110, %c0_111, %c0_112] : memref<4x1x32xf32, #tpu.memory_space<vmem>>, vector<1x1x32xf32>
    %230 = vector.shape_cast %229 : vector<1x1x32xf32> to vector<1x32xf32>
    %231 = vector.broadcast %230 : vector<1x32xf32> to vector<8x32xf32>
    %232 = arith.addf %228, %231 : vector<8x32xf32>
    %233 = arith.addf %146, %232 : vector<8x32xf32>
    %c1_113 = arith.constant 1 : index
    %c0_114 = arith.constant 0 : index
    %c0_115 = arith.constant 0 : index
    %234 = vector.load %arg9[%c1_113, %c0_114, %c0_115] : memref<4x1x32xf32, #tpu.memory_space<vmem>>, vector<1x1x32xf32>
    %235 = vector.shape_cast %234 : vector<1x1x32xf32> to vector<1x32xf32>
    %c1_116 = arith.constant 1 : index
    %c0_117 = arith.constant 0 : index
    %c0_118 = arith.constant 0 : index
    %236 = vector.load %arg10[%c1_116, %c0_117, %c0_118] : memref<4x1x32xf32, #tpu.memory_space<vmem>>, vector<1x1x32xf32>
    %237 = vector.shape_cast %236 : vector<1x1x32xf32> to vector<1x32xf32>
    %cst_119 = arith.constant dense<0.000000e+00> : vector<8xf32>
    %238 = vector.multi_reduction <add>, %233, %cst_119 [1] : vector<8x32xf32> to vector<8xf32>
    %239 = vector.shape_cast %238 : vector<8xf32> to vector<8x1xf32>
    %cst_120 = arith.constant 3.200000e+01 : f32
    %240 = vector.broadcast %cst_120 : f32 to vector<8x1xf32>
    %241 = arith.divf %239, %240 : vector<8x1xf32>
    %242 = vector.broadcast %241 : vector<8x1xf32> to vector<8x32xf32>
    %243 = arith.subf %233, %242 : vector<8x32xf32>
    %244 = arith.mulf %243, %243 : vector<8x32xf32>
    %cst_121 = arith.constant dense<0.000000e+00> : vector<8xf32>
    %245 = vector.multi_reduction <add>, %244, %cst_121 [1] : vector<8x32xf32> to vector<8xf32>
    %246 = vector.shape_cast %245 : vector<8xf32> to vector<8x1xf32>
    %cst_122 = arith.constant 3.200000e+01 : f32
    %247 = vector.broadcast %cst_122 : f32 to vector<8x1xf32>
    %248 = arith.divf %246, %247 : vector<8x1xf32>
    %249 = vector.broadcast %241 : vector<8x1xf32> to vector<8x32xf32>
    %250 = arith.subf %233, %249 : vector<8x32xf32>
    %cst_123 = arith.constant 9.99999974E-6 : f32
    %251 = vector.broadcast %cst_123 : f32 to vector<8x1xf32>
    %252 = arith.addf %248, %251 : vector<8x1xf32>
    %253 = math.rsqrt %252 : vector<8x1xf32>
    %254 = vector.broadcast %253 : vector<8x1xf32> to vector<8x32xf32>
    %255 = arith.mulf %250, %254 : vector<8x32xf32>
    %256 = vector.broadcast %235 : vector<1x32xf32> to vector<8x32xf32>
    %257 = arith.mulf %255, %256 : vector<8x32xf32>
    %258 = vector.broadcast %237 : vector<1x32xf32> to vector<8x32xf32>
    %259 = arith.addf %257, %258 : vector<8x32xf32>
    %260 = arith.truncf %259 : vector<8x32xf32> to vector<8x32xbf16>
    %c1_124 = arith.constant 1 : index
    %c0_125 = arith.constant 0 : index
    %c0_126 = arith.constant 0 : index
    %261 = vector.load %arg11[%c1_124, %c0_125, %c0_126] : memref<4x32x128xbf16, #tpu.memory_space<vmem>>, vector<1x32x128xbf16>
    %262 = vector.shape_cast %261 : vector<1x32x128xbf16> to vector<32x128xbf16>
    %cst_127 = arith.constant dense<0.000000e+00> : vector<8x128xf32>
    %263 = tpu.matmul %260, %262, %cst_127 {dimension_numbers = #tpu.dot_dimension_numbers<[1], [0], [0], [1], [0, 0, 1, 1], [], []>} : vector<8x32xbf16>, vector<32x128xbf16>, vector<8x128xf32> -> vector<8x128xf32>
    %c1_128 = arith.constant 1 : index
    %c0_129 = arith.constant 0 : index
    %c0_130 = arith.constant 0 : index
    %264 = vector.load %arg12[%c1_128, %c0_129, %c0_130] : memref<4x1x128xf32, #tpu.memory_space<vmem>>, vector<1x1x128xf32>
    %265 = vector.shape_cast %264 : vector<1x1x128xf32> to vector<1x128xf32>
    %266 = vector.broadcast %265 : vector<1x128xf32> to vector<8x128xf32>
    %267 = arith.addf %263, %266 : vector<8x128xf32>
    %cst_131 = arith.constant 5.000000e-01 : f32
    %268 = vector.broadcast %cst_131 : f32 to vector<8x128xf32>
    %269 = arith.mulf %268, %267 : vector<8x128xf32>
    %270 = arith.mulf %267, %267 : vector<8x128xf32>
    %271 = arith.mulf %267, %270 : vector<8x128xf32>
    %cst_132 = arith.constant 4.471500e-02 : f32
    %272 = vector.broadcast %cst_132 : f32 to vector<8x128xf32>
    %273 = arith.mulf %272, %271 : vector<8x128xf32>
    %274 = arith.addf %267, %273 : vector<8x128xf32>
    %cst_133 = arith.constant 0.797884583 : f32
    %275 = vector.broadcast %cst_133 : f32 to vector<8x128xf32>
    %276 = arith.mulf %275, %274 : vector<8x128xf32>
    %277 = math.tanh %276 : vector<8x128xf32>
    %cst_134 = arith.constant 1.000000e+00 : f32
    %278 = vector.broadcast %cst_134 : f32 to vector<8x128xf32>
    %279 = arith.addf %278, %277 : vector<8x128xf32>
    %280 = arith.mulf %269, %279 : vector<8x128xf32>
    %281 = arith.truncf %280 : vector<8x128xf32> to vector<8x128xbf16>
    %c1_135 = arith.constant 1 : index
    %c0_136 = arith.constant 0 : index
    %c0_137 = arith.constant 0 : index
    %282 = vector.load %arg13[%c1_135, %c0_136, %c0_137] : memref<4x128x32xbf16, #tpu.memory_space<vmem>>, vector<1x128x32xbf16>
    %283 = vector.shape_cast %282 : vector<1x128x32xbf16> to vector<128x32xbf16>
    %cst_138 = arith.constant dense<0.000000e+00> : vector<8x32xf32>
    %284 = tpu.matmul %281, %283, %cst_138 {dimension_numbers = #tpu.dot_dimension_numbers<[1], [0], [0], [1], [0, 0, 1, 1], [], []>} : vector<8x128xbf16>, vector<128x32xbf16>, vector<8x32xf32> -> vector<8x32xf32>
    %c1_139 = arith.constant 1 : index
    %c0_140 = arith.constant 0 : index
    %c0_141 = arith.constant 0 : index
    %285 = vector.load %arg14[%c1_139, %c0_140, %c0_141] : memref<4x1x32xf32, #tpu.memory_space<vmem>>, vector<1x1x32xf32>
    %286 = vector.shape_cast %285 : vector<1x1x32xf32> to vector<1x32xf32>
    %287 = vector.broadcast %286 : vector<1x32xf32> to vector<8x32xf32>
    %288 = arith.addf %284, %287 : vector<8x32xf32>
    %289 = arith.addf %233, %288 : vector<8x32xf32>
    %c2 = arith.constant 2 : index
    %c0_142 = arith.constant 0 : index
    %c0_143 = arith.constant 0 : index
    %290 = vector.load %arg3[%c2, %c0_142, %c0_143] : memref<4x1x32xf32, #tpu.memory_space<vmem>>, vector<1x1x32xf32>
    %291 = vector.shape_cast %290 : vector<1x1x32xf32> to vector<1x32xf32>
    %c2_144 = arith.constant 2 : index
    %c0_145 = arith.constant 0 : index
    %c0_146 = arith.constant 0 : index
    %292 = vector.load %arg4[%c2_144, %c0_145, %c0_146] : memref<4x1x32xf32, #tpu.memory_space<vmem>>, vector<1x1x32xf32>
    %293 = vector.shape_cast %292 : vector<1x1x32xf32> to vector<1x32xf32>
    %cst_147 = arith.constant dense<0.000000e+00> : vector<8xf32>
    %294 = vector.multi_reduction <add>, %289, %cst_147 [1] : vector<8x32xf32> to vector<8xf32>
    %295 = vector.shape_cast %294 : vector<8xf32> to vector<8x1xf32>
    %cst_148 = arith.constant 3.200000e+01 : f32
    %296 = vector.broadcast %cst_148 : f32 to vector<8x1xf32>
    %297 = arith.divf %295, %296 : vector<8x1xf32>
    %298 = vector.broadcast %297 : vector<8x1xf32> to vector<8x32xf32>
    %299 = arith.subf %289, %298 : vector<8x32xf32>
    %300 = arith.mulf %299, %299 : vector<8x32xf32>
    %cst_149 = arith.constant dense<0.000000e+00> : vector<8xf32>
    %301 = vector.multi_reduction <add>, %300, %cst_149 [1] : vector<8x32xf32> to vector<8xf32>
    %302 = vector.shape_cast %301 : vector<8xf32> to vector<8x1xf32>
    %cst_150 = arith.constant 3.200000e+01 : f32
    %303 = vector.broadcast %cst_150 : f32 to vector<8x1xf32>
    %304 = arith.divf %302, %303 : vector<8x1xf32>
    %305 = vector.broadcast %297 : vector<8x1xf32> to vector<8x32xf32>
    %306 = arith.subf %289, %305 : vector<8x32xf32>
    %cst_151 = arith.constant 9.99999974E-6 : f32
    %307 = vector.broadcast %cst_151 : f32 to vector<8x1xf32>
    %308 = arith.addf %304, %307 : vector<8x1xf32>
    %309 = math.rsqrt %308 : vector<8x1xf32>
    %310 = vector.broadcast %309 : vector<8x1xf32> to vector<8x32xf32>
    %311 = arith.mulf %306, %310 : vector<8x32xf32>
    %312 = vector.broadcast %291 : vector<1x32xf32> to vector<8x32xf32>
    %313 = arith.mulf %311, %312 : vector<8x32xf32>
    %314 = vector.broadcast %293 : vector<1x32xf32> to vector<8x32xf32>
    %315 = arith.addf %313, %314 : vector<8x32xf32>
    %316 = arith.truncf %315 : vector<8x32xf32> to vector<8x32xbf16>
    %c2_152 = arith.constant 2 : index
    %c0_153 = arith.constant 0 : index
    %c0_154 = arith.constant 0 : index
    %317 = vector.load %arg5[%c2_152, %c0_153, %c0_154] : memref<4x32x96xbf16, #tpu.memory_space<vmem>>, vector<1x32x96xbf16>
    %318 = vector.shape_cast %317 : vector<1x32x96xbf16> to vector<32x96xbf16>
    %cst_155 = arith.constant dense<0.000000e+00> : vector<8x96xf32>
    %319 = tpu.matmul %316, %318, %cst_155 {dimension_numbers = #tpu.dot_dimension_numbers<[1], [0], [0], [1], [0, 0, 1, 1], [], []>} : vector<8x32xbf16>, vector<32x96xbf16>, vector<8x96xf32> -> vector<8x96xf32>
    %c2_156 = arith.constant 2 : index
    %c0_157 = arith.constant 0 : index
    %c0_158 = arith.constant 0 : index
    %320 = vector.load %arg6[%c2_156, %c0_157, %c0_158] : memref<4x1x96xf32, #tpu.memory_space<vmem>>, vector<1x1x96xf32>
    %321 = vector.shape_cast %320 : vector<1x1x96xf32> to vector<1x96xf32>
    %322 = vector.broadcast %321 : vector<1x96xf32> to vector<8x96xf32>
    %323 = arith.addf %319, %322 : vector<8x96xf32>
    %324 = vector.extract_strided_slice %323 {offsets = [0, 0], sizes = [8, 32], strides = [1, 1]} : vector<8x96xf32> to vector<8x32xf32>
    %325 = vector.extract_strided_slice %323 {offsets = [0, 32], sizes = [8, 32], strides = [1, 1]} : vector<8x96xf32> to vector<8x32xf32>
    %326 = vector.extract_strided_slice %323 {offsets = [0, 64], sizes = [8, 32], strides = [1, 1]} : vector<8x96xf32> to vector<8x32xf32>
    %327 = vector.extract_strided_slice %324 {offsets = [0, 0], sizes = [8, 16], strides = [1, 1]} : vector<8x32xf32> to vector<8x16xf32>
    %328 = vector.extract_strided_slice %325 {offsets = [0, 0], sizes = [8, 16], strides = [1, 1]} : vector<8x32xf32> to vector<8x16xf32>
    %329 = vector.extract_strided_slice %326 {offsets = [0, 0], sizes = [8, 16], strides = [1, 1]} : vector<8x32xf32> to vector<8x16xf32>
    %330 = tpu.transpose %328, [1, 0] : vector<8x16xf32> -> vector<16x8xf32>
    %cst_159 = arith.constant dense<0.000000e+00> : vector<8x8xf32>
    %331 = tpu.matmul %327, %330, %cst_159 {dimension_numbers = #tpu.dot_dimension_numbers<[1], [0], [0], [1], [0, 0, 1, 1], [], []>} : vector<8x16xf32>, vector<16x8xf32>, vector<8x8xf32> -> vector<8x8xf32>
    %cst_160 = arith.constant 2.500000e-01 : f32
    %332 = vector.broadcast %cst_160 : f32 to vector<8x8xf32>
    %333 = arith.mulf %331, %332 : vector<8x8xf32>
    %334 = arith.addf %333, %3 : vector<8x8xf32>
    %cst_161 = arith.constant dense<0xFF800000> : vector<8xf32>
    %335 = vector.multi_reduction <maximumf>, %334, %cst_161 [1] : vector<8x8xf32> to vector<8xf32>
    %336 = vector.shape_cast %335 : vector<8xf32> to vector<8x1xf32>
    %337 = vector.broadcast %336 : vector<8x1xf32> to vector<8x8xf32>
    %338 = arith.subf %334, %337 : vector<8x8xf32>
    %339 = math.exp %338 : vector<8x8xf32>
    %cst_162 = arith.constant dense<0.000000e+00> : vector<8xf32>
    %340 = vector.multi_reduction <add>, %339, %cst_162 [1] : vector<8x8xf32> to vector<8xf32>
    %341 = vector.shape_cast %340 : vector<8xf32> to vector<8x1xf32>
    %342 = tpu.reciprocal %341 {approx = true} : vector<8x1xf32> -> vector<8x1xf32>
    %343 = vector.broadcast %342 : vector<8x1xf32> to vector<8x8xf32>
    %344 = arith.mulf %339, %343 : vector<8x8xf32>
    %cst_163 = arith.constant dense<0.000000e+00> : vector<8x16xf32>
    %345 = tpu.matmul %344, %329, %cst_163 {dimension_numbers = #tpu.dot_dimension_numbers<[1], [0], [0], [1], [0, 0, 1, 1], [], []>} : vector<8x8xf32>, vector<8x16xf32>, vector<8x16xf32> -> vector<8x16xf32>
    %c0_164 = arith.constant 0 : index
    %c0_165 = arith.constant 0 : index
    %346 = vector.load %arg19[%c0_164, %c0_165] : memref<8x32xf32, #tpu.memory_space<vmem>>, vector<8x16xf32>
    tpu.vector_store %arg19[%c0_164, %c0_165], %345 {strides = array<i32>} : memref<8x32xf32, #tpu.memory_space<vmem>>, vector<8x16xf32>,
    %347 = vector.extract_strided_slice %324 {offsets = [0, 16], sizes = [8, 16], strides = [1, 1]} : vector<8x32xf32> to vector<8x16xf32>
    %348 = vector.extract_strided_slice %325 {offsets = [0, 16], sizes = [8, 16], strides = [1, 1]} : vector<8x32xf32> to vector<8x16xf32>
    %349 = vector.extract_strided_slice %326 {offsets = [0, 16], sizes = [8, 16], strides = [1, 1]} : vector<8x32xf32> to vector<8x16xf32>
    %350 = tpu.transpose %348, [1, 0] : vector<8x16xf32> -> vector<16x8xf32>
    %cst_166 = arith.constant dense<0.000000e+00> : vector<8x8xf32>
    %351 = tpu.matmul %347, %350, %cst_166 {dimension_numbers = #tpu.dot_dimension_numbers<[1], [0], [0], [1], [0, 0, 1, 1], [], []>} : vector<8x16xf32>, vector<16x8xf32>, vector<8x8xf32> -> vector<8x8xf32>
    %cst_167 = arith.constant 2.500000e-01 : f32
    %352 = vector.broadcast %cst_167 : f32 to vector<8x8xf32>
    %353 = arith.mulf %351, %352 : vector<8x8xf32>
    %354 = arith.addf %353, %3 : vector<8x8xf32>
    %cst_168 = arith.constant dense<0xFF800000> : vector<8xf32>
    %355 = vector.multi_reduction <maximumf>, %354, %cst_168 [1] : vector<8x8xf32> to vector<8xf32>
    %356 = vector.shape_cast %355 : vector<8xf32> to vector<8x1xf32>
    %357 = vector.broadcast %356 : vector<8x1xf32> to vector<8x8xf32>
    %358 = arith.subf %354, %357 : vector<8x8xf32>
    %359 = math.exp %358 : vector<8x8xf32>
    %cst_169 = arith.constant dense<0.000000e+00> : vector<8xf32>
    %360 = vector.multi_reduction <add>, %359, %cst_169 [1] : vector<8x8xf32> to vector<8xf32>
    %361 = vector.shape_cast %360 : vector<8xf32> to vector<8x1xf32>
    %362 = tpu.reciprocal %361 {approx = true} : vector<8x1xf32> -> vector<8x1xf32>
    %363 = vector.broadcast %362 : vector<8x1xf32> to vector<8x8xf32>
    %364 = arith.mulf %359, %363 : vector<8x8xf32>
    %cst_170 = arith.constant dense<0.000000e+00> : vector<8x16xf32>
    %365 = tpu.matmul %364, %349, %cst_170 {dimension_numbers = #tpu.dot_dimension_numbers<[1], [0], [0], [1], [0, 0, 1, 1], [], []>} : vector<8x8xf32>, vector<8x16xf32>, vector<8x16xf32> -> vector<8x16xf32>
    %c0_171 = arith.constant 0 : index
    %c16_172 = arith.constant 16 : index
    %366 = vector.load %arg19[%c0_171, %c16_172] : memref<8x32xf32, #tpu.memory_space<vmem>>, vector<8x16xf32>
    tpu.vector_store %arg19[%c0_171, %c16_172], %365 {strides = array<i32>} : memref<8x32xf32, #tpu.memory_space<vmem>>, vector<8x16xf32>,
    %c0_173 = arith.constant 0 : index
    %c0_174 = arith.constant 0 : index
    %367 = vector.load %arg19[%c0_173, %c0_174] : memref<8x32xf32, #tpu.memory_space<vmem>>, vector<8x32xf32>
    %368 = arith.truncf %367 : vector<8x32xf32> to vector<8x32xbf16>
    %c2_175 = arith.constant 2 : index
    %c0_176 = arith.constant 0 : index
    %c0_177 = arith.constant 0 : index
    %369 = vector.load %arg7[%c2_175, %c0_176, %c0_177] : memref<4x32x32xbf16, #tpu.memory_space<vmem>>, vector<1x32x32xbf16>
    %370 = vector.shape_cast %369 : vector<1x32x32xbf16> to vector<32x32xbf16>
    %cst_178 = arith.constant dense<0.000000e+00> : vector<8x32xf32>
    %371 = tpu.matmul %368, %370, %cst_178 {dimension_numbers = #tpu.dot_dimension_numbers<[1], [0], [0], [1], [0, 0, 1, 1], [], []>} : vector<8x32xbf16>, vector<32x32xbf16>, vector<8x32xf32> -> vector<8x32xf32>
    %c2_179 = arith.constant 2 : index
    %c0_180 = arith.constant 0 : index
    %c0_181 = arith.constant 0 : index
    %372 = vector.load %arg8[%c2_179, %c0_180, %c0_181] : memref<4x1x32xf32, #tpu.memory_space<vmem>>, vector<1x1x32xf32>
    %373 = vector.shape_cast %372 : vector<1x1x32xf32> to vector<1x32xf32>
    %374 = vector.broadcast %373 : vector<1x32xf32> to vector<8x32xf32>
    %375 = arith.addf %371, %374 : vector<8x32xf32>
    %376 = arith.addf %289, %375 : vector<8x32xf32>
    %c2_182 = arith.constant 2 : index
    %c0_183 = arith.constant 0 : index
    %c0_184 = arith.constant 0 : index
    %377 = vector.load %arg9[%c2_182, %c0_183, %c0_184] : memref<4x1x32xf32, #tpu.memory_space<vmem>>, vector<1x1x32xf32>
    %378 = vector.shape_cast %377 : vector<1x1x32xf32> to vector<1x32xf32>
    %c2_185 = arith.constant 2 : index
    %c0_186 = arith.constant 0 : index
    %c0_187 = arith.constant 0 : index
    %379 = vector.load %arg10[%c2_185, %c0_186, %c0_187] : memref<4x1x32xf32, #tpu.memory_space<vmem>>, vector<1x1x32xf32>
    %380 = vector.shape_cast %379 : vector<1x1x32xf32> to vector<1x32xf32>
    %cst_188 = arith.constant dense<0.000000e+00> : vector<8xf32>
    %381 = vector.multi_reduction <add>, %376, %cst_188 [1] : vector<8x32xf32> to vector<8xf32>
    %382 = vector.shape_cast %381 : vector<8xf32> to vector<8x1xf32>
    %cst_189 = arith.constant 3.200000e+01 : f32
    %383 = vector.broadcast %cst_189 : f32 to vector<8x1xf32>
    %384 = arith.divf %382, %383 : vector<8x1xf32>
    %385 = vector.broadcast %384 : vector<8x1xf32> to vector<8x32xf32>
    %386 = arith.subf %376, %385 : vector<8x32xf32>
    %387 = arith.mulf %386, %386 : vector<8x32xf32>
    %cst_190 = arith.constant dense<0.000000e+00> : vector<8xf32>
    %388 = vector.multi_reduction <add>, %387, %cst_190 [1] : vector<8x32xf32> to vector<8xf32>
    %389 = vector.shape_cast %388 : vector<8xf32> to vector<8x1xf32>
    %cst_191 = arith.constant 3.200000e+01 : f32
    %390 = vector.broadcast %cst_191 : f32 to vector<8x1xf32>
    %391 = arith.divf %389, %390 : vector<8x1xf32>
    %392 = vector.broadcast %384 : vector<8x1xf32> to vector<8x32xf32>
    %393 = arith.subf %376, %392 : vector<8x32xf32>
    %cst_192 = arith.constant 9.99999974E-6 : f32
    %394 = vector.broadcast %cst_192 : f32 to vector<8x1xf32>
    %395 = arith.addf %391, %394 : vector<8x1xf32>
    %396 = math.rsqrt %395 : vector<8x1xf32>
    %397 = vector.broadcast %396 : vector<8x1xf32> to vector<8x32xf32>
    %398 = arith.mulf %393, %397 : vector<8x32xf32>
    %399 = vector.broadcast %378 : vector<1x32xf32> to vector<8x32xf32>
    %400 = arith.mulf %398, %399 : vector<8x32xf32>
    %401 = vector.broadcast %380 : vector<1x32xf32> to vector<8x32xf32>
    %402 = arith.addf %400, %401 : vector<8x32xf32>
    %403 = arith.truncf %402 : vector<8x32xf32> to vector<8x32xbf16>
    %c2_193 = arith.constant 2 : index
    %c0_194 = arith.constant 0 : index
    %c0_195 = arith.constant 0 : index
    %404 = vector.load %arg11[%c2_193, %c0_194, %c0_195] : memref<4x32x128xbf16, #tpu.memory_space<vmem>>, vector<1x32x128xbf16>
    %405 = vector.shape_cast %404 : vector<1x32x128xbf16> to vector<32x128xbf16>
    %cst_196 = arith.constant dense<0.000000e+00> : vector<8x128xf32>
    %406 = tpu.matmul %403, %405, %cst_196 {dimension_numbers = #tpu.dot_dimension_numbers<[1], [0], [0], [1], [0, 0, 1, 1], [], []>} : vector<8x32xbf16>, vector<32x128xbf16>, vector<8x128xf32> -> vector<8x128xf32>
    %c2_197 = arith.constant 2 : index
    %c0_198 = arith.constant 0 : index
    %c0_199 = arith.constant 0 : index
    %407 = vector.load %arg12[%c2_197, %c0_198, %c0_199] : memref<4x1x128xf32, #tpu.memory_space<vmem>>, vector<1x1x128xf32>
    %408 = vector.shape_cast %407 : vector<1x1x128xf32> to vector<1x128xf32>
    %409 = vector.broadcast %408 : vector<1x128xf32> to vector<8x128xf32>
    %410 = arith.addf %406, %409 : vector<8x128xf32>
    %cst_200 = arith.constant 5.000000e-01 : f32
    %411 = vector.broadcast %cst_200 : f32 to vector<8x128xf32>
    %412 = arith.mulf %411, %410 : vector<8x128xf32>
    %413 = arith.mulf %410, %410 : vector<8x128xf32>
    %414 = arith.mulf %410, %413 : vector<8x128xf32>
    %cst_201 = arith.constant 4.471500e-02 : f32
    %415 = vector.broadcast %cst_201 : f32 to vector<8x128xf32>
    %416 = arith.mulf %415, %414 : vector<8x128xf32>
    %417 = arith.addf %410, %416 : vector<8x128xf32>
    %cst_202 = arith.constant 0.797884583 : f32
    %418 = vector.broadcast %cst_202 : f32 to vector<8x128xf32>
    %419 = arith.mulf %418, %417 : vector<8x128xf32>
    %420 = math.tanh %419 : vector<8x128xf32>
    %cst_203 = arith.constant 1.000000e+00 : f32
    %421 = vector.broadcast %cst_203 : f32 to vector<8x128xf32>
    %422 = arith.addf %421, %420 : vector<8x128xf32>
    %423 = arith.mulf %412, %422 : vector<8x128xf32>
    %424 = arith.truncf %423 : vector<8x128xf32> to vector<8x128xbf16>
    %c2_204 = arith.constant 2 : index
    %c0_205 = arith.constant 0 : index
    %c0_206 = arith.constant 0 : index
    %425 = vector.load %arg13[%c2_204, %c0_205, %c0_206] : memref<4x128x32xbf16, #tpu.memory_space<vmem>>, vector<1x128x32xbf16>
    %426 = vector.shape_cast %425 : vector<1x128x32xbf16> to vector<128x32xbf16>
    %cst_207 = arith.constant dense<0.000000e+00> : vector<8x32xf32>
    %427 = tpu.matmul %424, %426, %cst_207 {dimension_numbers = #tpu.dot_dimension_numbers<[1], [0], [0], [1], [0, 0, 1, 1], [], []>} : vector<8x128xbf16>, vector<128x32xbf16>, vector<8x32xf32> -> vector<8x32xf32>
    %c2_208 = arith.constant 2 : index
    %c0_209 = arith.constant 0 : index
    %c0_210 = arith.constant 0 : index
    %428 = vector.load %arg14[%c2_208, %c0_209, %c0_210] : memref<4x1x32xf32, #tpu.memory_space<vmem>>, vector<1x1x32xf32>
    %429 = vector.shape_cast %428 : vector<1x1x32xf32> to vector<1x32xf32>
    %430 = vector.broadcast %429 : vector<1x32xf32> to vector<8x32xf32>
    %431 = arith.addf %427, %430 : vector<8x32xf32>
    %432 = arith.addf %376, %431 : vector<8x32xf32>
    %c3 = arith.constant 3 : index
    %c0_211 = arith.constant 0 : index
    %c0_212 = arith.constant 0 : index
    %433 = vector.load %arg3[%c3, %c0_211, %c0_212] : memref<4x1x32xf32, #tpu.memory_space<vmem>>, vector<1x1x32xf32>
    %434 = vector.shape_cast %433 : vector<1x1x32xf32> to vector<1x32xf32>
    %c3_213 = arith.constant 3 : index
    %c0_214 = arith.constant 0 : index
    %c0_215 = arith.constant 0 : index
    %435 = vector.load %arg4[%c3_213, %c0_214, %c0_215] : memref<4x1x32xf32, #tpu.memory_space<vmem>>, vector<1x1x32xf32>
    %436 = vector.shape_cast %435 : vector<1x1x32xf32> to vector<1x32xf32>
    %cst_216 = arith.constant dense<0.000000e+00> : vector<8xf32>
    %437 = vector.multi_reduction <add>, %432, %cst_216 [1] : vector<8x32xf32> to vector<8xf32>
    %438 = vector.shape_cast %437 : vector<8xf32> to vector<8x1xf32>
    %cst_217 = arith.constant 3.200000e+01 : f32
    %439 = vector.broadcast %cst_217 : f32 to vector<8x1xf32>
    %440 = arith.divf %438, %439 : vector<8x1xf32>
    %441 = vector.broadcast %440 : vector<8x1xf32> to vector<8x32xf32>
    %442 = arith.subf %432, %441 : vector<8x32xf32>
    %443 = arith.mulf %442, %442 : vector<8x32xf32>
    %cst_218 = arith.constant dense<0.000000e+00> : vector<8xf32>
    %444 = vector.multi_reduction <add>, %443, %cst_218 [1] : vector<8x32xf32> to vector<8xf32>
    %445 = vector.shape_cast %444 : vector<8xf32> to vector<8x1xf32>
    %cst_219 = arith.constant 3.200000e+01 : f32
    %446 = vector.broadcast %cst_219 : f32 to vector<8x1xf32>
    %447 = arith.divf %445, %446 : vector<8x1xf32>
    %448 = vector.broadcast %440 : vector<8x1xf32> to vector<8x32xf32>
    %449 = arith.subf %432, %448 : vector<8x32xf32>
    %cst_220 = arith.constant 9.99999974E-6 : f32
    %450 = vector.broadcast %cst_220 : f32 to vector<8x1xf32>
    %451 = arith.addf %447, %450 : vector<8x1xf32>
    %452 = math.rsqrt %451 : vector<8x1xf32>
    %453 = vector.broadcast %452 : vector<8x1xf32> to vector<8x32xf32>
    %454 = arith.mulf %449, %453 : vector<8x32xf32>
    %455 = vector.broadcast %434 : vector<1x32xf32> to vector<8x32xf32>
    %456 = arith.mulf %454, %455 : vector<8x32xf32>
    %457 = vector.broadcast %436 : vector<1x32xf32> to vector<8x32xf32>
    %458 = arith.addf %456, %457 : vector<8x32xf32>
    %459 = arith.truncf %458 : vector<8x32xf32> to vector<8x32xbf16>
    %c3_221 = arith.constant 3 : index
    %c0_222 = arith.constant 0 : index
    %c0_223 = arith.constant 0 : index
    %460 = vector.load %arg5[%c3_221, %c0_222, %c0_223] : memref<4x32x96xbf16, #tpu.memory_space<vmem>>, vector<1x32x96xbf16>
    %461 = vector.shape_cast %460 : vector<1x32x96xbf16> to vector<32x96xbf16>
    %cst_224 = arith.constant dense<0.000000e+00> : vector<8x96xf32>
    %462 = tpu.matmul %459, %461, %cst_224 {dimension_numbers = #tpu.dot_dimension_numbers<[1], [0], [0], [1], [0, 0, 1, 1], [], []>} : vector<8x32xbf16>, vector<32x96xbf16>, vector<8x96xf32> -> vector<8x96xf32>
    %c3_225 = arith.constant 3 : index
    %c0_226 = arith.constant 0 : index
    %c0_227 = arith.constant 0 : index
    %463 = vector.load %arg6[%c3_225, %c0_226, %c0_227] : memref<4x1x96xf32, #tpu.memory_space<vmem>>, vector<1x1x96xf32>
    %464 = vector.shape_cast %463 : vector<1x1x96xf32> to vector<1x96xf32>
    %465 = vector.broadcast %464 : vector<1x96xf32> to vector<8x96xf32>
    %466 = arith.addf %462, %465 : vector<8x96xf32>
    %467 = vector.extract_strided_slice %466 {offsets = [0, 0], sizes = [8, 32], strides = [1, 1]} : vector<8x96xf32> to vector<8x32xf32>
    %468 = vector.extract_strided_slice %466 {offsets = [0, 32], sizes = [8, 32], strides = [1, 1]} : vector<8x96xf32> to vector<8x32xf32>
    %469 = vector.extract_strided_slice %466 {offsets = [0, 64], sizes = [8, 32], strides = [1, 1]} : vector<8x96xf32> to vector<8x32xf32>
    %470 = vector.extract_strided_slice %467 {offsets = [0, 0], sizes = [8, 16], strides = [1, 1]} : vector<8x32xf32> to vector<8x16xf32>
    %471 = vector.extract_strided_slice %468 {offsets = [0, 0], sizes = [8, 16], strides = [1, 1]} : vector<8x32xf32> to vector<8x16xf32>
    %472 = vector.extract_strided_slice %469 {offsets = [0, 0], sizes = [8, 16], strides = [1, 1]} : vector<8x32xf32> to vector<8x16xf32>
    %473 = tpu.transpose %471, [1, 0] : vector<8x16xf32> -> vector<16x8xf32>
    %cst_228 = arith.constant dense<0.000000e+00> : vector<8x8xf32>
    %474 = tpu.matmul %470, %473, %cst_228 {dimension_numbers = #tpu.dot_dimension_numbers<[1], [0], [0], [1], [0, 0, 1, 1], [], []>} : vector<8x16xf32>, vector<16x8xf32>, vector<8x8xf32> -> vector<8x8xf32>
    %cst_229 = arith.constant 2.500000e-01 : f32
    %475 = vector.broadcast %cst_229 : f32 to vector<8x8xf32>
    %476 = arith.mulf %474, %475 : vector<8x8xf32>
    %477 = arith.addf %476, %3 : vector<8x8xf32>
    %cst_230 = arith.constant dense<0xFF800000> : vector<8xf32>
    %478 = vector.multi_reduction <maximumf>, %477, %cst_230 [1] : vector<8x8xf32> to vector<8xf32>
    %479 = vector.shape_cast %478 : vector<8xf32> to vector<8x1xf32>
    %480 = vector.broadcast %479 : vector<8x1xf32> to vector<8x8xf32>
    %481 = arith.subf %477, %480 : vector<8x8xf32>
    %482 = math.exp %481 : vector<8x8xf32>
    %cst_231 = arith.constant dense<0.000000e+00> : vector<8xf32>
    %483 = vector.multi_reduction <add>, %482, %cst_231 [1] : vector<8x8xf32> to vector<8xf32>
    %484 = vector.shape_cast %483 : vector<8xf32> to vector<8x1xf32>
    %485 = tpu.reciprocal %484 {approx = true} : vector<8x1xf32> -> vector<8x1xf32>
    %486 = vector.broadcast %485 : vector<8x1xf32> to vector<8x8xf32>
    %487 = arith.mulf %482, %486 : vector<8x8xf32>
    %cst_232 = arith.constant dense<0.000000e+00> : vector<8x16xf32>
    %488 = tpu.matmul %487, %472, %cst_232 {dimension_numbers = #tpu.dot_dimension_numbers<[1], [0], [0], [1], [0, 0, 1, 1], [], []>} : vector<8x8xf32>, vector<8x16xf32>, vector<8x16xf32> -> vector<8x16xf32>
    %c0_233 = arith.constant 0 : index
    %c0_234 = arith.constant 0 : index
    %489 = vector.load %arg19[%c0_233, %c0_234] : memref<8x32xf32, #tpu.memory_space<vmem>>, vector<8x16xf32>
    tpu.vector_store %arg19[%c0_233, %c0_234], %488 {strides = array<i32>} : memref<8x32xf32, #tpu.memory_space<vmem>>, vector<8x16xf32>,
    %490 = vector.extract_strided_slice %467 {offsets = [0, 16], sizes = [8, 16], strides = [1, 1]} : vector<8x32xf32> to vector<8x16xf32>
    %491 = vector.extract_strided_slice %468 {offsets = [0, 16], sizes = [8, 16], strides = [1, 1]} : vector<8x32xf32> to vector<8x16xf32>
    %492 = vector.extract_strided_slice %469 {offsets = [0, 16], sizes = [8, 16], strides = [1, 1]} : vector<8x32xf32> to vector<8x16xf32>
    %493 = tpu.transpose %491, [1, 0] : vector<8x16xf32> -> vector<16x8xf32>
    %cst_235 = arith.constant dense<0.000000e+00> : vector<8x8xf32>
    %494 = tpu.matmul %490, %493, %cst_235 {dimension_numbers = #tpu.dot_dimension_numbers<[1], [0], [0], [1], [0, 0, 1, 1], [], []>} : vector<8x16xf32>, vector<16x8xf32>, vector<8x8xf32> -> vector<8x8xf32>
    %cst_236 = arith.constant 2.500000e-01 : f32
    %495 = vector.broadcast %cst_236 : f32 to vector<8x8xf32>
    %496 = arith.mulf %494, %495 : vector<8x8xf32>
    %497 = arith.addf %496, %3 : vector<8x8xf32>
    %cst_237 = arith.constant dense<0xFF800000> : vector<8xf32>
    %498 = vector.multi_reduction <maximumf>, %497, %cst_237 [1] : vector<8x8xf32> to vector<8xf32>
    %499 = vector.shape_cast %498 : vector<8xf32> to vector<8x1xf32>
    %500 = vector.broadcast %499 : vector<8x1xf32> to vector<8x8xf32>
    %501 = arith.subf %497, %500 : vector<8x8xf32>
    %502 = math.exp %501 : vector<8x8xf32>
    %cst_238 = arith.constant dense<0.000000e+00> : vector<8xf32>
    %503 = vector.multi_reduction <add>, %502, %cst_238 [1] : vector<8x8xf32> to vector<8xf32>
    %504 = vector.shape_cast %503 : vector<8xf32> to vector<8x1xf32>
    %505 = tpu.reciprocal %504 {approx = true} : vector<8x1xf32> -> vector<8x1xf32>
    %506 = vector.broadcast %505 : vector<8x1xf32> to vector<8x8xf32>
    %507 = arith.mulf %502, %506 : vector<8x8xf32>
    %cst_239 = arith.constant dense<0.000000e+00> : vector<8x16xf32>
    %508 = tpu.matmul %507, %492, %cst_239 {dimension_numbers = #tpu.dot_dimension_numbers<[1], [0], [0], [1], [0, 0, 1, 1], [], []>} : vector<8x8xf32>, vector<8x16xf32>, vector<8x16xf32> -> vector<8x16xf32>
    %c0_240 = arith.constant 0 : index
    %c16_241 = arith.constant 16 : index
    %509 = vector.load %arg19[%c0_240, %c16_241] : memref<8x32xf32, #tpu.memory_space<vmem>>, vector<8x16xf32>
    tpu.vector_store %arg19[%c0_240, %c16_241], %508 {strides = array<i32>} : memref<8x32xf32, #tpu.memory_space<vmem>>, vector<8x16xf32>,
    %c0_242 = arith.constant 0 : index
    %c0_243 = arith.constant 0 : index
    %510 = vector.load %arg19[%c0_242, %c0_243] : memref<8x32xf32, #tpu.memory_space<vmem>>, vector<8x32xf32>
    %511 = arith.truncf %510 : vector<8x32xf32> to vector<8x32xbf16>
    %c3_244 = arith.constant 3 : index
    %c0_245 = arith.constant 0 : index
    %c0_246 = arith.constant 0 : index
    %512 = vector.load %arg7[%c3_244, %c0_245, %c0_246] : memref<4x32x32xbf16, #tpu.memory_space<vmem>>, vector<1x32x32xbf16>
    %513 = vector.shape_cast %512 : vector<1x32x32xbf16> to vector<32x32xbf16>
    %cst_247 = arith.constant dense<0.000000e+00> : vector<8x32xf32>
    %514 = tpu.matmul %511, %513, %cst_247 {dimension_numbers = #tpu.dot_dimension_numbers<[1], [0], [0], [1], [0, 0, 1, 1], [], []>} : vector<8x32xbf16>, vector<32x32xbf16>, vector<8x32xf32> -> vector<8x32xf32>
    %c3_248 = arith.constant 3 : index
    %c0_249 = arith.constant 0 : index
    %c0_250 = arith.constant 0 : index
    %515 = vector.load %arg8[%c3_248, %c0_249, %c0_250] : memref<4x1x32xf32, #tpu.memory_space<vmem>>, vector<1x1x32xf32>
    %516 = vector.shape_cast %515 : vector<1x1x32xf32> to vector<1x32xf32>
    %517 = vector.broadcast %516 : vector<1x32xf32> to vector<8x32xf32>
    %518 = arith.addf %514, %517 : vector<8x32xf32>
    %519 = arith.addf %432, %518 : vector<8x32xf32>
    %c3_251 = arith.constant 3 : index
    %c0_252 = arith.constant 0 : index
    %c0_253 = arith.constant 0 : index
    %520 = vector.load %arg9[%c3_251, %c0_252, %c0_253] : memref<4x1x32xf32, #tpu.memory_space<vmem>>, vector<1x1x32xf32>
    %521 = vector.shape_cast %520 : vector<1x1x32xf32> to vector<1x32xf32>
    %c3_254 = arith.constant 3 : index
    %c0_255 = arith.constant 0 : index
    %c0_256 = arith.constant 0 : index
    %522 = vector.load %arg10[%c3_254, %c0_255, %c0_256] : memref<4x1x32xf32, #tpu.memory_space<vmem>>, vector<1x1x32xf32>
    %523 = vector.shape_cast %522 : vector<1x1x32xf32> to vector<1x32xf32>
    %cst_257 = arith.constant dense<0.000000e+00> : vector<8xf32>
    %524 = vector.multi_reduction <add>, %519, %cst_257 [1] : vector<8x32xf32> to vector<8xf32>
    %525 = vector.shape_cast %524 : vector<8xf32> to vector<8x1xf32>
    %cst_258 = arith.constant 3.200000e+01 : f32
    %526 = vector.broadcast %cst_258 : f32 to vector<8x1xf32>
    %527 = arith.divf %525, %526 : vector<8x1xf32>
    %528 = vector.broadcast %527 : vector<8x1xf32> to vector<8x32xf32>
    %529 = arith.subf %519, %528 : vector<8x32xf32>
    %530 = arith.mulf %529, %529 : vector<8x32xf32>
    %cst_259 = arith.constant dense<0.000000e+00> : vector<8xf32>
    %531 = vector.multi_reduction <add>, %530, %cst_259 [1] : vector<8x32xf32> to vector<8xf32>
    %532 = vector.shape_cast %531 : vector<8xf32> to vector<8x1xf32>
    %cst_260 = arith.constant 3.200000e+01 : f32
    %533 = vector.broadcast %cst_260 : f32 to vector<8x1xf32>
    %534 = arith.divf %532, %533 : vector<8x1xf32>
    %535 = vector.broadcast %527 : vector<8x1xf32> to vector<8x32xf32>
    %536 = arith.subf %519, %535 : vector<8x32xf32>
    %cst_261 = arith.constant 9.99999974E-6 : f32
    %537 = vector.broadcast %cst_261 : f32 to vector<8x1xf32>
    %538 = arith.addf %534, %537 : vector<8x1xf32>
    %539 = math.rsqrt %538 : vector<8x1xf32>
    %540 = vector.broadcast %539 : vector<8x1xf32> to vector<8x32xf32>
    %541 = arith.mulf %536, %540 : vector<8x32xf32>
    %542 = vector.broadcast %521 : vector<1x32xf32> to vector<8x32xf32>
    %543 = arith.mulf %541, %542 : vector<8x32xf32>
    %544 = vector.broadcast %523 : vector<1x32xf32> to vector<8x32xf32>
    %545 = arith.addf %543, %544 : vector<8x32xf32>
    %546 = arith.truncf %545 : vector<8x32xf32> to vector<8x32xbf16>
    %c3_262 = arith.constant 3 : index
    %c0_263 = arith.constant 0 : index
    %c0_264 = arith.constant 0 : index
    %547 = vector.load %arg11[%c3_262, %c0_263, %c0_264] : memref<4x32x128xbf16, #tpu.memory_space<vmem>>, vector<1x32x128xbf16>
    %548 = vector.shape_cast %547 : vector<1x32x128xbf16> to vector<32x128xbf16>
    %cst_265 = arith.constant dense<0.000000e+00> : vector<8x128xf32>
    %549 = tpu.matmul %546, %548, %cst_265 {dimension_numbers = #tpu.dot_dimension_numbers<[1], [0], [0], [1], [0, 0, 1, 1], [], []>} : vector<8x32xbf16>, vector<32x128xbf16>, vector<8x128xf32> -> vector<8x128xf32>
    %c3_266 = arith.constant 3 : index
    %c0_267 = arith.constant 0 : index
    %c0_268 = arith.constant 0 : index
    %550 = vector.load %arg12[%c3_266, %c0_267, %c0_268] : memref<4x1x128xf32, #tpu.memory_space<vmem>>, vector<1x1x128xf32>
    %551 = vector.shape_cast %550 : vector<1x1x128xf32> to vector<1x128xf32>
    %552 = vector.broadcast %551 : vector<1x128xf32> to vector<8x128xf32>
    %553 = arith.addf %549, %552 : vector<8x128xf32>
    %cst_269 = arith.constant 5.000000e-01 : f32
    %554 = vector.broadcast %cst_269 : f32 to vector<8x128xf32>
    %555 = arith.mulf %554, %553 : vector<8x128xf32>
    %556 = arith.mulf %553, %553 : vector<8x128xf32>
    %557 = arith.mulf %553, %556 : vector<8x128xf32>
    %cst_270 = arith.constant 4.471500e-02 : f32
    %558 = vector.broadcast %cst_270 : f32 to vector<8x128xf32>
    %559 = arith.mulf %558, %557 : vector<8x128xf32>
    %560 = arith.addf %553, %559 : vector<8x128xf32>
    %cst_271 = arith.constant 0.797884583 : f32
    %561 = vector.broadcast %cst_271 : f32 to vector<8x128xf32>
    %562 = arith.mulf %561, %560 : vector<8x128xf32>
    %563 = math.tanh %562 : vector<8x128xf32>
    %cst_272 = arith.constant 1.000000e+00 : f32
    %564 = vector.broadcast %cst_272 : f32 to vector<8x128xf32>
    %565 = arith.addf %564, %563 : vector<8x128xf32>
    %566 = arith.mulf %555, %565 : vector<8x128xf32>
    %567 = arith.truncf %566 : vector<8x128xf32> to vector<8x128xbf16>
    %c3_273 = arith.constant 3 : index
    %c0_274 = arith.constant 0 : index
    %c0_275 = arith.constant 0 : index
    %568 = vector.load %arg13[%c3_273, %c0_274, %c0_275] : memref<4x128x32xbf16, #tpu.memory_space<vmem>>, vector<1x128x32xbf16>
    %569 = vector.shape_cast %568 : vector<1x128x32xbf16> to vector<128x32xbf16>
    %cst_276 = arith.constant dense<0.000000e+00> : vector<8x32xf32>
    %570 = tpu.matmul %567, %569, %cst_276 {dimension_numbers = #tpu.dot_dimension_numbers<[1], [0], [0], [1], [0, 0, 1, 1], [], []>} : vector<8x128xbf16>, vector<128x32xbf16>, vector<8x32xf32> -> vector<8x32xf32>
    %c3_277 = arith.constant 3 : index
    %c0_278 = arith.constant 0 : index
    %c0_279 = arith.constant 0 : index
    %571 = vector.load %arg14[%c3_277, %c0_278, %c0_279] : memref<4x1x32xf32, #tpu.memory_space<vmem>>, vector<1x1x32xf32>
    %572 = vector.shape_cast %571 : vector<1x1x32xf32> to vector<1x32xf32>
    %573 = vector.broadcast %572 : vector<1x32xf32> to vector<8x32xf32>
    %574 = arith.addf %570, %573 : vector<8x32xf32>
    %575 = arith.addf %519, %574 : vector<8x32xf32>
    %c0_280 = arith.constant 0 : index
    %c0_281 = arith.constant 0 : index
    %576 = vector.load %arg15[%c0_280, %c0_281] : memref<1x32xf32, #tpu.memory_space<vmem>>, vector<1x32xf32>
    %c0_282 = arith.constant 0 : index
    %c0_283 = arith.constant 0 : index
    %577 = vector.load %arg16[%c0_282, %c0_283] : memref<1x32xf32, #tpu.memory_space<vmem>>, vector<1x32xf32>
    %cst_284 = arith.constant dense<0.000000e+00> : vector<8xf32>
    %578 = vector.multi_reduction <add>, %575, %cst_284 [1] : vector<8x32xf32> to vector<8xf32>
    %579 = vector.shape_cast %578 : vector<8xf32> to vector<8x1xf32>
    %cst_285 = arith.constant 3.200000e+01 : f32
    %580 = vector.broadcast %cst_285 : f32 to vector<8x1xf32>
    %581 = arith.divf %579, %580 : vector<8x1xf32>
    %582 = vector.broadcast %581 : vector<8x1xf32> to vector<8x32xf32>
    %583 = arith.subf %575, %582 : vector<8x32xf32>
    %584 = arith.mulf %583, %583 : vector<8x32xf32>
    %cst_286 = arith.constant dense<0.000000e+00> : vector<8xf32>
    %585 = vector.multi_reduction <add>, %584, %cst_286 [1] : vector<8x32xf32> to vector<8xf32>
    %586 = vector.shape_cast %585 : vector<8xf32> to vector<8x1xf32>
    %cst_287 = arith.constant 3.200000e+01 : f32
    %587 = vector.broadcast %cst_287 : f32 to vector<8x1xf32>
    %588 = arith.divf %586, %587 : vector<8x1xf32>
    %589 = vector.broadcast %581 : vector<8x1xf32> to vector<8x32xf32>
    %590 = arith.subf %575, %589 : vector<8x32xf32>
    %cst_288 = arith.constant 9.99999974E-6 : f32
    %591 = vector.broadcast %cst_288 : f32 to vector<8x1xf32>
    %592 = arith.addf %588, %591 : vector<8x1xf32>
    %593 = math.rsqrt %592 : vector<8x1xf32>
    %594 = vector.broadcast %593 : vector<8x1xf32> to vector<8x32xf32>
    %595 = arith.mulf %590, %594 : vector<8x32xf32>
    %596 = vector.broadcast %576 : vector<1x32xf32> to vector<8x32xf32>
    %597 = arith.mulf %595, %596 : vector<8x32xf32>
    %598 = vector.broadcast %577 : vector<1x32xf32> to vector<8x32xf32>
    %599 = arith.addf %597, %598 : vector<8x32xf32>
    %cst_289 = arith.constant dense<0.000000e+00> : vector<32xf32>
    %600 = vector.multi_reduction <add>, %432, %cst_289 [0] : vector<8x32xf32> to vector<32xf32>
    %601 = vector.shape_cast %600 : vector<32xf32> to vector<1x32xf32>
    %cst_290 = arith.constant 8.000000e+00 : f32
    %602 = vector.broadcast %cst_290 : f32 to vector<1x32xf32>
    %603 = arith.divf %601, %602 : vector<1x32xf32>
    %c0_291 = arith.constant 0 : index
    %c0_292 = arith.constant 0 : index
    %c0_293 = arith.constant 0 : index
    %604 = vector.load %arg17[%c0_291, %c0_292, %c0_293] : memref<1x1x32xf32, #tpu.memory_space<vmem>>, vector<1x1x32xf32>
    %605 = vector.shape_cast %604 : vector<1x1x32xf32> to vector<1x32xf32>
    %606 = vector.shape_cast %603 : vector<1x32xf32> to vector<1x1x32xf32>
    tpu.vector_store %arg17[%c0_291, %c0_292, %c0_293], %606 {strides = array<i32>} : memref<1x1x32xf32, #tpu.memory_space<vmem>>, vector<1x1x32xf32>,
    %607 = tpu.concatenate %599, %432, %289, %146 in 1 : vector<8x32xf32>, vector<8x32xf32>, vector<8x32xf32>, vector<8x32xf32> -> vector<8x128xf32>
    %c0_294 = arith.constant 0 : index
    %c0_295 = arith.constant 0 : index
    %c0_296 = arith.constant 0 : index
    %608 = vector.load %arg18[%c0_294, %c0_295, %c0_296] : memref<1x8x128xf32, #tpu.memory_space<vmem>>, vector<1x8x128xf32>
    %609 = vector.shape_cast %608 : vector<1x8x128xf32> to vector<8x128xf32>
    %610 = vector.shape_cast %607 : vector<8x128xf32> to vector<1x8x128xf32>
    tpu.vector_store %arg18[%c0_294, %c0_295, %c0_296], %610 {strides = array<i32>} : memref<1x8x128xf32, #tpu.memory_space<vmem>>, vector<1x8x128xf32>,
    return
  }
  func.func @transform_0(%arg0: i32) -> (i32, i32, i32) {
    %c0_i32 = arith.constant 0 : i32
    %c0_i32_0 = arith.constant 0 : i32
    %c0_i32_1 = arith.constant 0 : i32
    return %arg0, %c0_i32, %c0_i32_0 : i32, i32, i32
  }
  func.func @transform_1(%arg0: i32) -> (i32, i32, i32) {
    %c0_i32 = arith.constant 0 : i32
    %c0_i32_0 = arith.constant 0 : i32
    %c0_i32_1 = arith.constant 0 : i32
    return %arg0, %c0_i32, %c0_i32_0 : i32, i32, i32
  }
  func.func @transform_2(%arg0: i32) -> (i32, i32, i32) {
    %c0_i32 = arith.constant 0 : i32
    %c0_i32_0 = arith.constant 0 : i32
    %c0_i32_1 = arith.constant 0 : i32
    %c0_i32_2 = arith.constant 0 : i32
    return %c0_i32, %c0_i32_0, %c0_i32_1 : i32, i32, i32
  }
  func.func @transform_3(%arg0: i32) -> (i32, i32, i32) {
    %c0_i32 = arith.constant 0 : i32
    %c0_i32_0 = arith.constant 0 : i32
    %c0_i32_1 = arith.constant 0 : i32
    %c0_i32_2 = arith.constant 0 : i32
    return %c0_i32, %c0_i32_0, %c0_i32_1 : i32, i32, i32
  }
  func.func @transform_4(%arg0: i32) -> (i32, i32, i32) {
    %c0_i32 = arith.constant 0 : i32
    %c0_i32_0 = arith.constant 0 : i32
    %c0_i32_1 = arith.constant 0 : i32
    %c0_i32_2 = arith.constant 0 : i32
    return %c0_i32, %c0_i32_0, %c0_i32_1 : i32, i32, i32
  }
  func.func @transform_5(%arg0: i32) -> (i32, i32, i32) {
    %c0_i32 = arith.constant 0 : i32
    %c0_i32_0 = arith.constant 0 : i32
    %c0_i32_1 = arith.constant 0 : i32
    %c0_i32_2 = arith.constant 0 : i32
    return %c0_i32, %c0_i32_0, %c0_i32_1 : i32, i32, i32
  }
  func.func @transform_6(%arg0: i32) -> (i32, i32, i32) {
    %c0_i32 = arith.constant 0 : i32
    %c0_i32_0 = arith.constant 0 : i32
    %c0_i32_1 = arith.constant 0 : i32
    %c0_i32_2 = arith.constant 0 : i32
    return %c0_i32, %c0_i32_0, %c0_i32_1 : i32, i32, i32
  }
  func.func @transform_7(%arg0: i32) -> (i32, i32, i32) {
    %c0_i32 = arith.constant 0 : i32
    %c0_i32_0 = arith.constant 0 : i32
    %c0_i32_1 = arith.constant 0 : i32
    %c0_i32_2 = arith.constant 0 : i32
    return %c0_i32, %c0_i32_0, %c0_i32_1 : i32, i32, i32
  }
  func.func @transform_8(%arg0: i32) -> (i32, i32, i32) {
    %c0_i32 = arith.constant 0 : i32
    %c0_i32_0 = arith.constant 0 : i32
    %c0_i32_1 = arith.constant 0 : i32
    %c0_i32_2 = arith.constant 0 : i32
    return %c0_i32, %c0_i32_0, %c0_i32_1 : i32, i32, i32
  }
  func.func @transform_9(%arg0: i32) -> (i32, i32, i32) {
    %c0_i32 = arith.constant 0 : i32
    %c0_i32_0 = arith.constant 0 : i32
    %c0_i32_1 = arith.constant 0 : i32
    %c0_i32_2 = arith.constant 0 : i32
    return %c0_i32, %c0_i32_0, %c0_i32_1 : i32, i32, i32
  }
  func.func @transform_10(%arg0: i32) -> (i32, i32, i32) {
    %c0_i32 = arith.constant 0 : i32
    %c0_i32_0 = arith.constant 0 : i32
    %c0_i32_1 = arith.constant 0 : i32
    %c0_i32_2 = arith.constant 0 : i32
    return %c0_i32, %c0_i32_0, %c0_i32_1 : i32, i32, i32
  }
  func.func @transform_11(%arg0: i32) -> (i32, i32, i32) {
    %c0_i32 = arith.constant 0 : i32
    %c0_i32_0 = arith.constant 0 : i32
    %c0_i32_1 = arith.constant 0 : i32
    %c0_i32_2 = arith.constant 0 : i32
    return %c0_i32, %c0_i32_0, %c0_i32_1 : i32, i32, i32
  }
  func.func @transform_12(%arg0: i32) -> (i32, i32, i32) {
    %c0_i32 = arith.constant 0 : i32
    %c0_i32_0 = arith.constant 0 : i32
    %c0_i32_1 = arith.constant 0 : i32
    %c0_i32_2 = arith.constant 0 : i32
    return %c0_i32, %c0_i32_0, %c0_i32_1 : i32, i32, i32
  }
  func.func @transform_13(%arg0: i32) -> (i32, i32, i32) {
    %c0_i32 = arith.constant 0 : i32
    %c0_i32_0 = arith.constant 0 : i32
    %c0_i32_1 = arith.constant 0 : i32
    %c0_i32_2 = arith.constant 0 : i32
    return %c0_i32, %c0_i32_0, %c0_i32_1 : i32, i32, i32
  }
  func.func @transform_14(%arg0: i32) -> (i32, i32) {
    %c0_i32 = arith.constant 0 : i32
    %c0_i32_0 = arith.constant 0 : i32
    %c0_i32_1 = arith.constant 0 : i32
    return %c0_i32, %c0_i32_0 : i32, i32
  }
  func.func @transform_15(%arg0: i32) -> (i32, i32) {
    %c0_i32 = arith.constant 0 : i32
    %c0_i32_0 = arith.constant 0 : i32
    %c0_i32_1 = arith.constant 0 : i32
    return %c0_i32, %c0_i32_0 : i32, i32
  }
  func.func @transform_16(%arg0: i32) -> (i32, i32, i32) {
    %c0_i32 = arith.constant 0 : i32
    %c0_i32_0 = arith.constant 0 : i32
    %c0_i32_1 = arith.constant 0 : i32
    return %arg0, %c0_i32, %c0_i32_0 : i32, i32, i32
  }
  func.func @transform_17(%arg0: i32) -> (i32, i32, i32) {
    %c0_i32 = arith.constant 0 : i32
    %c0_i32_0 = arith.constant 0 : i32
    %c0_i32_1 = arith.constant 0 : i32
    return %arg0, %c0_i32, %c0_i32_0 : i32, i32, i32
  }
}

</mosaic_0001>

<llo_original>
// kernel: tpu_custom_call.1
$region0: #{tpu_custom_call.1}
  #allocation0 [shape = 'u32[]', space=smem, size = 0x4, offset = 0x4, fixed_abs, tag = 'smem constant byte address 0x4 - core index']
  #allocation1 [shape = 'u32[144,128]{1,0:T(1,128)}', space=vmem, size = 0x12000, scoped, tag = 'internal scratch']
  #allocation2 [shape = 'f32[8,32]{1,0:T(8,128)}', space=vmem, size = 0x1000, scoped, tag = 'scratch operand']
  %s0 = inlined_call_operand.vmem [shape: f32[2,8,32], index: 0, kind: input, shape index: {}]
  %s1 = inlined_call_operand.vmem [shape: f32[2,8,8], index: 1, kind: input, shape index: {}]
  %s2 = inlined_call_operand.vmem [shape: f32[4,1,32], index: 2, kind: input, shape index: {}]
  %s3 = inlined_call_operand.vmem [shape: f32[4,1,32], index: 3, kind: input, shape index: {}]
  %s4 = inlined_call_operand.vmem [shape: bf16[4,32,96], index: 4, kind: input, shape index: {}]
  %s5 = inlined_call_operand.vmem [shape: f32[4,1,96], index: 5, kind: input, shape index: {}]
  %s6 = inlined_call_operand.vmem [shape: bf16[4,32,32], index: 6, kind: input, shape index: {}]
  %s7 = inlined_call_operand.vmem [shape: f32[4,1,32], index: 7, kind: input, shape index: {}]
  %s8 = inlined_call_operand.vmem [shape: f32[4,1,32], index: 8, kind: input, shape index: {}]
  %s9 = inlined_call_operand.vmem [shape: f32[4,1,32], index: 9, kind: input, shape index: {}]
  %s10 = inlined_call_operand.vmem [shape: bf16[4,32,128], index: 10, kind: input, shape index: {}]
  %s11 = inlined_call_operand.vmem [shape: f32[4,1,128], index: 11, kind: input, shape index: {}]
  %s12 = inlined_call_operand.vmem [shape: bf16[4,128,32], index: 12, kind: input, shape index: {}]
  %s13 = inlined_call_operand.vmem [shape: f32[4,1,32], index: 13, kind: input, shape index: {}]
  %s14 = inlined_call_operand.vmem [shape: f32[1,32], index: 14, kind: input, shape index: {}]
  %s15 = inlined_call_operand.vmem [shape: f32[1,32], index: 15, kind: input, shape index: {}]
  %s16 = inlined_call_operand.hbm [shape: f32[2,1,32], index: 16, kind: output, shape index: {0}]
  %s17 = inlined_call_operand.hbm [shape: f32[2,8,128], index: 17, kind: output, shape index: {1}]
  %18 = xla_tuple %s16, %s17
  %s19 = sld [smem:[#allocation0]]
  $region105: #{tpu_custom_call.1} parent=0
    _
  %s21 = ssub.s32 1, %s19
  %s22 = scalar_select 0, %s21, %s19
  $region1: #{tpu_custom_call.1} parent=0
    #allocation3 [shape = 'u8[1024]{0}', space=vmem, size = 0x400, scoped, tag = 'output window, operand 0']
    #allocation4 [shape = 's32[2]{0}', space=sflag, size = 0x8, scoped, tag = 'scoped memory for tpu_custom_call.1']
    #allocation5 [shape = 'u8[8192]{0}', space=vmem, size = 0x2000, scoped, tag = 'output window, operand 1']
    #allocation6 [shape = 's32[2]{0}', space=sflag, size = 0x8, scoped, tag = 'scoped memory for tpu_custom_call.1']
    %23 = vsyncpa [#allocation4], 0
    %s24 = scalar_lea.sflag [#allocation4], 1
    %25 = vsyncpa %s24, 0
    %26 = vsyncpa [#allocation6], 0
    %s27 = scalar_lea.sflag [#allocation6], 1
    %28 = vsyncpa %s27, 0
    loop: start=0, step=1, limit=4
    $region2: #{tpu_custom_call.1} parent=1 // loop_pre_header
      _
    $region3: #{tpu_custom_call.1} parent=1 // loop_header
      %s30 = sphi 0, %s34
      %p31 = scmp.ge.s32.totalorder %s30, 4
      %s40 = sphi 0, %s42
      %s43 = sphi 0, %s40
      %s44 = sphi 0, %s43
      %s60 = sphi 0, %s44
      %s66 = sphi 0, %s68
      %s69 = sphi 0, %s66
      %s70 = sphi 0, %s69
      %s86 = sphi 0, %s70
      %s90 = sphi 0, %s90
      %s92 = sphi 0, %s90
      %s93 = sphi 0, %s92
      %s107 = sphi 0, %s93
      %s111 = sphi 0, %s111
      %s113 = sphi 0, %s111
      %s114 = sphi 0, %s113
      %s128 = sphi 0, %s114
      %s132 = sphi 0, %s132
      %s134 = sphi 0, %s132
      %s135 = sphi 0, %s134
      %s149 = sphi 0, %s135
      %s153 = sphi 0, %s153
      %s155 = sphi 0, %s153
      %s156 = sphi 0, %s155
      %s170 = sphi 0, %s156
      %s174 = sphi 0, %s174
      %s176 = sphi 0, %s174
      %s177 = sphi 0, %s176
      %s191 = sphi 0, %s177
      %s195 = sphi 0, %s195
      %s197 = sphi 0, %s195
      %s198 = sphi 0, %s197
      %s212 = sphi 0, %s198
      %s216 = sphi 0, %s216
      %s218 = sphi 0, %s216
      %s219 = sphi 0, %s218
      %s233 = sphi 0, %s219
      %s237 = sphi 0, %s237
      %s239 = sphi 0, %s237
      %s240 = sphi 0, %s239
      %s254 = sphi 0, %s240
      %s258 = sphi 0, %s258
      %s260 = sphi 0, %s258
      %s261 = sphi 0, %s260
      %s275 = sphi 0, %s261
      %s279 = sphi 0, %s279
      %s281 = sphi 0, %s279
      %s282 = sphi 0, %s281
      %s296 = sphi 0, %s282
      %s300 = sphi 0, %s300
      %s302 = sphi 0, %s300
      %s303 = sphi 0, %s302
      %s317 = sphi 0, %s303
      %s321 = sphi 0, %s321
      %s323 = sphi 0, %s321
      %s324 = sphi 0, %s323
      %s338 = sphi 0, %s324
      %s342 = sphi 0, %s342
      %s344 = sphi 0, %s342
      %s345 = sphi 0, %s344
      %s359 = sphi 0, %s345
      %s363 = sphi 0, %s363
      %s365 = sphi 0, %s363
      %s366 = sphi 0, %s365
      %s380 = sphi 0, %s366
      %s386 = sphi 0, %s388
      %s389 = sphi 0, %s386
      %s390 = sphi 0, %s389
      %s406 = sphi 0, %s390
      %s412 = sphi 0, %s414
      %s415 = sphi 0, %s412
      %s416 = sphi 0, %s415
      %s432 = sphi 0, %s416
    $region4: #{tpu_custom_call.1} parent=1 // loop_header_branch
      %33 = sbr.rel (%p31) target = $region8
    $region5: #{tpu_custom_call.1} parent=1 // loop_body
      %s35 = ssub.s32 %s30, 1
      %s36 = ssub.s32 %s30, 2
      %s37 = sadd.s32 %s30, 1
      %s38 = ssub.s32 %s30, %s37
      %p39 = scmp.eq.s32.totalorder %s38, 0
      %s41 = sadd.s32 %s40, 1
      %s42 = scalar_select %p39, %s40, %s41
      %p45 = pneg %p39
      %p46 = scmp.eq.s32.totalorder %s30, 1
      %p47 = por %p45, %p46
      %p48 = scmp.ne.s32.totalorder %s40, %s43
      %p49 = scmp.eq.s32.totalorder %s30, 0
      %p50 = por %p48, %p49
      %p51 = scmp.ne.s32.totalorder %s40, %s43
      %p52 = scmp.eq.s32.totalorder %s35, 1
      %p53 = por %p51, %p52
      %p54 = scmp.ne.s32.totalorder %s43, %s44
      %p55 = scmp.eq.s32.totalorder %s35, 0
      %p56 = por %p54, %p55
      %p57 = scmp.ne.s32.totalorder %s43, %s44
      %p58 = scmp.eq.s32.totalorder %s36, 1
      %p59 = por %p57, %p58
      %p61 = scmp.ne.s32.totalorder %s44, %s60
      %p62 = scmp.eq.s32.totalorder %s36, 0
      %p63 = por %p61, %p62
      %s64 = ssub.s32 %s30, %s37
      %p65 = scmp.eq.s32.totalorder %s64, 0
      %s67 = sadd.s32 %s66, 1
      %s68 = scalar_select %p65, %s66, %s67
      %p71 = pneg %p65
      %p72 = scmp.eq.s32.totalorder %s30, 1
      %p73 = por %p71, %p72
      %p74 = scmp.ne.s32.totalorder %s66, %s69
      %p75 = scmp.eq.s32.totalorder %s30, 0
      %p76 = por %p74, %p75
      %p77 = scmp.ne.s32.totalorder %s66, %s69
      %p78 = scmp.eq.s32.totalorder %s35, 1
      %p79 = por %p77, %p78
      %p80 = scmp.ne.s32.totalorder %s69, %s70
      %p81 = scmp.eq.s32.totalorder %s35, 0
      %p82 = por %p80, %p81
      %p83 = scmp.ne.s32.totalorder %s69, %s70
      %p84 = scmp.eq.s32.totalorder %s36, 1
      %p85 = por %p83, %p84
      %p87 = scmp.ne.s32.totalorder %s70, %s86
      %p88 = scmp.eq.s32.totalorder %s36, 0
      %p89 = por %p87, %p88
      %s91 = sadd.s32 %s90, 1
      %p94 = scmp.eq.s32.totalorder %s30, 1
      %p95 = scmp.ne.s32.totalorder %s90, %s92
      %p96 = scmp.eq.s32.totalorder %s30, 0
      %p97 = por %p95, %p96
      %p98 = scmp.ne.s32.totalorder %s90, %s92
      %p99 = scmp.eq.s32.totalorder %s35, 1
      %p100 = por %p98, %p99
      %p101 = scmp.ne.s32.totalorder %s92, %s93
      %p102 = scmp.eq.s32.totalorder %s35, 0
      %p103 = por %p101, %p102
      %p104 = scmp.ne.s32.totalorder %s92, %s93
      %p105 = scmp.eq.s32.totalorder %s36, 1
      %p106 = por %p104, %p105
      %p108 = scmp.ne.s32.totalorder %s93, %s107
      %p109 = scmp.eq.s32.totalorder %s36, 0
      %p110 = por %p108, %p109
      %s112 = sadd.s32 %s111, 1
      %p115 = scmp.eq.s32.totalorder %s30, 1
      %p116 = scmp.ne.s32.totalorder %s111, %s113
      %p117 = scmp.eq.s32.totalorder %s30, 0
      %p118 = por %p116, %p117
      %p119 = scmp.ne.s32.totalorder %s111, %s113
      %p120 = scmp.eq.s32.totalorder %s35, 1
      %p121 = por %p119, %p120
      %p122 = scmp.ne.s32.totalorder %s113, %s114
      %p123 = scmp.eq.s32.totalorder %s35, 0
      %p124 = por %p122, %p123
      %p125 = scmp.ne.s32.totalorder %s113, %s114
      %p126 = scmp.eq.s32.totalorder %s36, 1
      %p127 = por %p125, %p126
      %p129 = scmp.ne.s32.totalorder %s114, %s128
      %p130 = scmp.eq.s32.totalorder %s36, 0
      %p131 = por %p129, %p130
      %s133 = sadd.s32 %s132, 1
      %p136 = scmp.eq.s32.totalorder %s30, 1
      %p137 = scmp.ne.s32.totalorder %s132, %s134
      %p138 = scmp.eq.s32.totalorder %s30, 0
      %p139 = por %p137, %p138
      %p140 = scmp.ne.s32.totalorder %s132, %s134
      %p141 = scmp.eq.s32.totalorder %s35, 1
      %p142 = por %p140, %p141
      %p143 = scmp.ne.s32.totalorder %s134, %s135
      %p144 = scmp.eq.s32.totalorder %s35, 0
      %p145 = por %p143, %p144
      %p146 = scmp.ne.s32.totalorder %s134, %s135
      %p147 = scmp.eq.s32.totalorder %s36, 1
      %p148 = por %p146, %p147
      %p150 = scmp.ne.s32.totalorder %s135, %s149
      %p151 = scmp.eq.s32.totalorder %s36, 0
      %p152 = por %p150, %p151
      %s154 = sadd.s32 %s153, 1
      %p157 = scmp.eq.s32.totalorder %s30, 1
      %p158 = scmp.ne.s32.totalorder %s153, %s155
      %p159 = scmp.eq.s32.totalorder %s30, 0
      %p160 = por %p158, %p159
      %p161 = scmp.ne.s32.totalorder %s153, %s155
      %p162 = scmp.eq.s32.totalorder %s35, 1
      %p163 = por %p161, %p162
      %p164 = scmp.ne.s32.totalorder %s155, %s156
      %p165 = scmp.eq.s32.totalorder %s35, 0
      %p166 = por %p164, %p165
      %p167 = scmp.ne.s32.totalorder %s155, %s156
      %p168 = scmp.eq.s32.totalorder %s36, 1
      %p169 = por %p167, %p168
      %p171 = scmp.ne.s32.totalorder %s156, %s170
      %p172 = scmp.eq.s32.totalorder %s36, 0
      %p173 = por %p171, %p172
      %s175 = sadd.s32 %s174, 1
      %p178 = scmp.eq.s32.totalorder %s30, 1
      %p179 = scmp.ne.s32.totalorder %s174, %s176
      %p180 = scmp.eq.s32.totalorder %s30, 0
      %p181 = por %p179, %p180
      %p182 = scmp.ne.s32.totalorder %s174, %s176
      %p183 = scmp.eq.s32.totalorder %s35, 1
      %p184 = por %p182, %p183
      %p185 = scmp.ne.s32.totalorder %s176, %s177
      %p186 = scmp.eq.s32.totalorder %s35, 0
      %p187 = por %p185, %p186
      %p188 = scmp.ne.s32.totalorder %s176, %s177
      %p189 = scmp.eq.s32.totalorder %s36, 1
      %p190 = por %p188, %p189
      %p192 = scmp.ne.s32.totalorder %s177, %s191
      %p193 = scmp.eq.s32.totalorder %s36, 0
      %p194 = por %p192, %p193
      %s196 = sadd.s32 %s195, 1
      %p199 = scmp.eq.s32.totalorder %s30, 1
      %p200 = scmp.ne.s32.totalorder %s195, %s197
      %p201 = scmp.eq.s32.totalorder %s30, 0
      %p202 = por %p200, %p201
      %p203 = scmp.ne.s32.totalorder %s195, %s197
      %p204 = scmp.eq.s32.totalorder %s35, 1
      %p205 = por %p203, %p204
      %p206 = scmp.ne.s32.totalorder %s197, %s198
      %p207 = scmp.eq.s32.totalorder %s35, 0
      %p208 = por %p206, %p207
      %p209 = scmp.ne.s32.totalorder %s197, %s198
      %p210 = scmp.eq.s32.totalorder %s36, 1
      %p211 = por %p209, %p210
      %p213 = scmp.ne.s32.totalorder %s198, %s212
      %p214 = scmp.eq.s32.totalorder %s36, 0
      %p215 = por %p213, %p214
      %s217 = sadd.s32 %s216, 1
      %p220 = scmp.eq.s32.totalorder %s30, 1
      %p221 = scmp.ne.s32.totalorder %s216, %s218
      %p222 = scmp.eq.s32.totalorder %s30, 0
      %p223 = por %p221, %p222
      %p224 = scmp.ne.s32.totalorder %s216, %s218
      %p225 = scmp.eq.s32.totalorder %s35, 1
      %p226 = por %p224, %p225
      %p227 = scmp.ne.s32.totalorder %s218, %s219
      %p228 = scmp.eq.s32.totalorder %s35, 0
      %p229 = por %p227, %p228
      %p230 = scmp.ne.s32.totalorder %s218, %s219
      %p231 = scmp.eq.s32.totalorder %s36, 1
      %p232 = por %p230, %p231
      %p234 = scmp.ne.s32.totalorder %s219, %s233
      %p235 = scmp.eq.s32.totalorder %s36, 0
      %p236 = por %p234, %p235
      %s238 = sadd.s32 %s237, 1
      %p241 = scmp.eq.s32.totalorder %s30, 1
      %p242 = scmp.ne.s32.totalorder %s237, %s239
      %p243 = scmp.eq.s32.totalorder %s30, 0
      %p244 = por %p242, %p243
      %p245 = scmp.ne.s32.totalorder %s237, %s239
      %p246 = scmp.eq.s32.totalorder %s35, 1
      %p247 = por %p245, %p246
      %p248 = scmp.ne.s32.totalorder %s239, %s240
      %p249 = scmp.eq.s32.totalorder %s35, 0
      %p250 = por %p248, %p249
      %p251 = scmp.ne.s32.totalorder %s239, %s240
      %p252 = scmp.eq.s32.totalorder %s36, 1
      %p253 = por %p251, %p252
      %p255 = scmp.ne.s32.totalorder %s240, %s254
      %p256 = scmp.eq.s32.totalorder %s36, 0
      %p257 = por %p255, %p256
      %s259 = sadd.s32 %s258, 1
      %p262 = scmp.eq.s32.totalorder %s30, 1
      %p263 = scmp.ne.s32.totalorder %s258, %s260
      %p264 = scmp.eq.s32.totalorder %s30, 0
      %p265 = por %p263, %p264
      %p266 = scmp.ne.s32.totalorder %s258, %s260
      %p267 = scmp.eq.s32.totalorder %s35, 1
      %p268 = por %p266, %p267
      %p269 = scmp.ne.s32.totalorder %s260, %s261
      %p270 = scmp.eq.s32.totalorder %s35, 0
      %p271 = por %p269, %p270
      %p272 = scmp.ne.s32.totalorder %s260, %s261
      %p273 = scmp.eq.s32.totalorder %s36, 1
      %p274 = por %p272, %p273
      %p276 = scmp.ne.s32.totalorder %s261, %s275
      %p277 = scmp.eq.s32.totalorder %s36, 0
      %p278 = por %p276, %p277
      %s280 = sadd.s32 %s279, 1
      %p283 = scmp.eq.s32.totalorder %s30, 1
      %p284 = scmp.ne.s32.totalorder %s279, %s281
      %p285 = scmp.eq.s32.totalorder %s30, 0
      %p286 = por %p284, %p285
      %p287 = scmp.ne.s32.totalorder %s279, %s281
      %p288 = scmp.eq.s32.totalorder %s35, 1
      %p289 = por %p287, %p288
      %p290 = scmp.ne.s32.totalorder %s281, %s282
      %p291 = scmp.eq.s32.totalorder %s35, 0
      %p292 = por %p290, %p291
      %p293 = scmp.ne.s32.totalorder %s281, %s282
      %p294 = scmp.eq.s32.totalorder %s36, 1
      %p295 = por %p293, %p294
      %p297 = scmp.ne.s32.totalorder %s282, %s296
      %p298 = scmp.eq.s32.totalorder %s36, 0
      %p299 = por %p297, %p298
      %s301 = sadd.s32 %s300, 1
      %p304 = scmp.eq.s32.totalorder %s30, 1
      %p305 = scmp.ne.s32.totalorder %s300, %s302
      %p306 = scmp.eq.s32.totalorder %s30, 0
      %p307 = por %p305, %p306
      %p308 = scmp.ne.s32.totalorder %s300, %s302
      %p309 = scmp.eq.s32.totalorder %s35, 1
      %p310 = por %p308, %p309
      %p311 = scmp.ne.s32.totalorder %s302, %s303
      %p312 = scmp.eq.s32.totalorder %s35, 0
      %p313 = por %p311, %p312
      %p314 = scmp.ne.s32.totalorder %s302, %s303
      %p315 = scmp.eq.s32.totalorder %s36, 1
      %p316 = por %p314, %p315
      %p318 = scmp.ne.s32.totalorder %s303, %s317
      %p319 = scmp.eq.s32.totalorder %s36, 0
      %p320 = por %p318, %p319
      %s322 = sadd.s32 %s321, 1
      %p325 = scmp.eq.s32.totalorder %s30, 1
      %p326 = scmp.ne.s32.totalorder %s321, %s323
      %p327 = scmp.eq.s32.totalorder %s30, 0
      %p328 = por %p326, %p327
      %p329 = scmp.ne.s32.totalorder %s321, %s323
      %p330 = scmp.eq.s32.totalorder %s35, 1
      %p331 = por %p329, %p330
      %p332 = scmp.ne.s32.totalorder %s323, %s324
      %p333 = scmp.eq.s32.totalorder %s35, 0
      %p334 = por %p332, %p333
      %p335 = scmp.ne.s32.totalorder %s323, %s324
      %p336 = scmp.eq.s32.totalorder %s36, 1
      %p337 = por %p335, %p336
      %p339 = scmp.ne.s32.totalorder %s324, %s338
      %p340 = scmp.eq.s32.totalorder %s36, 0
      %p341 = por %p339, %p340
      %s343 = sadd.s32 %s342, 1
      %p346 = scmp.eq.s32.totalorder %s30, 1
      %p347 = scmp.ne.s32.totalorder %s342, %s344
      %p348 = scmp.eq.s32.totalorder %s30, 0
      %p349 = por %p347, %p348
      %p350 = scmp.ne.s32.totalorder %s342, %s344
      %p351 = scmp.eq.s32.totalorder %s35, 1
      %p352 = por %p350, %p351
      %p353 = scmp.ne.s32.totalorder %s344, %s345
      %p354 = scmp.eq.s32.totalorder %s35, 0
      %p355 = por %p353, %p354
      %p356 = scmp.ne.s32.totalorder %s344, %s345
      %p357 = scmp.eq.s32.totalorder %s36, 1
      %p358 = por %p356, %p357
      %p360 = scmp.ne.s32.totalorder %s345, %s359
      %p361 = scmp.eq.s32.totalorder %s36, 0
      %p362 = por %p360, %p361
      %s364 = sadd.s32 %s363, 1
      %p367 = scmp.eq.s32.totalorder %s30, 1
      %p368 = scmp.ne.s32.totalorder %s363, %s365
      %p369 = scmp.eq.s32.totalorder %s30, 0
      %p370 = por %p368, %p369
      %p371 = scmp.ne.s32.totalorder %s363, %s365
      %p372 = scmp.eq.s32.totalorder %s35, 1
      %p373 = por %p371, %p372
      %p374 = scmp.ne.s32.totalorder %s365, %s366
      %p375 = scmp.eq.s32.totalorder %s35, 0
      %p376 = por %p374, %p375
      %p377 = scmp.ne.s32.totalorder %s365, %s366
      %p378 = scmp.eq.s32.totalorder %s36, 1
      %p379 = por %p377, %p378
      %p381 = scmp.ne.s32.totalorder %s366, %s380
      %p382 = scmp.eq.s32.totalorder %s36, 0
      %p383 = por %p381, %p382
      %s384 = ssub.s32 %s30, %s37
      %p385 = scmp.eq.s32.totalorder %s384, 0
      %s387 = sadd.s32 %s386, 1
      %s388 = scalar_select %p385, %s386, %s387
      %p391 = pneg %p385
      %p392 = scmp.eq.s32.totalorder %s30, 1
      %p393 = por %p391, %p392
      %p394 = scmp.ne.s32.totalorder %s386, %s389
      %p395 = scmp.eq.s32.totalorder %s30, 0
      %p396 = por %p394, %p395
      %p397 = scmp.ne.s32.totalorder %s386, %s389
      %p398 = scmp.eq.s32.totalorder %s35, 1
      %p399 = por %p397, %p398
      %p400 = scmp.ne.s32.totalorder %s389, %s390
      %p401 = scmp.eq.s32.totalorder %s35, 0
      %p402 = por %p400, %p401
      %p403 = scmp.ne.s32.totalorder %s389, %s390
      %p404 = scmp.eq.s32.totalorder %s36, 1
      %p405 = por %p403, %p404
      %p407 = scmp.ne.s32.totalorder %s390, %s406
      %p408 = scmp.eq.s32.totalorder %s36, 0
      %p409 = por %p407, %p408
      %s410 = ssub.s32 %s30, %s37
      %p411 = scmp.eq.s32.totalorder %s410, 0
      %s413 = sadd.s32 %s412, 1
      %s414 = scalar_select %p411, %s412, %s413
      %p417 = pneg %p411
      %p418 = scmp.eq.s32.totalorder %s30, 1
      %p419 = por %p417, %p418
      %p420 = scmp.ne.s32.totalorder %s412, %s415
      %p421 = scmp.eq.s32.totalorder %s30, 0
      %p422 = por %p420, %p421
      %p423 = scmp.ne.s32.totalorder %s412, %s415
      %p424 = scmp.eq.s32.totalorder %s35, 1
      %p425 = por %p423, %p424
      %p426 = scmp.ne.s32.totalorder %s415, %s416
      %p427 = scmp.eq.s32.totalorder %s35, 0
      %p428 = por %p426, %p427
      %p429 = scmp.ne.s32.totalorder %s415, %s416
      %p430 = scmp.eq.s32.totalorder %s36, 1
      %p431 = por %p429, %p430
      %p433 = scmp.ne.s32.totalorder %s416, %s432
      %p434 = scmp.eq.s32.totalorder %s36, 0
      %p435 = por %p433, %p434
      %p436 = scmp.le.s32.totalorder 1, %s30
      %p437 = scmp.lt.s32.totalorder %s30, 3
      %p438 = pnand %p436, %p437
      %p439 = pneg %p438
      // Predicated region
      $region9: #{tpu_custom_call.1} parent=5 // pred_check
        _
      $region10: #{tpu_custom_call.1} parent=5 // pred_check_branch
        %441 = sbr.rel (%p438) target = $region12
      $region11: #{tpu_custom_call.1} parent=5 // pred_region
        %s442 = ssub.s32 %s30, 1
        // Predicated region
        $region13: #{tpu_custom_call.1} parent=11 // pred_check
          %p443 = pneg %p103
        $region14: #{tpu_custom_call.1} parent=11 // pred_check_branch
          %445 = sbr.rel (%p443) target = $region16
        $region15: #{tpu_custom_call.1} parent=11 // pred_region
          _
        $region16: #{tpu_custom_call.1} parent=11 // pred_fallthru
          _
        // Predicated region
        $region17: #{tpu_custom_call.1} parent=11 // pred_check
          %p446 = pneg %p124
        $region18: #{tpu_custom_call.1} parent=11 // pred_check_branch
          %448 = sbr.rel (%p446) target = $region20
        $region19: #{tpu_custom_call.1} parent=11 // pred_region
          _
        $region20: #{tpu_custom_call.1} parent=11 // pred_fallthru
          _
        // Predicated region
        $region21: #{tpu_custom_call.1} parent=11 // pred_check
          %p449 = pneg %p145
        $region22: #{tpu_custom_call.1} parent=11 // pred_check_branch
          %451 = sbr.rel (%p449) target = $region24
        $region23: #{tpu_custom_call.1} parent=11 // pred_region
          _
        $region24: #{tpu_custom_call.1} parent=11 // pred_fallthru
          _
        // Predicated region
        $region25: #{tpu_custom_call.1} parent=11 // pred_check
          %p452 = pneg %p166
        $region26: #{tpu_custom_call.1} parent=11 // pred_check_branch
          %454 = sbr.rel (%p452) target = $region28
        $region27: #{tpu_custom_call.1} parent=11 // pred_region
          _
        $region28: #{tpu_custom_call.1} parent=11 // pred_fallthru
          _
        // Predicated region
        $region29: #{tpu_custom_call.1} parent=11 // pred_check
          %p455 = pneg %p187
        $region30: #{tpu_custom_call.1} parent=11 // pred_check_branch
          %457 = sbr.rel (%p455) target = $region32
        $region31: #{tpu_custom_call.1} parent=11 // pred_region
          _
        $region32: #{tpu_custom_call.1} parent=11 // pred_fallthru
          _
        // Predicated region
        $region33: #{tpu_custom_call.1} parent=11 // pred_check
          %p458 = pneg %p208
        $region34: #{tpu_custom_call.1} parent=11 // pred_check_branch
          %460 = sbr.rel (%p458) target = $region36
        $region35: #{tpu_custom_call.1} parent=11 // pred_region
          _
        $region36: #{tpu_custom_call.1} parent=11 // pred_fallthru
          _
        // Predicated region
        $region37: #{tpu_custom_call.1} parent=11 // pred_check
          %p461 = pneg %p229
        $region38: #{tpu_custom_call.1} parent=11 // pred_check_branch
          %463 = sbr.rel (%p461) target = $region40
        $region39: #{tpu_custom_call.1} parent=11 // pred_region
          _
        $region40: #{tpu_custom_call.1} parent=11 // pred_fallthru
          _
        // Predicated region
        $region41: #{tpu_custom_call.1} parent=11 // pred_check
          %p464 = pneg %p250
        $region42: #{tpu_custom_call.1} parent=11 // pred_check_branch
          %466 = sbr.rel (%p464) target = $region44
        $region43: #{tpu_custom_call.1} parent=11 // pred_region
          _
        $region44: #{tpu_custom_call.1} parent=11 // pred_fallthru
          _
        // Predicated region
        $region45: #{tpu_custom_call.1} parent=11 // pred_check
          %p467 = pneg %p271
        $region46: #{tpu_custom_call.1} parent=11 // pred_check_branch
          %469 = sbr.rel (%p467) target = $region48
        $region47: #{tpu_custom_call.1} parent=11 // pred_region
          _
        $region48: #{tpu_custom_call.1} parent=11 // pred_fallthru
          _
        // Predicated region
        $region49: #{tpu_custom_call.1} parent=11 // pred_check
          %p470 = pneg %p292
        $region50: #{tpu_custom_call.1} parent=11 // pred_check_branch
          %472 = sbr.rel (%p470) target = $region52
        $region51: #{tpu_custom_call.1} parent=11 // pred_region
          _
        $region52: #{tpu_custom_call.1} parent=11 // pred_fallthru
          _
        // Predicated region
        $region53: #{tpu_custom_call.1} parent=11 // pred_check
          %p473 = pneg %p313
        $region54: #{tpu_custom_call.1} parent=11 // pred_check_branch
          %475 = sbr.rel (%p473) target = $region56
        $region55: #{tpu_custom_call.1} parent=11 // pred_region
          _
        $region56: #{tpu_custom_call.1} parent=11 // pred_fallthru
          _
        // Predicated region
        $region57: #{tpu_custom_call.1} parent=11 // pred_check
          %p476 = pneg %p334
        $region58: #{tpu_custom_call.1} parent=11 // pred_check_branch
          %478 = sbr.rel (%p476) target = $region60
        $region59: #{tpu_custom_call.1} parent=11 // pred_region
          _
        $region60: #{tpu_custom_call.1} parent=11 // pred_fallthru
          _
        // Predicated region
        $region61: #{tpu_custom_call.1} parent=11 // pred_check
          %p479 = pneg %p355
        $region62: #{tpu_custom_call.1} parent=11 // pred_check_branch
          %481 = sbr.rel (%p479) target = $region64
        $region63: #{tpu_custom_call.1} parent=11 // pred_region
          _
        $region64: #{tpu_custom_call.1} parent=11 // pred_fallthru
          _
        // Predicated region
        $region65: #{tpu_custom_call.1} parent=11 // pred_check
          %p482 = pneg %p376
        $region66: #{tpu_custom_call.1} parent=11 // pred_check_branch
          %484 = sbr.rel (%p482) target = $region68
        $region67: #{tpu_custom_call.1} parent=11 // pred_region
          _
        $region68: #{tpu_custom_call.1} parent=11 // pred_fallthru
          _
      $region12: #{tpu_custom_call.1} parent=5 // pred_fallthru
        _
      %p485 = scmp.lt.s32.totalorder %s30, 2
      // Predicated region
      $region69: #{tpu_custom_call.1} parent=5 // pred_check
        %p486 = pneg %p485
      $region70: #{tpu_custom_call.1} parent=5 // pred_check_branch
        %488 = sbr.rel (%p486) target = $region72
      $region71: #{tpu_custom_call.1} parent=5 // pred_region
        // Predicated region
        $region73: #{tpu_custom_call.1} parent=71 // pred_check
          %p489 = pneg %p50
        $region74: #{tpu_custom_call.1} parent=71 // pred_check_branch
          %491 = sbr.rel (%p489) target = $region76
        $region75: #{tpu_custom_call.1} parent=71 // pred_region
          %p492 = scmp.lt.s32.totalorder %s30, 1
          %s493 = scalar_select %p492, %s30, 1
          %s494 = smul.addr %s493, 8
          %s495 = scalar_lea.vmem %s0, %s494
        $region76: #{tpu_custom_call.1} parent=71 // pred_fallthru
          _
        // Predicated region
        $region77: #{tpu_custom_call.1} parent=71 // pred_check
          %p496 = pneg %p76
        $region78: #{tpu_custom_call.1} parent=71 // pred_check_branch
          %498 = sbr.rel (%p496) target = $region80
        $region79: #{tpu_custom_call.1} parent=71 // pred_region
          %p499 = scmp.lt.s32.totalorder %s30, 1
          %s500 = scalar_select %p499, %s30, 1
          %s501 = smul.addr %s500, 8
          %s502 = scalar_lea.vmem %s1, %s501
        $region80: #{tpu_custom_call.1} parent=71 // pred_fallthru
          _
      $region72: #{tpu_custom_call.1} parent=5 // pred_fallthru
        _
      %p503 = scmp.le.s32.totalorder 1, %s30
      %p504 = scmp.lt.s32.totalorder %s30, 3
      %p505 = pnand %p503, %p504
      %p506 = pneg %p505
      // Predicated region
      $region81: #{tpu_custom_call.1} parent=5 // pred_check
        _
      $region82: #{tpu_custom_call.1} parent=5 // pred_check_branch
        %508 = sbr.rel (%p505) target = $region84
      $region83: #{tpu_custom_call.1} parent=5 // pred_region
        %s509 = ssub.s32 %s30, 1
        %p510 = scmp.lt.s32.totalorder %s35, 1
        %s511 = scalar_select %p510, %s35, 1
        %s512 = smul.addr %s511, 8
        %s513 = scalar_lea.vmem %s0, %s512
        %p514 = pneg %p56
        %p515 = pneg %p53
        %p516 = scmp.lt.s32.totalorder %s35, 1
        %s517 = scalar_select %p516, %s35, 1
        %s518 = smul.addr %s517, 8
        %s519 = scalar_lea.vmem %s1, %s518
        %p520 = pneg %p82
        %p521 = pneg %p79
        %p522 = pneg %p103
        %p523 = pneg %p100
        %p524 = pneg %p124
        %p525 = pneg %p121
        %p526 = pneg %p145
        %p527 = pneg %p142
        %p528 = pneg %p166
        %p529 = pneg %p163
        %p530 = pneg %p187
        %p531 = pneg %p184
        %p532 = pneg %p208
        %p533 = pneg %p205
        %p534 = pneg %p229
        %p535 = pneg %p226
        %p536 = pneg %p250
        %p537 = pneg %p247
        %p538 = pneg %p271
        %p539 = pneg %p268
        %p540 = pneg %p292
        %p541 = pneg %p289
        %p542 = pneg %p313
        %p543 = pneg %p310
        %p544 = pneg %p334
        %p545 = pneg %p331
        %p546 = pneg %p355
        %p547 = pneg %p352
        %p548 = pneg %p376
        %p549 = pneg %p373
        %p550 = pneg %p402
        %p551 = pneg %p399
        %s552 = sand.u32 %s389, 1
        %s553 = scalar_lea.sflag [#allocation4], %s552
        %s554 = sand.u32 %s389, 1
        %s555 = scalar_lea.vmem [#allocation3], %s554
        %p556 = pneg %p428
        %p557 = pneg %p425
        %s558 = sand.u32 %s415, 1
        %s559 = scalar_lea.sflag [#allocation6], %s558
        %s560 = sand.u32 %s415, 1
        %s561 = smul.addr %s560, 8
        %s562 = scalar_lea.vmem [#allocation5], %s561
        %p563 = scmp.lt.s32.totalorder %s35, 1
        %s564 = scalar_select %p563, %s35, 1
        %s565 = smul.addr %s564, 8
        %s566 = scalar_lea.vmem %s0, %s565
        %p567 = scmp.lt.s32.totalorder %s35, 1
        %s568 = scalar_select %p567, %s35, 1
        %s569 = smul.addr %s568, 8
        %s570 = scalar_lea.vmem %s1, %s569
        %v572 = vld [vmem:[%s566] sm:$0xff]
        %v573 = vld [vmem:[%s570] sm:$0xff]
        %v574 = vld [vmem:[%s2] sm:$0x1]
        %v575 = vld [vmem:[%s3] sm:$0x1]
        %vm576 = vcmask 261120
        %v577 = vsel %vm576, %v572, 0.0
        %578 = vadd.xlane.f32.xlu0 %v577
        %v579 = vpop.xlane.xlu0 %578
        %v580 = vrcp.pop 32.0
        %v581 = vmul.f32 %v579, %v580
        %v582 = vsub.f32 %v572, %v581
        %v583 = vmul.f32 %v582, %v582
        %v584 = vsel %vm576, %v583, 0.0
        %585 = vadd.xlane.f32.xlu0 %v584
        %v586 = vpop.xlane.xlu0 %585
        %v587 = vmul.f32 %v586, %v580
        %v588 = vadd.f32 %v587, 1e-05
        %v589 = vrsqrt.pop %v588
        %v590 = vmul.f32 %v582, %v589
        %v592 = vlaneseq
        %v593 = vshrl.u32 %v592, 7
        %v594 = vsub.s32 0, %v593
        %v595 = vrot.slane %v574, %v594
        %v597 = vmul.f32 %v590, %v595
        %v599 = vlaneseq
        %v600 = vshrl.u32 %v599, 7
        %v601 = vsub.s32 0, %v600
        %v602 = vrot.slane %v575, %v601
        %v604 = vadd.f32 %v597, %v602
        %v605 = vpack.c.bf16 %v604, %v604
        %v606 = vld [vmem:[%s4] sm:$0xf]
        %v607 = vld [vmem:[%s4 + $0x4] sm:$0xf]
        %v608 = vld [vmem:[%s4 + $0x8] sm:$0xf]
        %v609 = vld [vmem:[%s4 + $0xc] sm:$0xf]
        %v610 = vld [vmem:[%s5] sm:$0x1]
        %v612 = vlaneseq
        %v613 = vshrl.u32 %v612, 7
        %v614 = vsub.s32 0, %v613
        %v615 = vrot.slane %v610, %v614
        %v621 = vunpack.c.l.b16 %v606
        %v622 = vunpack.c.l.b16 %v607
        %v623 = vunpack.c.l.b16 %v608
        %v624 = vunpack.c.l.b16 %v609
        %v625 = vpack.c.b16 %v622, %v621
        %v626 = vpack.c.b16 %v624, %v623
        %v630 = vsel %vm576, %v605, 0
        %632 = vmatprep.subr.bf16.mxu0 0
        %633 = vmatpush1.bf16.msra.mxu0 %v625
        %634 = vmatprep.subr.bf16.mxu0 0
        %635 = vmatpush1.bf16.msra.mxu0 %v626
        %636 = vmatprep.subr.bf16.mxu0 0
        %637 = vmatpush1.bf16.msra.mxu0 0
        %638 = vmatprep.subr.bf16.mxu0 0
        %639 = vmatpush1.bf16.msra.mxu0 0
        %640 = vmatprep.subr.bf16.mxu0 0
        %641 = vmatpush1.bf16.msra.mxu0 0
        %642 = vmatprep.subr.bf16.mxu0 0
        %643 = vmatpush1.bf16.msra.mxu0 0
        %644 = vmatprep.subr.bf16.mxu0 0
        %645 = vmatpush1.bf16.msra.mxu0 0
        %646 = vmatprep.subr.bf16.mxu0 0
        %647 = vmatpush1.bf16.msra.mxu0 0
        %648 = vmatprep.subr.bf16.mxu0 0
        %649 = vmatpush1.bf16.msra.mxu0 0
        %650 = vmatprep.subr.bf16.mxu0 0
        %651 = vmatpush1.bf16.msra.mxu0 0
        %652 = vmatprep.subr.bf16.mxu0 0
        %653 = vmatpush1.bf16.msra.mxu0 0
        %654 = vmatprep.subr.bf16.mxu0 0
        %655 = vmatpush1.bf16.msra.mxu0 0
        %656 = vmatprep.subr.bf16.mxu0 0
        %657 = vmatpush1.bf16.msra.mxu0 0
        %658 = vmatprep.subr.bf16.mxu0 0
        %659 = vmatpush1.bf16.msra.mxu0 0
        %660 = vmatprep.subr.bf16.mxu0 0
        %661 = vmatpush1.bf16.msra.mxu0 0
        %662 = vmatprep.subr.bf16.mxu0 0
        %663 = vmatpush1.bf16.msra.mxu0 0
        %664 = vmatprep.mubr.bf16.mxu0 0
        %665 = vmatmul.mubr.bf16.gmra.mrb[0].mxu0 %v630
        %v666 = vpop.f32.mrb[0].mxu0
        %v667 = vadd.f32 %v615, %v666
        %v668 = vpop.f32.mrb[0].mxu0
        %v669 = vpop.f32.mrb[0].mxu0
        %v670 = vpop.f32.mrb[0].mxu0
        %671 = vdwg.mxu0
        %673 = vrot.lane.b32.xlu0 %v667, 96
        %v674 = vpop.permute.xlu0 %673
        %vm675 = vcmask 130048
        %v676 = vsel %vm675, %v667, 0
        %v678 = vsel %vm675, %v674, 0
        %680 = vmatprep.subr.mxu0 0.0
        %681 = vmatpush1.xpose.msra.mxu0 %v678
        %682 = vmatprep.subr.mxu0 0.0
        %683 = vmatpush1.xpose.msra.mxu0 0.0
        %684 = vmatprep.subr.mxu0 0.0
        %685 = vmatpush1.xpose.msra.mxu0 0.0
        %686 = vmatprep.subr.mxu0 0.0
        %687 = vmatpush1.xpose.msra.mxu0 0.0
        %688 = vmatprep.subr.mxu0 0.0
        %689 = vmatpush1.xpose.msra.mxu0 0.0
        %690 = vmatprep.subr.mxu0 0.0
        %691 = vmatpush1.xpose.msra.mxu0 0.0
        %692 = vmatprep.subr.mxu0 0.0
        %693 = vmatpush1.xpose.msra.mxu0 0.0
        %694 = vmatprep.subr.mxu0 0.0
        %695 = vmatpush1.xpose.msra.mxu0 0.0
        %696 = vmatprep.subr.mxu0 0.0
        %697 = vmatpush1.xpose.msra.mxu0 0.0
        %698 = vmatprep.subr.mxu0 0.0
        %699 = vmatpush1.xpose.msra.mxu0 0.0
        %700 = vmatprep.subr.mxu0 0.0
        %701 = vmatpush1.xpose.msra.mxu0 0.0
        %702 = vmatprep.subr.mxu0 0.0
        %703 = vmatpush1.xpose.msra.mxu0 0.0
        %704 = vmatprep.subr.mxu0 0.0
        %705 = vmatpush1.xpose.msra.mxu0 0.0
        %706 = vmatprep.subr.mxu0 0.0
        %707 = vmatpush1.xpose.msra.mxu0 0.0
        %708 = vmatprep.subr.mxu0 0.0
        %709 = vmatpush1.xpose.msra.mxu0 0.0
        %710 = vmatprep.subr.mxu0 0.0
        %711 = vmatpush1.xpose.msra.mxu0 0.0
        %712 = vmatprep.subr.mxu0 0.0
        %713 = vmatpush1.xpose.msra.mxu0 0.0
        %714 = vmatprep.subr.mxu0 0.0
        %715 = vmatpush1.xpose.msra.mxu0 0.0
        %716 = vmatprep.subr.mxu0 0.0
        %717 = vmatpush1.xpose.msra.mxu0 0.0
        %718 = vmatprep.subr.mxu0 0.0
        %719 = vmatpush1.xpose.msra.mxu0 0.0
        %720 = vmatprep.subr.mxu0 0.0
        %721 = vmatpush1.xpose.msra.mxu0 0.0
        %722 = vmatprep.subr.mxu0 0.0
        %723 = vmatpush1.xpose.msra.mxu0 0.0
        %724 = vmatprep.subr.mxu0 0.0
        %725 = vmatpush1.xpose.msra.mxu0 0.0
        %726 = vmatprep.subr.mxu0 0.0
        %727 = vmatpush1.xpose.msra.mxu0 0.0
        %728 = vmatprep.subr.mxu0 0.0
        %729 = vmatpush1.xpose.msra.mxu0 0.0
        %730 = vmatprep.subr.mxu0 0.0
        %731 = vmatpush1.xpose.msra.mxu0 0.0
        %732 = vmatprep.subr.mxu0 0.0
        %733 = vmatpush1.xpose.msra.mxu0 0.0
        %734 = vmatprep.subr.mxu0 0.0
        %735 = vmatpush1.xpose.msra.mxu0 0.0
        %736 = vmatprep.subr.mxu0 0.0
        %737 = vmatpush1.xpose.msra.mxu0 0.0
        %738 = vmatprep.subr.mxu0 0.0
        %739 = vmatpush1.xpose.msra.mxu0 0.0
        %740 = vmatprep.subr.mxu0 0.0
        %741 = vmatpush1.xpose.msra.mxu0 0.0
        %742 = vmatprep.subr.mxu0 0.0
        %743 = vmatpush1.xpose.msra.mxu0 0.0
        %744 = vmatprep.mubr.f32.mxu0 0.0
        %745 = vmatmul.mubr.f32.gmra.mrb[0].mxu0 %v676
        %v746 = vpop.f32.mrb[0].mxu0
        %v747 = vadd.f32 0.0, %v746
        %v748 = vpop.f32.mrb[0].mxu0
        %749 = vdwg.mxu0
        %v750 = vmul.f32 %v747, 0.25
        %v751 = vadd.f32 %v750, %v573
        %vm752 = vcmask 64512
        %v753 = vsel %vm752, %v751, -inf
        %754 = vmax.xlane.f32.xlu0 %v753
        %v755 = vpop.xlane.xlu0 %754
        %v756 = vsub.f32 %v751, %v755
        %v757 = vmul.f32 %v756, 1.442695
        %v758 = vpow.pop %v757
        %v759 = vsel %vm752, %v758, 0.0
        %760 = vadd.xlane.f32.xlu0 %v759
        %v761 = vpop.xlane.xlu0 %760
        %v762 = vrcp.pop %v761
        %v763 = vmul.f32 %v758, %v762
        %764 = vrot.lane.b32.xlu0 %v667, 64
        %v765 = vpop.permute.xlu0 %764
        %v768 = vsel %vm752, %v763, 0
        %770 = vmatprep.subr.mxu0 0.0
        %771 = vmatpush1.msra.mxu0 %v765
        %772 = vmatprep.subr.mxu0 0.0
        %773 = vmatpush1.msra.mxu0 0.0
        %774 = vmatprep.subr.mxu0 0.0
        %775 = vmatpush1.msra.mxu0 0.0
        %776 = vmatprep.subr.mxu0 0.0
        %777 = vmatpush1.msra.mxu0 0.0
        %778 = vmatprep.subr.mxu0 0.0
        %779 = vmatpush1.msra.mxu0 0.0
        %780 = vmatprep.subr.mxu0 0.0
        %781 = vmatpush1.msra.mxu0 0.0
        %782 = vmatprep.subr.mxu0 0.0
        %783 = vmatpush1.msra.mxu0 0.0
        %784 = vmatprep.subr.mxu0 0.0
        %785 = vmatpush1.msra.mxu0 0.0
        %786 = vmatprep.subr.mxu0 0.0
        %787 = vmatpush1.msra.mxu0 0.0
        %788 = vmatprep.subr.mxu0 0.0
        %789 = vmatpush1.msra.mxu0 0.0
        %790 = vmatprep.subr.mxu0 0.0
        %791 = vmatpush1.msra.mxu0 0.0
        %792 = vmatprep.subr.mxu0 0.0
        %793 = vmatpush1.msra.mxu0 0.0
        %794 = vmatprep.subr.mxu0 0.0
        %795 = vmatpush1.msra.mxu0 0.0
        %796 = vmatprep.subr.mxu0 0.0
        %797 = vmatpush1.msra.mxu0 0.0
        %798 = vmatprep.subr.mxu0 0.0
        %799 = vmatpush1.msra.mxu0 0.0
        %800 = vmatprep.subr.mxu0 0.0
        %801 = vmatpush1.msra.mxu0 0.0
        %802 = vmatprep.subr.mxu0 0.0
        %803 = vmatpush1.msra.mxu0 0.0
        %804 = vmatprep.subr.mxu0 0.0
        %805 = vmatpush1.msra.mxu0 0.0
        %806 = vmatprep.subr.mxu0 0.0
        %807 = vmatpush1.msra.mxu0 0.0
        %808 = vmatprep.subr.mxu0 0.0
        %809 = vmatpush1.msra.mxu0 0.0
        %810 = vmatprep.subr.mxu0 0.0
        %811 = vmatpush1.msra.mxu0 0.0
        %812 = vmatprep.subr.mxu0 0.0
        %813 = vmatpush1.msra.mxu0 0.0
        %814 = vmatprep.subr.mxu0 0.0
        %815 = vmatpush1.msra.mxu0 0.0
        %816 = vmatprep.subr.mxu0 0.0
        %817 = vmatpush1.msra.mxu0 0.0
        %818 = vmatprep.subr.mxu0 0.0
        %819 = vmatpush1.msra.mxu0 0.0
        %820 = vmatprep.subr.mxu0 0.0
        %821 = vmatpush1.msra.mxu0 0.0
        %822 = vmatprep.subr.mxu0 0.0
        %823 = vmatpush1.msra.mxu0 0.0
        %824 = vmatprep.subr.mxu0 0.0
        %825 = vmatpush1.msra.mxu0 0.0
        %826 = vmatprep.subr.mxu0 0.0
        %827 = vmatpush1.msra.mxu0 0.0
        %828 = vmatprep.subr.mxu0 0.0
        %829 = vmatpush1.msra.mxu0 0.0
        %830 = vmatprep.subr.mxu0 0.0
        %831 = vmatpush1.msra.mxu0 0.0
        %832 = vmatprep.subr.mxu0 0.0
        %833 = vmatpush1.msra.mxu0 0.0
        %834 = vmatprep.mubr.f32.mxu0 0.0
        %835 = vmatmul.mubr.f32.gmra.mrb[0].mxu0 %v768
        %v836 = vpop.f32.mrb[0].mxu0
        %v837 = vadd.f32 0.0, %v836
        %v838 = vpop.f32.mrb[0].mxu0
        %839 = vdwg.mxu0
        %840 = vst.msk [vmem:[#allocation2] sm:$0xff] %vm675, %v837
        %841 = vrot.lane.b32.xlu0 %v667, 112
        %v842 = vpop.permute.xlu0 %841
        %843 = vrot.lane.b32.xlu0 %v667, 80
        %v844 = vpop.permute.xlu0 %843
        %v845 = vsel %vm675, %v842, 0
        %v847 = vsel %vm675, %v844, 0
        %849 = vmatprep.subr.mxu0 0.0
        %850 = vmatpush1.xpose.msra.mxu0 %v847
        %851 = vmatprep.subr.mxu0 0.0
        %852 = vmatpush1.xpose.msra.mxu0 0.0
        %853 = vmatprep.subr.mxu0 0.0
        %854 = vmatpush1.xpose.msra.mxu0 0.0
        %855 = vmatprep.subr.mxu0 0.0
        %856 = vmatpush1.xpose.msra.mxu0 0.0
        %857 = vmatprep.subr.mxu0 0.0
        %858 = vmatpush1.xpose.msra.mxu0 0.0
        %859 = vmatprep.subr.mxu0 0.0
        %860 = vmatpush1.xpose.msra.mxu0 0.0
        %861 = vmatprep.subr.mxu0 0.0
        %862 = vmatpush1.xpose.msra.mxu0 0.0
        %863 = vmatprep.subr.mxu0 0.0
        %864 = vmatpush1.xpose.msra.mxu0 0.0
        %865 = vmatprep.subr.mxu0 0.0
        %866 = vmatpush1.xpose.msra.mxu0 0.0
        %867 = vmatprep.subr.mxu0 0.0
        %868 = vmatpush1.xpose.msra.mxu0 0.0
        %869 = vmatprep.subr.mxu0 0.0
        %870 = vmatpush1.xpose.msra.mxu0 0.0
        %871 = vmatprep.subr.mxu0 0.0
        %872 = vmatpush1.xpose.msra.mxu0 0.0
        %873 = vmatprep.subr.mxu0 0.0
        %874 = vmatpush1.xpose.msra.mxu0 0.0
        %875 = vmatprep.subr.mxu0 0.0
        %876 = vmatpush1.xpose.msra.mxu0 0.0
        %877 = vmatprep.subr.mxu0 0.0
        %878 = vmatpush1.xpose.msra.mxu0 0.0
        %879 = vmatprep.subr.mxu0 0.0
        %880 = vmatpush1.xpose.msra.mxu0 0.0
        %881 = vmatprep.subr.mxu0 0.0
        %882 = vmatpush1.xpose.msra.mxu0 0.0
        %883 = vmatprep.subr.mxu0 0.0
        %884 = vmatpush1.xpose.msra.mxu0 0.0
        %885 = vmatprep.subr.mxu0 0.0
        %886 = vmatpush1.xpose.msra.mxu0 0.0
        %887 = vmatprep.subr.mxu0 0.0
        %888 = vmatpush1.xpose.msra.mxu0 0.0
        %889 = vmatprep.subr.mxu0 0.0
        %890 = vmatpush1.xpose.msra.mxu0 0.0
        %891 = vmatprep.subr.mxu0 0.0
        %892 = vmatpush1.xpose.msra.mxu0 0.0
        %893 = vmatprep.subr.mxu0 0.0
        %894 = vmatpush1.xpose.msra.mxu0 0.0
        %895 = vmatprep.subr.mxu0 0.0
        %896 = vmatpush1.xpose.msra.mxu0 0.0
        %897 = vmatprep.subr.mxu0 0.0
        %898 = vmatpush1.xpose.msra.mxu0 0.0
        %899 = vmatprep.subr.mxu0 0.0
        %900 = vmatpush1.xpose.msra.mxu0 0.0
        %901 = vmatprep.subr.mxu0 0.0
        %902 = vmatpush1.xpose.msra.mxu0 0.0
        %903 = vmatprep.subr.mxu0 0.0
        %904 = vmatpush1.xpose.msra.mxu0 0.0
        %905 = vmatprep.subr.mxu0 0.0
        %906 = vmatpush1.xpose.msra.mxu0 0.0
        %907 = vmatprep.subr.mxu0 0.0
        %908 = vmatpush1.xpose.msra.mxu0 0.0
        %909 = vmatprep.subr.mxu0 0.0
        %910 = vmatpush1.xpose.msra.mxu0 0.0
        %911 = vmatprep.subr.mxu0 0.0
        %912 = vmatpush1.xpose.msra.mxu0 0.0
        %913 = vmatprep.mubr.f32.mxu0 0.0
        %914 = vmatmul.mubr.f32.gmra.mrb[0].mxu0 %v845
        %v915 = vpop.f32.mrb[0].mxu0
        %v916 = vadd.f32 0.0, %v915
        %v917 = vpop.f32.mrb[0].mxu0
        %918 = vdwg.mxu0
        %v919 = vmul.f32 %v916, 0.25
        %v920 = vadd.f32 %v919, %v573
        %v921 = vsel %vm752, %v920, -inf
        %922 = vmax.xlane.f32.xlu0 %v921
        %v923 = vpop.xlane.xlu0 %922
        %v924 = vsub.f32 %v920, %v923
        %v925 = vmul.f32 %v924, 1.442695
        %v926 = vpow.pop %v925
        %v927 = vsel %vm752, %v926, 0.0
        %928 = vadd.xlane.f32.xlu0 %v927
        %v929 = vpop.xlane.xlu0 %928
        %v930 = vrcp.pop %v929
        %v931 = vmul.f32 %v926, %v930
        %932 = vrot.lane.b32.xlu0 %v667, 48
        %v933 = vpop.permute.xlu0 %932
        %v936 = vsel %vm752, %v931, 0
        %938 = vmatprep.subr.mxu0 0.0
        %939 = vmatpush1.msra.mxu0 %v933
        %940 = vmatprep.subr.mxu0 0.0
        %941 = vmatpush1.msra.mxu0 0.0
        %942 = vmatprep.subr.mxu0 0.0
        %943 = vmatpush1.msra.mxu0 0.0
        %944 = vmatprep.subr.mxu0 0.0
        %945 = vmatpush1.msra.mxu0 0.0
        %946 = vmatprep.subr.mxu0 0.0
        %947 = vmatpush1.msra.mxu0 0.0
        %948 = vmatprep.subr.mxu0 0.0
        %949 = vmatpush1.msra.mxu0 0.0
        %950 = vmatprep.subr.mxu0 0.0
        %951 = vmatpush1.msra.mxu0 0.0
        %952 = vmatprep.subr.mxu0 0.0
        %953 = vmatpush1.msra.mxu0 0.0
        %954 = vmatprep.subr.mxu0 0.0
        %955 = vmatpush1.msra.mxu0 0.0
        %956 = vmatprep.subr.mxu0 0.0
        %957 = vmatpush1.msra.mxu0 0.0
        %958 = vmatprep.subr.mxu0 0.0
        %959 = vmatpush1.msra.mxu0 0.0
        %960 = vmatprep.subr.mxu0 0.0
        %961 = vmatpush1.msra.mxu0 0.0
        %962 = vmatprep.subr.mxu0 0.0
        %963 = vmatpush1.msra.mxu0 0.0
        %964 = vmatprep.subr.mxu0 0.0
        %965 = vmatpush1.msra.mxu0 0.0
        %966 = vmatprep.subr.mxu0 0.0
        %967 = vmatpush1.msra.mxu0 0.0
        %968 = vmatprep.subr.mxu0 0.0
        %969 = vmatpush1.msra.mxu0 0.0
        %970 = vmatprep.subr.mxu0 0.0
        %971 = vmatpush1.msra.mxu0 0.0
        %972 = vmatprep.subr.mxu0 0.0
        %973 = vmatpush1.msra.mxu0 0.0
        %974 = vmatprep.subr.mxu0 0.0
        %975 = vmatpush1.msra.mxu0 0.0
        %976 = vmatprep.subr.mxu0 0.0
        %977 = vmatpush1.msra.mxu0 0.0
        %978 = vmatprep.subr.mxu0 0.0
        %979 = vmatpush1.msra.mxu0 0.0
        %980 = vmatprep.subr.mxu0 0.0
        %981 = vmatpush1.msra.mxu0 0.0
        %982 = vmatprep.subr.mxu0 0.0
        %983 = vmatpush1.msra.mxu0 0.0
        %984 = vmatprep.subr.mxu0 0.0
        %985 = vmatpush1.msra.mxu0 0.0
        %986 = vmatprep.subr.mxu0 0.0
        %987 = vmatpush1.msra.mxu0 0.0
        %988 = vmatprep.subr.mxu0 0.0
        %989 = vmatpush1.msra.mxu0 0.0
        %990 = vmatprep.subr.mxu0 0.0
        %991 = vmatpush1.msra.mxu0 0.0
        %992 = vmatprep.subr.mxu0 0.0
        %993 = vmatpush1.msra.mxu0 0.0
        %994 = vmatprep.subr.mxu0 0.0
        %995 = vmatpush1.msra.mxu0 0.0
        %996 = vmatprep.subr.mxu0 0.0
        %997 = vmatpush1.msra.mxu0 0.0
        %998 = vmatprep.subr.mxu0 0.0
        %999 = vmatpush1.msra.mxu0 0.0
        %1000 = vmatprep.subr.mxu0 0.0
        %1001 = vmatpush1.msra.mxu0 0.0
        %1002 = vmatprep.mubr.f32.mxu0 0.0
        %1003 = vmatmul.mubr.f32.gmra.mrb[0].mxu0 %v936
        %v1004 = vpop.f32.mrb[0].mxu0
        %v1005 = vadd.f32 0.0, %v1004
        %v1006 = vpop.f32.mrb[0].mxu0
        %1007 = vdwg.mxu0
        %1009 = vrot.lane.b32.xlu0 %v1005, 16
        %v1010 = vpop.permute.xlu0 %1009
        %vm1012 = vcmask 261248
        %1013 = vst.msk [vmem:[#allocation2] sm:$0xff] %vm1012, %v1010
        %v1014 = vld [vmem:[#allocation2] sm:$0xff]
        %v1015 = vpack.c.bf16 %v1014, %v1014
        %v1016 = vld [vmem:[%s6] sm:$0xf]
        %v1017 = vld [vmem:[%s6 + $0x4] sm:$0xf]
        %v1018 = vld [vmem:[%s6 + $0x8] sm:$0xf]
        %v1019 = vld [vmem:[%s6 + $0xc] sm:$0xf]
        %v1020 = vld [vmem:[%s7] sm:$0x1]
        %v1022 = vlaneseq
        %v1023 = vshrl.u32 %v1022, 7
        %v1024 = vsub.s32 0, %v1023
        %v1025 = vrot.slane %v1020, %v1024
        %v1031 = vunpack.c.l.b16 %v1016
        %v1032 = vunpack.c.l.b16 %v1017
        %v1033 = vunpack.c.l.b16 %v1018
        %v1034 = vunpack.c.l.b16 %v1019
        %v1035 = vpack.c.b16 %v1032, %v1031
        %v1036 = vpack.c.b16 %v1034, %v1033
        %v1040 = vsel %vm576, %v1015, 0
        %1042 = vmatprep.subr.bf16.mxu0 0
        %1043 = vmatpush1.bf16.msra.mxu0 %v1035
        %1044 = vmatprep.subr.bf16.mxu0 0
        %1045 = vmatpush1.bf16.msra.mxu0 %v1036
        %1046 = vmatprep.subr.bf16.mxu0 0
        %1047 = vmatpush1.bf16.msra.mxu0 0
        %1048 = vmatprep.subr.bf16.mxu0 0
        %1049 = vmatpush1.bf16.msra.mxu0 0
        %1050 = vmatprep.subr.bf16.mxu0 0
        %1051 = vmatpush1.bf16.msra.mxu0 0
        %1052 = vmatprep.subr.bf16.mxu0 0
        %1053 = vmatpush1.bf16.msra.mxu0 0
        %1054 = vmatprep.subr.bf16.mxu0 0
        %1055 = vmatpush1.bf16.msra.mxu0 0
        %1056 = vmatprep.subr.bf16.mxu0 0
        %1057 = vmatpush1.bf16.msra.mxu0 0
        %1058 = vmatprep.subr.bf16.mxu0 0
        %1059 = vmatpush1.bf16.msra.mxu0 0
        %1060 = vmatprep.subr.bf16.mxu0 0
        %1061 = vmatpush1.bf16.msra.mxu0 0
        %1062 = vmatprep.subr.bf16.mxu0 0
        %1063 = vmatpush1.bf16.msra.mxu0 0
        %1064 = vmatprep.subr.bf16.mxu0 0
        %1065 = vmatpush1.bf16.msra.mxu0 0
        %1066 = vmatprep.subr.bf16.mxu0 0
        %1067 = vmatpush1.bf16.msra.mxu0 0
        %1068 = vmatprep.subr.bf16.mxu0 0
        %1069 = vmatpush1.bf16.msra.mxu0 0
        %1070 = vmatprep.subr.bf16.mxu0 0
        %1071 = vmatpush1.bf16.msra.mxu0 0
        %1072 = vmatprep.subr.bf16.mxu0 0
        %1073 = vmatpush1.bf16.msra.mxu0 0
        %1074 = vmatprep.mubr.bf16.mxu0 0
        %1075 = vmatmul.mubr.bf16.gmra.mrb[0].mxu0 %v1040
        %v1076 = vpop.f32.mrb[0].mxu0
        %v1077 = vadd.f32 %v1025, %v1076
        %v1078 = vpop.f32.mrb[0].mxu0
        %v1079 = vpop.f32.mrb[0].mxu0
        %v1080 = vpop.f32.mrb[0].mxu0
        %1081 = vdwg.mxu0
        %v1082 = vadd.f32 %v572, %v1077
        %v1083 = vld [vmem:[%s8] sm:$0x1]
        %v1084 = vld [vmem:[%s9] sm:$0x1]
        %v1085 = vsel %vm576, %v1082, 0.0
        %1086 = vadd.xlane.f32.xlu0 %v1085
        %v1087 = vpop.xlane.xlu0 %1086
        %v1088 = vmul.f32 %v1087, %v580
        %v1089 = vsub.f32 %v1082, %v1088
        %v1090 = vmul.f32 %v1089, %v1089
        %v1091 = vsel %vm576, %v1090, 0.0
        %1092 = vadd.xlane.f32.xlu0 %v1091
        %v1093 = vpop.xlane.xlu0 %1092
        %v1094 = vmul.f32 %v1093, %v580
        %v1095 = vadd.f32 %v1094, 1e-05
        %v1096 = vrsqrt.pop %v1095
        %v1097 = vmul.f32 %v1089, %v1096
        %v1099 = vlaneseq
        %v1100 = vshrl.u32 %v1099, 7
        %v1101 = vsub.s32 0, %v1100
        %v1102 = vrot.slane %v1083, %v1101
        %v1104 = vmul.f32 %v1097, %v1102
        %v1106 = vlaneseq
        %v1107 = vshrl.u32 %v1106, 7
        %v1108 = vsub.s32 0, %v1107
        %v1109 = vrot.slane %v1084, %v1108
        %v1111 = vadd.f32 %v1104, %v1109
        %v1112 = vpack.c.bf16 %v1111, %v1111
        %v1113 = vld [vmem:[%s10] sm:$0xf]
        %v1114 = vld [vmem:[%s10 + $0x4] sm:$0xf]
        %v1115 = vld [vmem:[%s10 + $0x8] sm:$0xf]
        %v1116 = vld [vmem:[%s10 + $0xc] sm:$0xf]
        %v1117 = vld [vmem:[%s11] sm:$0x1]
        %v1119 = vlaneseq
        %v1120 = vshrl.u32 %v1119, 7
        %v1121 = vsub.s32 0, %v1120
        %v1122 = vrot.slane %v1117, %v1121
        %v1128 = vunpack.c.l.b16 %v1113
        %v1129 = vunpack.c.l.b16 %v1114
        %v1130 = vunpack.c.l.b16 %v1115
        %v1131 = vunpack.c.l.b16 %v1116
        %v1132 = vpack.c.b16 %v1129, %v1128
        %v1133 = vpack.c.b16 %v1131, %v1130
        %v1137 = vsel %vm576, %v1112, 0
        %1139 = vmatprep.subr.bf16.mxu0 0
        %1140 = vmatpush1.bf16.msra.mxu0 %v1132
        %1141 = vmatprep.subr.bf16.mxu0 0
        %1142 = vmatpush1.bf16.msra.mxu0 %v1133
        %1143 = vmatprep.subr.bf16.mxu0 0
        %1144 = vmatpush1.bf16.msra.mxu0 0
        %1145 = vmatprep.subr.bf16.mxu0 0
        %1146 = vmatpush1.bf16.msra.mxu0 0
        %1147 = vmatprep.subr.bf16.mxu0 0
        %1148 = vmatpush1.bf16.msra.mxu0 0
        %1149 = vmatprep.subr.bf16.mxu0 0
        %1150 = vmatpush1.bf16.msra.mxu0 0
        %1151 = vmatprep.subr.bf16.mxu0 0
        %1152 = vmatpush1.bf16.msra.mxu0 0
        %1153 = vmatprep.subr.bf16.mxu0 0
        %1154 = vmatpush1.bf16.msra.mxu0 0
        %1155 = vmatprep.subr.bf16.mxu0 0
        %1156 = vmatpush1.bf16.msra.mxu0 0
        %1157 = vmatprep.subr.bf16.mxu0 0
        %1158 = vmatpush1.bf16.msra.mxu0 0
        %1159 = vmatprep.subr.bf16.mxu0 0
        %1160 = vmatpush1.bf16.msra.mxu0 0
        %1161 = vmatprep.subr.bf16.mxu0 0
        %1162 = vmatpush1.bf16.msra.mxu0 0
        %1163 = vmatprep.subr.bf16.mxu0 0
        %1164 = vmatpush1.bf16.msra.mxu0 0
        %1165 = vmatprep.subr.bf16.mxu0 0
        %1166 = vmatpush1.bf16.msra.mxu0 0
        %1167 = vmatprep.subr.bf16.mxu0 0
        %1168 = vmatpush1.bf16.msra.mxu0 0
        %1169 = vmatprep.subr.bf16.mxu0 0
        %1170 = vmatpush1.bf16.msra.mxu0 0
        %1171 = vmatprep.mubr.bf16.mxu0 0
        %1172 = vmatmul.mubr.bf16.gmra.mrb[0].mxu0 %v1137
        %v1173 = vpop.f32.mrb[0].mxu0
        %v1174 = vadd.f32 %v1122, %v1173
        %v1175 = vpop.f32.mrb[0].mxu0
        %v1176 = vpop.f32.mrb[0].mxu0
        %v1177 = vpop.f32.mrb[0].mxu0
        %1178 = vdwg.mxu0
        %v1179 = vmul.f32 %v1174, 0.5
        %v1180 = vmul.f32 %v1174, %v1174
        %v1181 = vmul.f32 %v1174, %v1180
        %v1182 = vmul.f32 %v1181, 0.044715
        %v1183 = vadd.f32 %v1174, %v1182
        %v1184 = vmul.f32 %v1183, 0.7978846
        %v1185 = vtanh.pop %v1184
        %v1186 = vadd.f32 %v1185, 1.0
        %v1187 = vmul.f32 %v1179, %v1186
        %v1188 = vpack.c.bf16 %v1187, %v1187
        %v1189 = vld [vmem:[%s12] sm:$0xf]
        %v1190 = vld [vmem:[%s12 + $0x4] sm:$0xf]
        %v1191 = vld [vmem:[%s12 + $0x8] sm:$0xf]
        %v1192 = vld [vmem:[%s12 + $0xc] sm:$0xf]
        %v1193 = vld [vmem:[%s12 + $0x10] sm:$0xf]
        %v1194 = vld [vmem:[%s12 + $0x14] sm:$0xf]
        %v1195 = vld [vmem:[%s12 + $0x18] sm:$0xf]
        %v1196 = vld [vmem:[%s12 + $0x1c] sm:$0xf]
        %v1197 = vld [vmem:[%s12 + $0x20] sm:$0xf]
        %v1198 = vld [vmem:[%s12 + $0x24] sm:$0xf]
        %v1199 = vld [vmem:[%s12 + $0x28] sm:$0xf]
        %v1200 = vld [vmem:[%s12 + $0x2c] sm:$0xf]
        %v1201 = vld [vmem:[%s12 + $0x30] sm:$0xf]
        %v1202 = vld [vmem:[%s12 + $0x34] sm:$0xf]
        %v1203 = vld [vmem:[%s12 + $0x38] sm:$0xf]
        %v1204 = vld [vmem:[%s12 + $0x3c] sm:$0xf]
        %v1205 = vld [vmem:[%s13] sm:$0x1]
        %v1207 = vlaneseq
        %v1208 = vshrl.u32 %v1207, 7
        %v1209 = vsub.s32 0, %v1208
        %v1210 = vrot.slane %v1205, %v1209
        %v1228 = vunpack.c.l.b16 %v1189
        %v1229 = vunpack.c.l.b16 %v1190
        %v1230 = vunpack.c.l.b16 %v1191
        %v1231 = vunpack.c.l.b16 %v1192
        %v1232 = vunpack.c.l.b16 %v1193
        %v1233 = vunpack.c.l.b16 %v1194
        %v1234 = vunpack.c.l.b16 %v1195
        %v1235 = vunpack.c.l.b16 %v1196
        %v1236 = vunpack.c.l.b16 %v1197
        %v1237 = vunpack.c.l.b16 %v1198
        %v1238 = vunpack.c.l.b16 %v1199
        %v1239 = vunpack.c.l.b16 %v1200
        %v1240 = vunpack.c.l.b16 %v1201
        %v1241 = vunpack.c.l.b16 %v1202
        %v1242 = vunpack.c.l.b16 %v1203
        %v1243 = vunpack.c.l.b16 %v1204
        %v1244 = vpack.c.b16 %v1229, %v1228
        %v1245 = vpack.c.b16 %v1231, %v1230
        %v1246 = vpack.c.b16 %v1233, %v1232
        %v1247 = vpack.c.b16 %v1235, %v1234
        %v1248 = vpack.c.b16 %v1237, %v1236
        %v1249 = vpack.c.b16 %v1239, %v1238
        %v1250 = vpack.c.b16 %v1241, %v1240
        %v1251 = vpack.c.b16 %v1243, %v1242
        %1260 = vmatprep.subr.bf16.mxu0 0
        %1261 = vmatpush1.bf16.msra.mxu0 %v1244
        %1262 = vmatprep.subr.bf16.mxu0 0
        %1263 = vmatpush1.bf16.msra.mxu0 %v1245
        %1264 = vmatprep.subr.bf16.mxu0 0
        %1265 = vmatpush1.bf16.msra.mxu0 %v1246
        %1266 = vmatprep.subr.bf16.mxu0 0
        %1267 = vmatpush1.bf16.msra.mxu0 %v1247
        %1268 = vmatprep.subr.bf16.mxu0 0
        %1269 = vmatpush1.bf16.msra.mxu0 %v1248
        %1270 = vmatprep.subr.bf16.mxu0 0
        %1271 = vmatpush1.bf16.msra.mxu0 %v1249
        %1272 = vmatprep.subr.bf16.mxu0 0
        %1273 = vmatpush1.bf16.msra.mxu0 %v1250
        %1274 = vmatprep.subr.bf16.mxu0 0
        %1275 = vmatpush1.bf16.msra.mxu0 %v1251
        %1276 = vmatprep.subr.bf16.mxu0 0
        %1277 = vmatpush1.bf16.msra.mxu0 0
        %1278 = vmatprep.subr.bf16.mxu0 0
        %1279 = vmatpush1.bf16.msra.mxu0 0
        %1280 = vmatprep.subr.bf16.mxu0 0
        %1281 = vmatpush1.bf16.msra.mxu0 0
        %1282 = vmatprep.subr.bf16.mxu0 0
        %1283 = vmatpush1.bf16.msra.mxu0 0
        %1284 = vmatprep.subr.bf16.mxu0 0
        %1285 = vmatpush1.bf16.msra.mxu0 0
        %1286 = vmatprep.subr.bf16.mxu0 0
        %1287 = vmatpush1.bf16.msra.mxu0 0
        %1288 = vmatprep.subr.bf16.mxu0 0
        %1289 = vmatpush1.bf16.msra.mxu0 0
        %1290 = vmatprep.subr.bf16.mxu0 0
        %1291 = vmatpush1.bf16.msra.mxu0 0
        %1292 = vmatprep.mubr.bf16.mxu0 0
        %1293 = vmatmul.mubr.bf16.gmra.mrb[0].mxu0 %v1188
        %v1294 = vpop.f32.mrb[0].mxu0
        %v1295 = vadd.f32 %v1210, %v1294
        %v1296 = vpop.f32.mrb[0].mxu0
        %v1297 = vpop.f32.mrb[0].mxu0
        %v1298 = vpop.f32.mrb[0].mxu0
        %1299 = vdwg.mxu0
        %v1300 = vadd.f32 %v1082, %v1295
        %s1301 = scalar_lea.vmem %s2, 1
        %v1302 = vld [vmem:[%s1301] sm:$0x1]
        %s1303 = scalar_lea.vmem %s3, 1
        %v1304 = vld [vmem:[%s1303] sm:$0x1]
        %v1305 = vsel %vm576, %v1300, 0.0
        %1306 = vadd.xlane.f32.xlu0 %v1305
        %v1307 = vpop.xlane.xlu0 %1306
        %v1308 = vmul.f32 %v1307, %v580
        %v1309 = vsub.f32 %v1300, %v1308
        %v1310 = vmul.f32 %v1309, %v1309
        %v1311 = vsel %vm576, %v1310, 0.0
        %1312 = vadd.xlane.f32.xlu0 %v1311
        %v1313 = vpop.xlane.xlu0 %1312
        %v1314 = vmul.f32 %v1313, %v580
        %v1315 = vadd.f32 %v1314, 1e-05
        %v1316 = vrsqrt.pop %v1315
        %v1317 = vmul.f32 %v1309, %v1316
        %v1319 = vlaneseq
        %v1320 = vshrl.u32 %v1319, 7
        %v1321 = vsub.s32 0, %v1320
        %v1322 = vrot.slane %v1302, %v1321
        %v1324 = vmul.f32 %v1317, %v1322
        %v1326 = vlaneseq
        %v1327 = vshrl.u32 %v1326, 7
        %v1328 = vsub.s32 0, %v1327
        %v1329 = vrot.slane %v1304, %v1328
        %v1331 = vadd.f32 %v1324, %v1329
        %v1332 = vpack.c.bf16 %v1331, %v1331
        %s1333 = scalar_lea.vmem %s4, 16
        %v1334 = vld [vmem:[%s1333] sm:$0xf]
        %v1335 = vld [vmem:[%s1333 + $0x4] sm:$0xf]
        %v1336 = vld [vmem:[%s1333 + $0x8] sm:$0xf]
        %v1337 = vld [vmem:[%s1333 + $0xc] sm:$0xf]
        %s1338 = scalar_lea.vmem %s5, 1
        %v1339 = vld [vmem:[%s1338] sm:$0x1]
        %v1341 = vlaneseq
        %v1342 = vshrl.u32 %v1341, 7
        %v1343 = vsub.s32 0, %v1342
        %v1344 = vrot.slane %v1339, %v1343
        %v1350 = vunpack.c.l.b16 %v1334
        %v1351 = vunpack.c.l.b16 %v1335
        %v1352 = vunpack.c.l.b16 %v1336
        %v1353 = vunpack.c.l.b16 %v1337
        %v1354 = vpack.c.b16 %v1351, %v1350
        %v1355 = vpack.c.b16 %v1353, %v1352
        %v1359 = vsel %vm576, %v1332, 0
        %1361 = vmatprep.subr.bf16.mxu0 0
        %1362 = vmatpush1.bf16.msra.mxu0 %v1354
        %1363 = vmatprep.subr.bf16.mxu0 0
        %1364 = vmatpush1.bf16.msra.mxu0 %v1355
        %1365 = vmatprep.subr.bf16.mxu0 0
        %1366 = vmatpush1.bf16.msra.mxu0 0
        %1367 = vmatprep.subr.bf16.mxu0 0
        %1368 = vmatpush1.bf16.msra.mxu0 0
        %1369 = vmatprep.subr.bf16.mxu0 0
        %1370 = vmatpush1.bf16.msra.mxu0 0
        %1371 = vmatprep.subr.bf16.mxu0 0
        %1372 = vmatpush1.bf16.msra.mxu0 0
        %1373 = vmatprep.subr.bf16.mxu0 0
        %1374 = vmatpush1.bf16.msra.mxu0 0
        %1375 = vmatprep.subr.bf16.mxu0 0
        %1376 = vmatpush1.bf16.msra.mxu0 0
        %1377 = vmatprep.subr.bf16.mxu0 0
        %1378 = vmatpush1.bf16.msra.mxu0 0
        %1379 = vmatprep.subr.bf16.mxu0 0
        %1380 = vmatpush1.bf16.msra.mxu0 0
        %1381 = vmatprep.subr.bf16.mxu0 0
        %1382 = vmatpush1.bf16.msra.mxu0 0
        %1383 = vmatprep.subr.bf16.mxu0 0
        %1384 = vmatpush1.bf16.msra.mxu0 0
        %1385 = vmatprep.subr.bf16.mxu0 0
        %1386 = vmatpush1.bf16.msra.mxu0 0
        %1387 = vmatprep.subr.bf16.mxu0 0
        %1388 = vmatpush1.bf16.msra.mxu0 0
        %1389 = vmatprep.subr.bf16.mxu0 0
        %1390 = vmatpush1.bf16.msra.mxu0 0
        %1391 = vmatprep.subr.bf16.mxu0 0
        %1392 = vmatpush1.bf16.msra.mxu0 0
        %1393 = vmatprep.mubr.bf16.mxu0 0
        %1394 = vmatmul.mubr.bf16.gmra.mrb[0].mxu0 %v1359
        %v1395 = vpop.f32.mrb[0].mxu0
        %v1396 = vadd.f32 %v1344, %v1395
        %v1397 = vpop.f32.mrb[0].mxu0
        %v1398 = vpop.f32.mrb[0].mxu0
        %v1399 = vpop.f32.mrb[0].mxu0
        %1400 = vdwg.mxu0
        %1402 = vrot.lane.b32.xlu0 %v1396, 96
        %v1403 = vpop.permute.xlu0 %1402
        %v1404 = vsel %vm675, %v1396, 0
        %v1406 = vsel %vm675, %v1403, 0
        %1408 = vmatprep.subr.mxu0 0.0
        %1409 = vmatpush1.xpose.msra.mxu0 %v1406
        %1410 = vmatprep.subr.mxu0 0.0
        %1411 = vmatpush1.xpose.msra.mxu0 0.0
        %1412 = vmatprep.subr.mxu0 0.0
        %1413 = vmatpush1.xpose.msra.mxu0 0.0
        %1414 = vmatprep.subr.mxu0 0.0
        %1415 = vmatpush1.xpose.msra.mxu0 0.0
        %1416 = vmatprep.subr.mxu0 0.0
        %1417 = vmatpush1.xpose.msra.mxu0 0.0
        %1418 = vmatprep.subr.mxu0 0.0
        %1419 = vmatpush1.xpose.msra.mxu0 0.0
        %1420 = vmatprep.subr.mxu0 0.0
        %1421 = vmatpush1.xpose.msra.mxu0 0.0
        %1422 = vmatprep.subr.mxu0 0.0
        %1423 = vmatpush1.xpose.msra.mxu0 0.0
        %1424 = vmatprep.subr.mxu0 0.0
        %1425 = vmatpush1.xpose.msra.mxu0 0.0
        %1426 = vmatprep.subr.mxu0 0.0
        %1427 = vmatpush1.xpose.msra.mxu0 0.0
        %1428 = vmatprep.subr.mxu0 0.0
        %1429 = vmatpush1.xpose.msra.mxu0 0.0
        %1430 = vmatprep.subr.mxu0 0.0
        %1431 = vmatpush1.xpose.msra.mxu0 0.0
        %1432 = vmatprep.subr.mxu0 0.0
        %1433 = vmatpush1.xpose.msra.mxu0 0.0
        %1434 = vmatprep.subr.mxu0 0.0
        %1435 = vmatpush1.xpose.msra.mxu0 0.0
        %1436 = vmatprep.subr.mxu0 0.0
        %1437 = vmatpush1.xpose.msra.mxu0 0.0
        %1438 = vmatprep.subr.mxu0 0.0
        %1439 = vmatpush1.xpose.msra.mxu0 0.0
        %1440 = vmatprep.subr.mxu0 0.0
        %1441 = vmatpush1.xpose.msra.mxu0 0.0
        %1442 = vmatprep.subr.mxu0 0.0
        %1443 = vmatpush1.xpose.msra.mxu0 0.0
        %1444 = vmatprep.subr.mxu0 0.0
        %1445 = vmatpush1.xpose.msra.mxu0 0.0
        %1446 = vmatprep.subr.mxu0 0.0
        %1447 = vmatpush1.xpose.msra.mxu0 0.0
        %1448 = vmatprep.subr.mxu0 0.0
        %1449 = vmatpush1.xpose.msra.mxu0 0.0
        %1450 = vmatprep.subr.mxu0 0.0
        %1451 = vmatpush1.xpose.msra.mxu0 0.0
        %1452 = vmatprep.subr.mxu0 0.0
        %1453 = vmatpush1.xpose.msra.mxu0 0.0
        %1454 = vmatprep.subr.mxu0 0.0
        %1455 = vmatpush1.xpose.msra.mxu0 0.0
        %1456 = vmatprep.subr.mxu0 0.0
        %1457 = vmatpush1.xpose.msra.mxu0 0.0
        %1458 = vmatprep.subr.mxu0 0.0
        %1459 = vmatpush1.xpose.msra.mxu0 0.0
        %1460 = vmatprep.subr.mxu0 0.0
        %1461 = vmatpush1.xpose.msra.mxu0 0.0
        %1462 = vmatprep.subr.mxu0 0.0
        %1463 = vmatpush1.xpose.msra.mxu0 0.0
        %1464 = vmatprep.subr.mxu0 0.0
        %1465 = vmatpush1.xpose.msra.mxu0 0.0
        %1466 = vmatprep.subr.mxu0 0.0
        %1467 = vmatpush1.xpose.msra.mxu0 0.0
        %1468 = vmatprep.subr.mxu0 0.0
        %1469 = vmatpush1.xpose.msra.mxu0 0.0
        %1470 = vmatprep.subr.mxu0 0.0
        %1471 = vmatpush1.xpose.msra.mxu0 0.0
        %1472 = vmatprep.mubr.f32.mxu0 0.0
        %1473 = vmatmul.mubr.f32.gmra.mrb[0].mxu0 %v1404
        %v1474 = vpop.f32.mrb[0].mxu0
        %v1475 = vadd.f32 0.0, %v1474
        %v1476 = vpop.f32.mrb[0].mxu0
        %1477 = vdwg.mxu0
        %v1478 = vmul.f32 %v1475, 0.25
        %v1479 = vadd.f32 %v1478, %v573
        %v1480 = vsel %vm752, %v1479, -inf
        %1481 = vmax.xlane.f32.xlu0 %v1480
        %v1482 = vpop.xlane.xlu0 %1481
        %v1483 = vsub.f32 %v1479, %v1482
        %v1484 = vmul.f32 %v1483, 1.442695
        %v1485 = vpow.pop %v1484
        %v1486 = vsel %vm752, %v1485, 0.0
        %1487 = vadd.xlane.f32.xlu0 %v1486
        %v1488 = vpop.xlane.xlu0 %1487
        %v1489 = vrcp.pop %v1488
        %v1490 = vmul.f32 %v1485, %v1489
        %1491 = vrot.lane.b32.xlu0 %v1396, 64
        %v1492 = vpop.permute.xlu0 %1491
        %v1495 = vsel %vm752, %v1490, 0
        %1497 = vmatprep.subr.mxu0 0.0
        %1498 = vmatpush1.msra.mxu0 %v1492
        %1499 = vmatprep.subr.mxu0 0.0
        %1500 = vmatpush1.msra.mxu0 0.0
        %1501 = vmatprep.subr.mxu0 0.0
        %1502 = vmatpush1.msra.mxu0 0.0
        %1503 = vmatprep.subr.mxu0 0.0
        %1504 = vmatpush1.msra.mxu0 0.0
        %1505 = vmatprep.subr.mxu0 0.0
        %1506 = vmatpush1.msra.mxu0 0.0
        %1507 = vmatprep.subr.mxu0 0.0
        %1508 = vmatpush1.msra.mxu0 0.0
        %1509 = vmatprep.subr.mxu0 0.0
        %1510 = vmatpush1.msra.mxu0 0.0
        %1511 = vmatprep.subr.mxu0 0.0
        %1512 = vmatpush1.msra.mxu0 0.0
        %1513 = vmatprep.subr.mxu0 0.0
        %1514 = vmatpush1.msra.mxu0 0.0
        %1515 = vmatprep.subr.mxu0 0.0
        %1516 = vmatpush1.msra.mxu0 0.0
        %1517 = vmatprep.subr.mxu0 0.0
        %1518 = vmatpush1.msra.mxu0 0.0
        %1519 = vmatprep.subr.mxu0 0.0
        %1520 = vmatpush1.msra.mxu0 0.0
        %1521 = vmatprep.subr.mxu0 0.0
        %1522 = vmatpush1.msra.mxu0 0.0
        %1523 = vmatprep.subr.mxu0 0.0
        %1524 = vmatpush1.msra.mxu0 0.0
        %1525 = vmatprep.subr.mxu0 0.0
        %1526 = vmatpush1.msra.mxu0 0.0
        %1527 = vmatprep.subr.mxu0 0.0
        %1528 = vmatpush1.msra.mxu0 0.0
        %1529 = vmatprep.subr.mxu0 0.0
        %1530 = vmatpush1.msra.mxu0 0.0
        %1531 = vmatprep.subr.mxu0 0.0
        %1532 = vmatpush1.msra.mxu0 0.0
        %1533 = vmatprep.subr.mxu0 0.0
        %1534 = vmatpush1.msra.mxu0 0.0
        %1535 = vmatprep.subr.mxu0 0.0
        %1536 = vmatpush1.msra.mxu0 0.0
        %1537 = vmatprep.subr.mxu0 0.0
        %1538 = vmatpush1.msra.mxu0 0.0
        %1539 = vmatprep.subr.mxu0 0.0
        %1540 = vmatpush1.msra.mxu0 0.0
        %1541 = vmatprep.subr.mxu0 0.0
        %1542 = vmatpush1.msra.mxu0 0.0
        %1543 = vmatprep.subr.mxu0 0.0
        %1544 = vmatpush1.msra.mxu0 0.0
        %1545 = vmatprep.subr.mxu0 0.0
        %1546 = vmatpush1.msra.mxu0 0.0
        %1547 = vmatprep.subr.mxu0 0.0
        %1548 = vmatpush1.msra.mxu0 0.0
        %1549 = vmatprep.subr.mxu0 0.0
        %1550 = vmatpush1.msra.mxu0 0.0
        %1551 = vmatprep.subr.mxu0 0.0
        %1552 = vmatpush1.msra.mxu0 0.0
        %1553 = vmatprep.subr.mxu0 0.0
        %1554 = vmatpush1.msra.mxu0 0.0
        %1555 = vmatprep.subr.mxu0 0.0
        %1556 = vmatpush1.msra.mxu0 0.0
        %1557 = vmatprep.subr.mxu0 0.0
        %1558 = vmatpush1.msra.mxu0 0.0
        %1559 = vmatprep.subr.mxu0 0.0
        %1560 = vmatpush1.msra.mxu0 0.0
        %1561 = vmatprep.mubr.f32.mxu0 0.0
        %1562 = vmatmul.mubr.f32.gmra.mrb[0].mxu0 %v1495
        %v1563 = vpop.f32.mrb[0].mxu0
        %v1564 = vadd.f32 0.0, %v1563
        %v1565 = vpop.f32.mrb[0].mxu0
        %1566 = vdwg.mxu0
        %1567 = vst.msk [vmem:[#allocation2] sm:$0xff] %vm675, %v1564
        %1568 = vrot.lane.b32.xlu0 %v1396, 112
        %v1569 = vpop.permute.xlu0 %1568
        %1570 = vrot.lane.b32.xlu0 %v1396, 80
        %v1571 = vpop.permute.xlu0 %1570
        %v1572 = vsel %vm675, %v1569, 0
        %v1574 = vsel %vm675, %v1571, 0
        %1576 = vmatprep.subr.mxu0 0.0
        %1577 = vmatpush1.xpose.msra.mxu0 %v1574
        %1578 = vmatprep.subr.mxu0 0.0
        %1579 = vmatpush1.xpose.msra.mxu0 0.0
        %1580 = vmatprep.subr.mxu0 0.0
        %1581 = vmatpush1.xpose.msra.mxu0 0.0
        %1582 = vmatprep.subr.mxu0 0.0
        %1583 = vmatpush1.xpose.msra.mxu0 0.0
        %1584 = vmatprep.subr.mxu0 0.0
        %1585 = vmatpush1.xpose.msra.mxu0 0.0
        %1586 = vmatprep.subr.mxu0 0.0
        %1587 = vmatpush1.xpose.msra.mxu0 0.0
        %1588 = vmatprep.subr.mxu0 0.0
        %1589 = vmatpush1.xpose.msra.mxu0 0.0
        %1590 = vmatprep.subr.mxu0 0.0
        %1591 = vmatpush1.xpose.msra.mxu0 0.0
        %1592 = vmatprep.subr.mxu0 0.0
        %1593 = vmatpush1.xpose.msra.mxu0 0.0
        %1594 = vmatprep.subr.mxu0 0.0
        %1595 = vmatpush1.xpose.msra.mxu0 0.0
        %1596 = vmatprep.subr.mxu0 0.0
        %1597 = vmatpush1.xpose.msra.mxu0 0.0
        %1598 = vmatprep.subr.mxu0 0.0
        %1599 = vmatpush1.xpose.msra.mxu0 0.0
        %1600 = vmatprep.subr.mxu0 0.0
        %1601 = vmatpush1.xpose.msra.mxu0 0.0
        %1602 = vmatprep.subr.mxu0 0.0
        %1603 = vmatpush1.xpose.msra.mxu0 0.0
        %1604 = vmatprep.subr.mxu0 0.0
        %1605 = vmatpush1.xpose.msra.mxu0 0.0
        %1606 = vmatprep.subr.mxu0 0.0
        %1607 = vmatpush1.xpose.msra.mxu0 0.0
        %1608 = vmatprep.subr.mxu0 0.0
        %1609 = vmatpush1.xpose.msra.mxu0 0.0
        %1610 = vmatprep.subr.mxu0 0.0
        %1611 = vmatpush1.xpose.msra.mxu0 0.0
        %1612 = vmatprep.subr.mxu0 0.0
        %1613 = vmatpush1.xpose.msra.mxu0 0.0
        %1614 = vmatprep.subr.mxu0 0.0
        %1615 = vmatpush1.xpose.msra.mxu0 0.0
        %1616 = vmatprep.subr.mxu0 0.0
        %1617 = vmatpush1.xpose.msra.mxu0 0.0
        %1618 = vmatprep.subr.mxu0 0.0
        %1619 = vmatpush1.xpose.msra.mxu0 0.0
        %1620 = vmatprep.subr.mxu0 0.0
        %1621 = vmatpush1.xpose.msra.mxu0 0.0
        %1622 = vmatprep.subr.mxu0 0.0
        %1623 = vmatpush1.xpose.msra.mxu0 0.0
        %1624 = vmatprep.subr.mxu0 0.0
        %1625 = vmatpush1.xpose.msra.mxu0 0.0
        %1626 = vmatprep.subr.mxu0 0.0
        %1627 = vmatpush1.xpose.msra.mxu0 0.0
        %1628 = vmatprep.subr.mxu0 0.0
        %1629 = vmatpush1.xpose.msra.mxu0 0.0
        %1630 = vmatprep.subr.mxu0 0.0
        %1631 = vmatpush1.xpose.msra.mxu0 0.0
        %1632 = vmatprep.subr.mxu0 0.0
        %1633 = vmatpush1.xpose.msra.mxu0 0.0
        %1634 = vmatprep.subr.mxu0 0.0
        %1635 = vmatpush1.xpose.msra.mxu0 0.0
        %1636 = vmatprep.subr.mxu0 0.0
        %1637 = vmatpush1.xpose.msra.mxu0 0.0
        %1638 = vmatprep.subr.mxu0 0.0
        %1639 = vmatpush1.xpose.msra.mxu0 0.0
        %1640 = vmatprep.mubr.f32.mxu0 0.0
        %1641 = vmatmul.mubr.f32.gmra.mrb[0].mxu0 %v1572
        %v1642 = vpop.f32.mrb[0].mxu0
        %v1643 = vadd.f32 0.0, %v1642
        %v1644 = vpop.f32.mrb[0].mxu0
        %1645 = vdwg.mxu0
        %v1646 = vmul.f32 %v1643, 0.25
        %v1647 = vadd.f32 %v1646, %v573
        %v1648 = vsel %vm752, %v1647, -inf
        %1649 = vmax.xlane.f32.xlu0 %v1648
        %v1650 = vpop.xlane.xlu0 %1649
        %v1651 = vsub.f32 %v1647, %v1650
        %v1652 = vmul.f32 %v1651, 1.442695
        %v1653 = vpow.pop %v1652
        %v1654 = vsel %vm752, %v1653, 0.0
        %1655 = vadd.xlane.f32.xlu0 %v1654
        %v1656 = vpop.xlane.xlu0 %1655
        %v1657 = vrcp.pop %v1656
        %v1658 = vmul.f32 %v1653, %v1657
        %1659 = vrot.lane.b32.xlu0 %v1396, 48
        %v1660 = vpop.permute.xlu0 %1659
        %v1663 = vsel %vm752, %v1658, 0
        %1665 = vmatprep.subr.mxu0 0.0
        %1666 = vmatpush1.msra.mxu0 %v1660
        %1667 = vmatprep.subr.mxu0 0.0
        %1668 = vmatpush1.msra.mxu0 0.0
        %1669 = vmatprep.subr.mxu0 0.0
        %1670 = vmatpush1.msra.mxu0 0.0
        %1671 = vmatprep.subr.mxu0 0.0
        %1672 = vmatpush1.msra.mxu0 0.0
        %1673 = vmatprep.subr.mxu0 0.0
        %1674 = vmatpush1.msra.mxu0 0.0
        %1675 = vmatprep.subr.mxu0 0.0
        %1676 = vmatpush1.msra.mxu0 0.0
        %1677 = vmatprep.subr.mxu0 0.0
        %1678 = vmatpush1.msra.mxu0 0.0
        %1679 = vmatprep.subr.mxu0 0.0
        %1680 = vmatpush1.msra.mxu0 0.0
        %1681 = vmatprep.subr.mxu0 0.0
        %1682 = vmatpush1.msra.mxu0 0.0
        %1683 = vmatprep.subr.mxu0 0.0
        %1684 = vmatpush1.msra.mxu0 0.0
        %1685 = vmatprep.subr.mxu0 0.0
        %1686 = vmatpush1.msra.mxu0 0.0
        %1687 = vmatprep.subr.mxu0 0.0
        %1688 = vmatpush1.msra.mxu0 0.0
        %1689 = vmatprep.subr.mxu0 0.0
        %1690 = vmatpush1.msra.mxu0 0.0
        %1691 = vmatprep.subr.mxu0 0.0
        %1692 = vmatpush1.msra.mxu0 0.0
        %1693 = vmatprep.subr.mxu0 0.0
        %1694 = vmatpush1.msra.mxu0 0.0
        %1695 = vmatprep.subr.mxu0 0.0
        %1696 = vmatpush1.msra.mxu0 0.0
        %1697 = vmatprep.subr.mxu0 0.0
        %1698 = vmatpush1.msra.mxu0 0.0
        %1699 = vmatprep.subr.mxu0 0.0
        %1700 = vmatpush1.msra.mxu0 0.0
        %1701 = vmatprep.subr.mxu0 0.0
        %1702 = vmatpush1.msra.mxu0 0.0
        %1703 = vmatprep.subr.mxu0 0.0
        %1704 = vmatpush1.msra.mxu0 0.0
        %1705 = vmatprep.subr.mxu0 0.0
        %1706 = vmatpush1.msra.mxu0 0.0
        %1707 = vmatprep.subr.mxu0 0.0
        %1708 = vmatpush1.msra.mxu0 0.0
        %1709 = vmatprep.subr.mxu0 0.0
        %1710 = vmatpush1.msra.mxu0 0.0
        %1711 = vmatprep.subr.mxu0 0.0
        %1712 = vmatpush1.msra.mxu0 0.0
        %1713 = vmatprep.subr.mxu0 0.0
        %1714 = vmatpush1.msra.mxu0 0.0
        %1715 = vmatprep.subr.mxu0 0.0
        %1716 = vmatpush1.msra.mxu0 0.0
        %1717 = vmatprep.subr.mxu0 0.0
        %1718 = vmatpush1.msra.mxu0 0.0
        %1719 = vmatprep.subr.mxu0 0.0
        %1720 = vmatpush1.msra.mxu0 0.0
        %1721 = vmatprep.subr.mxu0 0.0
        %1722 = vmatpush1.msra.mxu0 0.0
        %1723 = vmatprep.subr.mxu0 0.0
        %1724 = vmatpush1.msra.mxu0 0.0
        %1725 = vmatprep.subr.mxu0 0.0
        %1726 = vmatpush1.msra.mxu0 0.0
        %1727 = vmatprep.subr.mxu0 0.0
        %1728 = vmatpush1.msra.mxu0 0.0
        %1729 = vmatprep.mubr.f32.mxu0 0.0
        %1730 = vmatmul.mubr.f32.gmra.mrb[0].mxu0 %v1663
        %v1731 = vpop.f32.mrb[0].mxu0
        %v1732 = vadd.f32 0.0, %v1731
        %v1733 = vpop.f32.mrb[0].mxu0
        %1734 = vdwg.mxu0
        %1736 = vrot.lane.b32.xlu0 %v1732, 16
        %v1737 = vpop.permute.xlu0 %1736
        %1739 = vst.msk [vmem:[#allocation2] sm:$0xff] %vm1012, %v1737
        %v1740 = vld [vmem:[#allocation2] sm:$0xff]
        %v1741 = vpack.c.bf16 %v1740, %v1740
        %s1742 = scalar_lea.vmem %s6, 16
        %v1743 = vld [vmem:[%s1742] sm:$0xf]
        %v1744 = vld [vmem:[%s1742 + $0x4] sm:$0xf]
        %v1745 = vld [vmem:[%s1742 + $0x8] sm:$0xf]
        %v1746 = vld [vmem:[%s1742 + $0xc] sm:$0xf]
        %s1747 = scalar_lea.vmem %s7, 1
        %v1748 = vld [vmem:[%s1747] sm:$0x1]
        %v1750 = vlaneseq
        %v1751 = vshrl.u32 %v1750, 7
        %v1752 = vsub.s32 0, %v1751
        %v1753 = vrot.slane %v1748, %v1752
        %v1759 = vunpack.c.l.b16 %v1743
        %v1760 = vunpack.c.l.b16 %v1744
        %v1761 = vunpack.c.l.b16 %v1745
        %v1762 = vunpack.c.l.b16 %v1746
        %v1763 = vpack.c.b16 %v1760, %v1759
        %v1764 = vpack.c.b16 %v1762, %v1761
        %v1768 = vsel %vm576, %v1741, 0
        %1770 = vmatprep.subr.bf16.mxu0 0
        %1771 = vmatpush1.bf16.msra.mxu0 %v1763
        %1772 = vmatprep.subr.bf16.mxu0 0
        %1773 = vmatpush1.bf16.msra.mxu0 %v1764
        %1774 = vmatprep.subr.bf16.mxu0 0
        %1775 = vmatpush1.bf16.msra.mxu0 0
        %1776 = vmatprep.subr.bf16.mxu0 0
        %1777 = vmatpush1.bf16.msra.mxu0 0
        %1778 = vmatprep.subr.bf16.mxu0 0
        %1779 = vmatpush1.bf16.msra.mxu0 0
        %1780 = vmatprep.subr.bf16.mxu0 0
        %1781 = vmatpush1.bf16.msra.mxu0 0
        %1782 = vmatprep.subr.bf16.mxu0 0
        %1783 = vmatpush1.bf16.msra.mxu0 0
        %1784 = vmatprep.subr.bf16.mxu0 0
        %1785 = vmatpush1.bf16.msra.mxu0 0
        %1786 = vmatprep.subr.bf16.mxu0 0
        %1787 = vmatpush1.bf16.msra.mxu0 0
        %1788 = vmatprep.subr.bf16.mxu0 0
        %1789 = vmatpush1.bf16.msra.mxu0 0
        %1790 = vmatprep.subr.bf16.mxu0 0
        %1791 = vmatpush1.bf16.msra.mxu0 0
        %1792 = vmatprep.subr.bf16.mxu0 0
        %1793 = vmatpush1.bf16.msra.mxu0 0
        %1794 = vmatprep.subr.bf16.mxu0 0
        %1795 = vmatpush1.bf16.msra.mxu0 0
        %1796 = vmatprep.subr.bf16.mxu0 0
        %1797 = vmatpush1.bf16.msra.mxu0 0
        %1798 = vmatprep.subr.bf16.mxu0 0
        %1799 = vmatpush1.bf16.msra.mxu0 0
        %1800 = vmatprep.subr.bf16.mxu0 0
        %1801 = vmatpush1.bf16.msra.mxu0 0
        %1802 = vmatprep.mubr.bf16.mxu0 0
        %1803 = vmatmul.mubr.bf16.gmra.mrb[0].mxu0 %v1768
        %v1804 = vpop.f32.mrb[0].mxu0
        %v1805 = vadd.f32 %v1753, %v1804
        %v1806 = vpop.f32.mrb[0].mxu0
        %v1807 = vpop.f32.mrb[0].mxu0
        %v1808 = vpop.f32.mrb[0].mxu0
        %1809 = vdwg.mxu0
        %v1810 = vadd.f32 %v1300, %v1805
        %s1811 = scalar_lea.vmem %s8, 1
        %v1812 = vld [vmem:[%s1811] sm:$0x1]
        %s1813 = scalar_lea.vmem %s9, 1
        %v1814 = vld [vmem:[%s1813] sm:$0x1]
        %v1815 = vsel %vm576, %v1810, 0.0
        %1816 = vadd.xlane.f32.xlu0 %v1815
        %v1817 = vpop.xlane.xlu0 %1816
        %v1818 = vmul.f32 %v1817, %v580
        %v1819 = vsub.f32 %v1810, %v1818
        %v1820 = vmul.f32 %v1819, %v1819
        %v1821 = vsel %vm576, %v1820, 0.0
        %1822 = vadd.xlane.f32.xlu0 %v1821
        %v1823 = vpop.xlane.xlu0 %1822
        %v1824 = vmul.f32 %v1823, %v580
        %v1825 = vadd.f32 %v1824, 1e-05
        %v1826 = vrsqrt.pop %v1825
        %v1827 = vmul.f32 %v1819, %v1826
        %v1829 = vlaneseq
        %v1830 = vshrl.u32 %v1829, 7
        %v1831 = vsub.s32 0, %v1830
        %v1832 = vrot.slane %v1812, %v1831
        %v1834 = vmul.f32 %v1827, %v1832
        %v1836 = vlaneseq
        %v1837 = vshrl.u32 %v1836, 7
        %v1838 = vsub.s32 0, %v1837
        %v1839 = vrot.slane %v1814, %v1838
        %v1841 = vadd.f32 %v1834, %v1839
        %v1842 = vpack.c.bf16 %v1841, %v1841
        %s1843 = scalar_lea.vmem %s10, 16
        %v1844 = vld [vmem:[%s1843] sm:$0xf]
        %v1845 = vld [vmem:[%s1843 + $0x4] sm:$0xf]
        %v1846 = vld [vmem:[%s1843 + $0x8] sm:$0xf]
        %v1847 = vld [vmem:[%s1843 + $0xc] sm:$0xf]
        %s1848 = scalar_lea.vmem %s11, 1
        %v1849 = vld [vmem:[%s1848] sm:$0x1]
        %v1851 = vlaneseq
        %v1852 = vshrl.u32 %v1851, 7
        %v1853 = vsub.s32 0, %v1852
        %v1854 = vrot.slane %v1849, %v1853
        %v1860 = vunpack.c.l.b16 %v1844
        %v1861 = vunpack.c.l.b16 %v1845
        %v1862 = vunpack.c.l.b16 %v1846
        %v1863 = vunpack.c.l.b16 %v1847
        %v1864 = vpack.c.b16 %v1861, %v1860
        %v1865 = vpack.c.b16 %v1863, %v1862
        %v1869 = vsel %vm576, %v1842, 0
        %1871 = vmatprep.subr.bf16.mxu0 0
        %1872 = vmatpush1.bf16.msra.mxu0 %v1864
        %1873 = vmatprep.subr.bf16.mxu0 0
        %1874 = vmatpush1.bf16.msra.mxu0 %v1865
        %1875 = vmatprep.subr.bf16.mxu0 0
        %1876 = vmatpush1.bf16.msra.mxu0 0
        %1877 = vmatprep.subr.bf16.mxu0 0
        %1878 = vmatpush1.bf16.msra.mxu0 0
        %1879 = vmatprep.subr.bf16.mxu0 0
        %1880 = vmatpush1.bf16.msra.mxu0 0
        %1881 = vmatprep.subr.bf16.mxu0 0
        %1882 = vmatpush1.bf16.msra.mxu0 0
        %1883 = vmatprep.subr.bf16.mxu0 0
        %1884 = vmatpush1.bf16.msra.mxu0 0
        %1885 = vmatprep.subr.bf16.mxu0 0
        %1886 = vmatpush1.bf16.msra.mxu0 0
        %1887 = vmatprep.subr.bf16.mxu0 0
        %1888 = vmatpush1.bf16.msra.mxu0 0
        %1889 = vmatprep.subr.bf16.mxu0 0
        %1890 = vmatpush1.bf16.msra.mxu0 0
        %1891 = vmatprep.subr.bf16.mxu0 0
        %1892 = vmatpush1.bf16.msra.mxu0 0
        %1893 = vmatprep.subr.bf16.mxu0 0
        %1894 = vmatpush1.bf16.msra.mxu0 0
        %1895 = vmatprep.subr.bf16.mxu0 0
        %1896 = vmatpush1.bf16.msra.mxu0 0
        %1897 = vmatprep.subr.bf16.mxu0 0
        %1898 = vmatpush1.bf16.msra.mxu0 0
        %1899 = vmatprep.subr.bf16.mxu0 0
        %1900 = vmatpush1.bf16.msra.mxu0 0
        %1901 = vmatprep.subr.bf16.mxu0 0
        %1902 = vmatpush1.bf16.msra.mxu0 0
        %1903 = vmatprep.mubr.bf16.mxu0 0
        %1904 = vmatmul.mubr.bf16.gmra.mrb[0].mxu0 %v1869
        %v1905 = vpop.f32.mrb[0].mxu0
        %v1906 = vadd.f32 %v1854, %v1905
        %v1907 = vpop.f32.mrb[0].mxu0
        %v1908 = vpop.f32.mrb[0].mxu0
        %v1909 = vpop.f32.mrb[0].mxu0
        %1910 = vdwg.mxu0
        %v1911 = vmul.f32 %v1906, 0.5
        %v1912 = vmul.f32 %v1906, %v1906
        %v1913 = vmul.f32 %v1906, %v1912
        %v1914 = vmul.f32 %v1913, 0.044715
        %v1915 = vadd.f32 %v1906, %v1914
        %v1916 = vmul.f32 %v1915, 0.7978846
        %v1917 = vtanh.pop %v1916
        %v1918 = vadd.f32 %v1917, 1.0
        %v1919 = vmul.f32 %v1911, %v1918
        %v1920 = vpack.c.bf16 %v1919, %v1919
        %s1921 = scalar_lea.vmem %s12, 64
        %v1922 = vld [vmem:[%s1921] sm:$0xf]
        %v1923 = vld [vmem:[%s1921 + $0x4] sm:$0xf]
        %v1924 = vld [vmem:[%s1921 + $0x8] sm:$0xf]
        %v1925 = vld [vmem:[%s1921 + $0xc] sm:$0xf]
        %v1926 = vld [vmem:[%s1921 + $0x10] sm:$0xf]
        %v1927 = vld [vmem:[%s1921 + $0x14] sm:$0xf]
        %v1928 = vld [vmem:[%s1921 + $0x18] sm:$0xf]
        %v1929 = vld [vmem:[%s1921 + $0x1c] sm:$0xf]
        %v1930 = vld [vmem:[%s1921 + $0x20] sm:$0xf]
        %v1931 = vld [vmem:[%s1921 + $0x24] sm:$0xf]
        %v1932 = vld [vmem:[%s1921 + $0x28] sm:$0xf]
        %v1933 = vld [vmem:[%s1921 + $0x2c] sm:$0xf]
        %v1934 = vld [vmem:[%s1921 + $0x30] sm:$0xf]
        %v1935 = vld [vmem:[%s1921 + $0x34] sm:$0xf]
        %v1936 = vld [vmem:[%s1921 + $0x38] sm:$0xf]
        %v1937 = vld [vmem:[%s1921 + $0x3c] sm:$0xf]
        %s1938 = scalar_lea.vmem %s13, 1
        %v1939 = vld [vmem:[%s1938] sm:$0x1]
        %v1941 = vlaneseq
        %v1942 = vshrl.u32 %v1941, 7
        %v1943 = vsub.s32 0, %v1942
        %v1944 = vrot.slane %v1939, %v1943
        %v1962 = vunpack.c.l.b16 %v1922
        %v1963 = vunpack.c.l.b16 %v1923
        %v1964 = vunpack.c.l.b16 %v1924
        %v1965 = vunpack.c.l.b16 %v1925
        %v1966 = vunpack.c.l.b16 %v1926
        %v1967 = vunpack.c.l.b16 %v1927
        %v1968 = vunpack.c.l.b16 %v1928
        %v1969 = vunpack.c.l.b16 %v1929
        %v1970 = vunpack.c.l.b16 %v1930
        %v1971 = vunpack.c.l.b16 %v1931
        %v1972 = vunpack.c.l.b16 %v1932
        %v1973 = vunpack.c.l.b16 %v1933
        %v1974 = vunpack.c.l.b16 %v1934
        %v1975 = vunpack.c.l.b16 %v1935
        %v1976 = vunpack.c.l.b16 %v1936
        %v1977 = vunpack.c.l.b16 %v1937
        %v1978 = vpack.c.b16 %v1963, %v1962
        %v1979 = vpack.c.b16 %v1965, %v1964
        %v1980 = vpack.c.b16 %v1967, %v1966
        %v1981 = vpack.c.b16 %v1969, %v1968
        %v1982 = vpack.c.b16 %v1971, %v1970
        %v1983 = vpack.c.b16 %v1973, %v1972
        %v1984 = vpack.c.b16 %v1975, %v1974
        %v1985 = vpack.c.b16 %v1977, %v1976
        %1994 = vmatprep.subr.bf16.mxu0 0
        %1995 = vmatpush1.bf16.msra.mxu0 %v1978
        %1996 = vmatprep.subr.bf16.mxu0 0
        %1997 = vmatpush1.bf16.msra.mxu0 %v1979
        %1998 = vmatprep.subr.bf16.mxu0 0
        %1999 = vmatpush1.bf16.msra.mxu0 %v1980
        %2000 = vmatprep.subr.bf16.mxu0 0
        %2001 = vmatpush1.bf16.msra.mxu0 %v1981
        %2002 = vmatprep.subr.bf16.mxu0 0
        %2003 = vmatpush1.bf16.msra.mxu0 %v1982
        %2004 = vmatprep.subr.bf16.mxu0 0
        %2005 = vmatpush1.bf16.msra.mxu0 %v1983
        %2006 = vmatprep.subr.bf16.mxu0 0
        %2007 = vmatpush1.bf16.msra.mxu0 %v1984
        %2008 = vmatprep.subr.bf16.mxu0 0
        %2009 = vmatpush1.bf16.msra.mxu0 %v1985
        %2010 = vmatprep.subr.bf16.mxu0 0
        %2011 = vmatpush1.bf16.msra.mxu0 0
        %2012 = vmatprep.subr.bf16.mxu0 0
        %2013 = vmatpush1.bf16.msra.mxu0 0
        %2014 = vmatprep.subr.bf16.mxu0 0
        %2015 = vmatpush1.bf16.msra.mxu0 0
        %2016 = vmatprep.subr.bf16.mxu0 0
        %2017 = vmatpush1.bf16.msra.mxu0 0
        %2018 = vmatprep.subr.bf16.mxu0 0
        %2019 = vmatpush1.bf16.msra.mxu0 0
        %2020 = vmatprep.subr.bf16.mxu0 0
        %2021 = vmatpush1.bf16.msra.mxu0 0
        %2022 = vmatprep.subr.bf16.mxu0 0
        %2023 = vmatpush1.bf16.msra.mxu0 0
        %2024 = vmatprep.subr.bf16.mxu0 0
        %2025 = vmatpush1.bf16.msra.mxu0 0
        %2026 = vmatprep.mubr.bf16.mxu0 0
        %2027 = vmatmul.mubr.bf16.gmra.mrb[0].mxu0 %v1920
        %v2028 = vpop.f32.mrb[0].mxu0
        %v2029 = vadd.f32 %v1944, %v2028
        %v2030 = vpop.f32.mrb[0].mxu0
        %v2031 = vpop.f32.mrb[0].mxu0
        %v2032 = vpop.f32.mrb[0].mxu0
        %2033 = vdwg.mxu0
        %v2034 = vadd.f32 %v1810, %v2029
        %s2035 = scalar_lea.vmem %s2, 2
        %v2036 = vld [vmem:[%s2035] sm:$0x1]
        %s2037 = scalar_lea.vmem %s3, 2
        %v2038 = vld [vmem:[%s2037] sm:$0x1]
        %v2039 = vsel %vm576, %v2034, 0.0
        %2040 = vadd.xlane.f32.xlu0 %v2039
        %v2041 = vpop.xlane.xlu0 %2040
        %v2042 = vmul.f32 %v2041, %v580
        %v2043 = vsub.f32 %v2034, %v2042
        %v2044 = vmul.f32 %v2043, %v2043
        %v2045 = vsel %vm576, %v2044, 0.0
        %2046 = vadd.xlane.f32.xlu0 %v2045
        %v2047 = vpop.xlane.xlu0 %2046
        %v2048 = vmul.f32 %v2047, %v580
        %v2049 = vadd.f32 %v2048, 1e-05
        %v2050 = vrsqrt.pop %v2049
        %v2051 = vmul.f32 %v2043, %v2050
        %v2053 = vlaneseq
        %v2054 = vshrl.u32 %v2053, 7
        %v2055 = vsub.s32 0, %v2054
        %v2056 = vrot.slane %v2036, %v2055
        %v2058 = vmul.f32 %v2051, %v2056
        %v2060 = vlaneseq
        %v2061 = vshrl.u32 %v2060, 7
        %v2062 = vsub.s32 0, %v2061
        %v2063 = vrot.slane %v2038, %v2062
        %v2065 = vadd.f32 %v2058, %v2063
        %v2066 = vpack.c.bf16 %v2065, %v2065
        %s2067 = scalar_lea.vmem %s4, 32
        %v2068 = vld [vmem:[%s2067] sm:$0xf]
        %v2069 = vld [vmem:[%s2067 + $0x4] sm:$0xf]
        %v2070 = vld [vmem:[%s2067 + $0x8] sm:$0xf]
        %v2071 = vld [vmem:[%s2067 + $0xc] sm:$0xf]
        %s2072 = scalar_lea.vmem %s5, 2
        %v2073 = vld [vmem:[%s2072] sm:$0x1]
        %v2075 = vlaneseq
        %v2076 = vshrl.u32 %v2075, 7
        %v2077 = vsub.s32 0, %v2076
        %v2078 = vrot.slane %v2073, %v2077
        %v2084 = vunpack.c.l.b16 %v2068
        %v2085 = vunpack.c.l.b16 %v2069
        %v2086 = vunpack.c.l.b16 %v2070
        %v2087 = vunpack.c.l.b16 %v2071
        %v2088 = vpack.c.b16 %v2085, %v2084
        %v2089 = vpack.c.b16 %v2087, %v2086
        %v2093 = vsel %vm576, %v2066, 0
        %2095 = vmatprep.subr.bf16.mxu0 0
        %2096 = vmatpush1.bf16.msra.mxu0 %v2088
        %2097 = vmatprep.subr.bf16.mxu0 0
        %2098 = vmatpush1.bf16.msra.mxu0 %v2089
        %2099 = vmatprep.subr.bf16.mxu0 0
        %2100 = vmatpush1.bf16.msra.mxu0 0
        %2101 = vmatprep.subr.bf16.mxu0 0
        %2102 = vmatpush1.bf16.msra.mxu0 0
        %2103 = vmatprep.subr.bf16.mxu0 0
        %2104 = vmatpush1.bf16.msra.mxu0 0
        %2105 = vmatprep.subr.bf16.mxu0 0
        %2106 = vmatpush1.bf16.msra.mxu0 0
        %2107 = vmatprep.subr.bf16.mxu0 0
        %2108 = vmatpush1.bf16.msra.mxu0 0
        %2109 = vmatprep.subr.bf16.mxu0 0
        %2110 = vmatpush1.bf16.msra.mxu0 0
        %2111 = vmatprep.subr.bf16.mxu0 0
        %2112 = vmatpush1.bf16.msra.mxu0 0
        %2113 = vmatprep.subr.bf16.mxu0 0
        %2114 = vmatpush1.bf16.msra.mxu0 0
        %2115 = vmatprep.subr.bf16.mxu0 0
        %2116 = vmatpush1.bf16.msra.mxu0 0
        %2117 = vmatprep.subr.bf16.mxu0 0
        %2118 = vmatpush1.bf16.msra.mxu0 0
        %2119 = vmatprep.subr.bf16.mxu0 0
        %2120 = vmatpush1.bf16.msra.mxu0 0
        %2121 = vmatprep.subr.bf16.mxu0 0
        %2122 = vmatpush1.bf16.msra.mxu0 0
        %2123 = vmatprep.subr.bf16.mxu0 0
        %2124 = vmatpush1.bf16.msra.mxu0 0
        %2125 = vmatprep.subr.bf16.mxu0 0
        %2126 = vmatpush1.bf16.msra.mxu0 0
        %2127 = vmatprep.mubr.bf16.mxu0 0
        %2128 = vmatmul.mubr.bf16.gmra.mrb[0].mxu0 %v2093
        %v2129 = vpop.f32.mrb[0].mxu0
        %v2130 = vadd.f32 %v2078, %v2129
        %v2131 = vpop.f32.mrb[0].mxu0
        %v2132 = vpop.f32.mrb[0].mxu0
        %v2133 = vpop.f32.mrb[0].mxu0
        %2134 = vdwg.mxu0
        %2136 = vrot.lane.b32.xlu0 %v2130, 96
        %v2137 = vpop.permute.xlu0 %2136
        %v2138 = vsel %vm675, %v2130, 0
        %v2140 = vsel %vm675, %v2137, 0
        %2142 = vmatprep.subr.mxu0 0.0
        %2143 = vmatpush1.xpose.msra.mxu0 %v2140
        %2144 = vmatprep.subr.mxu0 0.0
        %2145 = vmatpush1.xpose.msra.mxu0 0.0
        %2146 = vmatprep.subr.mxu0 0.0
        %2147 = vmatpush1.xpose.msra.mxu0 0.0
        %2148 = vmatprep.subr.mxu0 0.0
        %2149 = vmatpush1.xpose.msra.mxu0 0.0
        %2150 = vmatprep.subr.mxu0 0.0
        %2151 = vmatpush1.xpose.msra.mxu0 0.0
        %2152 = vmatprep.subr.mxu0 0.0
        %2153 = vmatpush1.xpose.msra.mxu0 0.0
        %2154 = vmatprep.subr.mxu0 0.0
        %2155 = vmatpush1.xpose.msra.mxu0 0.0
        %2156 = vmatprep.subr.mxu0 0.0
        %2157 = vmatpush1.xpose.msra.mxu0 0.0
        %2158 = vmatprep.subr.mxu0 0.0
        %2159 = vmatpush1.xpose.msra.mxu0 0.0
        %2160 = vmatprep.subr.mxu0 0.0
        %2161 = vmatpush1.xpose.msra.mxu0 0.0
        %2162 = vmatprep.subr.mxu0 0.0
        %2163 = vmatpush1.xpose.msra.mxu0 0.0
        %2164 = vmatprep.subr.mxu0 0.0
        %2165 = vmatpush1.xpose.msra.mxu0 0.0
        %2166 = vmatprep.subr.mxu0 0.0
        %2167 = vmatpush1.xpose.msra.mxu0 0.0
        %2168 = vmatprep.subr.mxu0 0.0
        %2169 = vmatpush1.xpose.msra.mxu0 0.0
        %2170 = vmatprep.subr.mxu0 0.0
        %2171 = vmatpush1.xpose.msra.mxu0 0.0
        %2172 = vmatprep.subr.mxu0 0.0
        %2173 = vmatpush1.xpose.msra.mxu0 0.0
        %2174 = vmatprep.subr.mxu0 0.0
        %2175 = vmatpush1.xpose.msra.mxu0 0.0
        %2176 = vmatprep.subr.mxu0 0.0
        %2177 = vmatpush1.xpose.msra.mxu0 0.0
        %2178 = vmatprep.subr.mxu0 0.0
        %2179 = vmatpush1.xpose.msra.mxu0 0.0
        %2180 = vmatprep.subr.mxu0 0.0
        %2181 = vmatpush1.xpose.msra.mxu0 0.0
        %2182 = vmatprep.subr.mxu0 0.0
        %2183 = vmatpush1.xpose.msra.mxu0 0.0
        %2184 = vmatprep.subr.mxu0 0.0
        %2185 = vmatpush1.xpose.msra.mxu0 0.0
        %2186 = vmatprep.subr.mxu0 0.0
        %2187 = vmatpush1.xpose.msra.mxu0 0.0
        %2188 = vmatprep.subr.mxu0 0.0
        %2189 = vmatpush1.xpose.msra.mxu0 0.0
        %2190 = vmatprep.subr.mxu0 0.0
        %2191 = vmatpush1.xpose.msra.mxu0 0.0
        %2192 = vmatprep.subr.mxu0 0.0
        %2193 = vmatpush1.xpose.msra.mxu0 0.0
        %2194 = vmatprep.subr.mxu0 0.0
        %2195 = vmatpush1.xpose.msra.mxu0 0.0
        %2196 = vmatprep.subr.mxu0 0.0
        %2197 = vmatpush1.xpose.msra.mxu0 0.0
        %2198 = vmatprep.subr.mxu0 0.0
        %2199 = vmatpush1.xpose.msra.mxu0 0.0
        %2200 = vmatprep.subr.mxu0 0.0
        %2201 = vmatpush1.xpose.msra.mxu0 0.0
        %2202 = vmatprep.subr.mxu0 0.0
        %2203 = vmatpush1.xpose.msra.mxu0 0.0
        %2204 = vmatprep.subr.mxu0 0.0
        %2205 = vmatpush1.xpose.msra.mxu0 0.0
        %2206 = vmatprep.mubr.f32.mxu0 0.0
        %2207 = vmatmul.mubr.f32.gmra.mrb[0].mxu0 %v2138
        %v2208 = vpop.f32.mrb[0].mxu0
        %v2209 = vadd.f32 0.0, %v2208
        %v2210 = vpop.f32.mrb[0].mxu0
        %2211 = vdwg.mxu0
        %v2212 = vmul.f32 %v2209, 0.25
        %v2213 = vadd.f32 %v2212, %v573
        %v2214 = vsel %vm752, %v2213, -inf
        %2215 = vmax.xlane.f32.xlu0 %v2214
        %v2216 = vpop.xlane.xlu0 %2215
        %v2217 = vsub.f32 %v2213, %v2216
        %v2218 = vmul.f32 %v2217, 1.442695
        %v2219 = vpow.pop %v2218
        %v2220 = vsel %vm752, %v2219, 0.0
        %2221 = vadd.xlane.f32.xlu0 %v2220
        %v2222 = vpop.xlane.xlu0 %2221
        %v2223 = vrcp.pop %v2222
        %v2224 = vmul.f32 %v2219, %v2223
        %2225 = vrot.lane.b32.xlu0 %v2130, 64
        %v2226 = vpop.permute.xlu0 %2225
        %v2229 = vsel %vm752, %v2224, 0
        %2231 = vmatprep.subr.mxu0 0.0
        %2232 = vmatpush1.msra.mxu0 %v2226
        %2233 = vmatprep.subr.mxu0 0.0
        %2234 = vmatpush1.msra.mxu0 0.0
        %2235 = vmatprep.subr.mxu0 0.0
        %2236 = vmatpush1.msra.mxu0 0.0
        %2237 = vmatprep.subr.mxu0 0.0
        %2238 = vmatpush1.msra.mxu0 0.0
        %2239 = vmatprep.subr.mxu0 0.0
        %2240 = vmatpush1.msra.mxu0 0.0
        %2241 = vmatprep.subr.mxu0 0.0
        %2242 = vmatpush1.msra.mxu0 0.0
        %2243 = vmatprep.subr.mxu0 0.0
        %2244 = vmatpush1.msra.mxu0 0.0
        %2245 = vmatprep.subr.mxu0 0.0
        %2246 = vmatpush1.msra.mxu0 0.0
        %2247 = vmatprep.subr.mxu0 0.0
        %2248 = vmatpush1.msra.mxu0 0.0
        %2249 = vmatprep.subr.mxu0 0.0
        %2250 = vmatpush1.msra.mxu0 0.0
        %2251 = vmatprep.subr.mxu0 0.0
        %2252 = vmatpush1.msra.mxu0 0.0
        %2253 = vmatprep.subr.mxu0 0.0
        %2254 = vmatpush1.msra.mxu0 0.0
        %2255 = vmatprep.subr.mxu0 0.0
        %2256 = vmatpush1.msra.mxu0 0.0
        %2257 = vmatprep.subr.mxu0 0.0
        %2258 = vmatpush1.msra.mxu0 0.0
        %2259 = vmatprep.subr.mxu0 0.0
        %2260 = vmatpush1.msra.mxu0 0.0
        %2261 = vmatprep.subr.mxu0 0.0
        %2262 = vmatpush1.msra.mxu0 0.0
        %2263 = vmatprep.subr.mxu0 0.0
        %2264 = vmatpush1.msra.mxu0 0.0
        %2265 = vmatprep.subr.mxu0 0.0
        %2266 = vmatpush1.msra.mxu0 0.0
        %2267 = vmatprep.subr.mxu0 0.0
        %2268 = vmatpush1.msra.mxu0 0.0
        %2269 = vmatprep.subr.mxu0 0.0
        %2270 = vmatpush1.msra.mxu0 0.0
        %2271 = vmatprep.subr.mxu0 0.0
        %2272 = vmatpush1.msra.mxu0 0.0
        %2273 = vmatprep.subr.mxu0 0.0
        %2274 = vmatpush1.msra.mxu0 0.0
        %2275 = vmatprep.subr.mxu0 0.0
        %2276 = vmatpush1.msra.mxu0 0.0
        %2277 = vmatprep.subr.mxu0 0.0
        %2278 = vmatpush1.msra.mxu0 0.0
        %2279 = vmatprep.subr.mxu0 0.0
        %2280 = vmatpush1.msra.mxu0 0.0
        %2281 = vmatprep.subr.mxu0 0.0
        %2282 = vmatpush1.msra.mxu0 0.0
        %2283 = vmatprep.subr.mxu0 0.0
        %2284 = vmatpush1.msra.mxu0 0.0
        %2285 = vmatprep.subr.mxu0 0.0
        %2286 = vmatpush1.msra.mxu0 0.0
        %2287 = vmatprep.subr.mxu0 0.0
        %2288 = vmatpush1.msra.mxu0 0.0
        %2289 = vmatprep.subr.mxu0 0.0
        %2290 = vmatpush1.msra.mxu0 0.0
        %2291 = vmatprep.subr.mxu0 0.0
        %2292 = vmatpush1.msra.mxu0 0.0
        %2293 = vmatprep.subr.mxu0 0.0
        %2294 = vmatpush1.msra.mxu0 0.0
        %2295 = vmatprep.mubr.f32.mxu0 0.0
        %2296 = vmatmul.mubr.f32.gmra.mrb[0].mxu0 %v2229
        %v2297 = vpop.f32.mrb[0].mxu0
        %v2298 = vadd.f32 0.0, %v2297
        %v2299 = vpop.f32.mrb[0].mxu0
        %2300 = vdwg.mxu0
        %2301 = vst.msk [vmem:[#allocation2] sm:$0xff] %vm675, %v2298
        %2302 = vrot.lane.b32.xlu0 %v2130, 112
        %v2303 = vpop.permute.xlu0 %2302
        %2304 = vrot.lane.b32.xlu0 %v2130, 80
        %v2305 = vpop.permute.xlu0 %2304
        %v2306 = vsel %vm675, %v2303, 0
        %v2308 = vsel %vm675, %v2305, 0
        %2310 = vmatprep.subr.mxu0 0.0
        %2311 = vmatpush1.xpose.msra.mxu0 %v2308
        %2312 = vmatprep.subr.mxu0 0.0
        %2313 = vmatpush1.xpose.msra.mxu0 0.0
        %2314 = vmatprep.subr.mxu0 0.0
        %2315 = vmatpush1.xpose.msra.mxu0 0.0
        %2316 = vmatprep.subr.mxu0 0.0
        %2317 = vmatpush1.xpose.msra.mxu0 0.0
        %2318 = vmatprep.subr.mxu0 0.0
        %2319 = vmatpush1.xpose.msra.mxu0 0.0
        %2320 = vmatprep.subr.mxu0 0.0
        %2321 = vmatpush1.xpose.msra.mxu0 0.0
        %2322 = vmatprep.subr.mxu0 0.0
        %2323 = vmatpush1.xpose.msra.mxu0 0.0
        %2324 = vmatprep.subr.mxu0 0.0
        %2325 = vmatpush1.xpose.msra.mxu0 0.0
        %2326 = vmatprep.subr.mxu0 0.0
        %2327 = vmatpush1.xpose.msra.mxu0 0.0
        %2328 = vmatprep.subr.mxu0 0.0
        %2329 = vmatpush1.xpose.msra.mxu0 0.0
        %2330 = vmatprep.subr.mxu0 0.0
        %2331 = vmatpush1.xpose.msra.mxu0 0.0
        %2332 = vmatprep.subr.mxu0 0.0
        %2333 = vmatpush1.xpose.msra.mxu0 0.0
        %2334 = vmatprep.subr.mxu0 0.0
        %2335 = vmatpush1.xpose.msra.mxu0 0.0
        %2336 = vmatprep.subr.mxu0 0.0
        %2337 = vmatpush1.xpose.msra.mxu0 0.0
        %2338 = vmatprep.subr.mxu0 0.0
        %2339 = vmatpush1.xpose.msra.mxu0 0.0
        %2340 = vmatprep.subr.mxu0 0.0
        %2341 = vmatpush1.xpose.msra.mxu0 0.0
        %2342 = vmatprep.subr.mxu0 0.0
        %2343 = vmatpush1.xpose.msra.mxu0 0.0
        %2344 = vmatprep.subr.mxu0 0.0
        %2345 = vmatpush1.xpose.msra.mxu0 0.0
        %2346 = vmatprep.subr.mxu0 0.0
        %2347 = vmatpush1.xpose.msra.mxu0 0.0
        %2348 = vmatprep.subr.mxu0 0.0
        %2349 = vmatpush1.xpose.msra.mxu0 0.0
        %2350 = vmatprep.subr.mxu0 0.0
        %2351 = vmatpush1.xpose.msra.mxu0 0.0
        %2352 = vmatprep.subr.mxu0 0.0
        %2353 = vmatpush1.xpose.msra.mxu0 0.0
        %2354 = vmatprep.subr.mxu0 0.0
        %2355 = vmatpush1.xpose.msra.mxu0 0.0
        %2356 = vmatprep.subr.mxu0 0.0
        %2357 = vmatpush1.xpose.msra.mxu0 0.0
        %2358 = vmatprep.subr.mxu0 0.0
        %2359 = vmatpush1.xpose.msra.mxu0 0.0
        %2360 = vmatprep.subr.mxu0 0.0
        %2361 = vmatpush1.xpose.msra.mxu0 0.0
        %2362 = vmatprep.subr.mxu0 0.0
        %2363 = vmatpush1.xpose.msra.mxu0 0.0
        %2364 = vmatprep.subr.mxu0 0.0
        %2365 = vmatpush1.xpose.msra.mxu0 0.0
        %2366 = vmatprep.subr.mxu0 0.0
        %2367 = vmatpush1.xpose.msra.mxu0 0.0
        %2368 = vmatprep.subr.mxu0 0.0
        %2369 = vmatpush1.xpose.msra.mxu0 0.0
        %2370 = vmatprep.subr.mxu0 0.0
        %2371 = vmatpush1.xpose.msra.mxu0 0.0
        %2372 = vmatprep.subr.mxu0 0.0
        %2373 = vmatpush1.xpose.msra.mxu0 0.0
        %2374 = vmatprep.mubr.f32.mxu0 0.0
        %2375 = vmatmul.mubr.f32.gmra.mrb[0].mxu0 %v2306
        %v2376 = vpop.f32.mrb[0].mxu0
        %v2377 = vadd.f32 0.0, %v2376
        %v2378 = vpop.f32.mrb[0].mxu0
        %2379 = vdwg.mxu0
        %v2380 = vmul.f32 %v2377, 0.25
        %v2381 = vadd.f32 %v2380, %v573
        %v2382 = vsel %vm752, %v2381, -inf
        %2383 = vmax.xlane.f32.xlu0 %v2382
        %v2384 = vpop.xlane.xlu0 %2383
        %v2385 = vsub.f32 %v2381, %v2384
        %v2386 = vmul.f32 %v2385, 1.442695
        %v2387 = vpow.pop %v2386
        %v2388 = vsel %vm752, %v2387, 0.0
        %2389 = vadd.xlane.f32.xlu0 %v2388
        %v2390 = vpop.xlane.xlu0 %2389
        %v2391 = vrcp.pop %v2390
        %v2392 = vmul.f32 %v2387, %v2391
        %2393 = vrot.lane.b32.xlu0 %v2130, 48
        %v2394 = vpop.permute.xlu0 %2393
        %v2397 = vsel %vm752, %v2392, 0
        %2399 = vmatprep.subr.mxu0 0.0
        %2400 = vmatpush1.msra.mxu0 %v2394
        %2401 = vmatprep.subr.mxu0 0.0
        %2402 = vmatpush1.msra.mxu0 0.0
        %2403 = vmatprep.subr.mxu0 0.0
        %2404 = vmatpush1.msra.mxu0 0.0
        %2405 = vmatprep.subr.mxu0 0.0
        %2406 = vmatpush1.msra.mxu0 0.0
        %2407 = vmatprep.subr.mxu0 0.0
        %2408 = vmatpush1.msra.mxu0 0.0
        %2409 = vmatprep.subr.mxu0 0.0
        %2410 = vmatpush1.msra.mxu0 0.0
        %2411 = vmatprep.subr.mxu0 0.0
        %2412 = vmatpush1.msra.mxu0 0.0
        %2413 = vmatprep.subr.mxu0 0.0
        %2414 = vmatpush1.msra.mxu0 0.0
        %2415 = vmatprep.subr.mxu0 0.0
        %2416 = vmatpush1.msra.mxu0 0.0
        %2417 = vmatprep.subr.mxu0 0.0
        %2418 = vmatpush1.msra.mxu0 0.0
        %2419 = vmatprep.subr.mxu0 0.0
        %2420 = vmatpush1.msra.mxu0 0.0
        %2421 = vmatprep.subr.mxu0 0.0
        %2422 = vmatpush1.msra.mxu0 0.0
        %2423 = vmatprep.subr.mxu0 0.0
        %2424 = vmatpush1.msra.mxu0 0.0
        %2425 = vmatprep.subr.mxu0 0.0
        %2426 = vmatpush1.msra.mxu0 0.0
        %2427 = vmatprep.subr.mxu0 0.0
        %2428 = vmatpush1.msra.mxu0 0.0
        %2429 = vmatprep.subr.mxu0 0.0
        %2430 = vmatpush1.msra.mxu0 0.0
        %2431 = vmatprep.subr.mxu0 0.0
        %2432 = vmatpush1.msra.mxu0 0.0
        %2433 = vmatprep.subr.mxu0 0.0
        %2434 = vmatpush1.msra.mxu0 0.0
        %2435 = vmatprep.subr.mxu0 0.0
        %2436 = vmatpush1.msra.mxu0 0.0
        %2437 = vmatprep.subr.mxu0 0.0
        %2438 = vmatpush1.msra.mxu0 0.0
        %2439 = vmatprep.subr.mxu0 0.0
        %2440 = vmatpush1.msra.mxu0 0.0
        %2441 = vmatprep.subr.mxu0 0.0
        %2442 = vmatpush1.msra.mxu0 0.0
        %2443 = vmatprep.subr.mxu0 0.0
        %2444 = vmatpush1.msra.mxu0 0.0
        %2445 = vmatprep.subr.mxu0 0.0
        %2446 = vmatpush1.msra.mxu0 0.0
        %2447 = vmatprep.subr.mxu0 0.0
        %2448 = vmatpush1.msra.mxu0 0.0
        %2449 = vmatprep.subr.mxu0 0.0
        %2450 = vmatpush1.msra.mxu0 0.0
        %2451 = vmatprep.subr.mxu0 0.0
        %2452 = vmatpush1.msra.mxu0 0.0
        %2453 = vmatprep.subr.mxu0 0.0
        %2454 = vmatpush1.msra.mxu0 0.0
        %2455 = vmatprep.subr.mxu0 0.0
        %2456 = vmatpush1.msra.mxu0 0.0
        %2457 = vmatprep.subr.mxu0 0.0
        %2458 = vmatpush1.msra.mxu0 0.0
        %2459 = vmatprep.subr.mxu0 0.0
        %2460 = vmatpush1.msra.mxu0 0.0
        %2461 = vmatprep.subr.mxu0 0.0
        %2462 = vmatpush1.msra.mxu0 0.0
        %2463 = vmatprep.mubr.f32.mxu0 0.0
        %2464 = vmatmul.mubr.f32.gmra.mrb[0].mxu0 %v2397
        %v2465 = vpop.f32.mrb[0].mxu0
        %v2466 = vadd.f32 0.0, %v2465
        %v2467 = vpop.f32.mrb[0].mxu0
        %2468 = vdwg.mxu0
        %2470 = vrot.lane.b32.xlu0 %v2466, 16
        %v2471 = vpop.permute.xlu0 %2470
        %2473 = vst.msk [vmem:[#allocation2] sm:$0xff] %vm1012, %v2471
        %v2474 = vld [vmem:[#allocation2] sm:$0xff]
        %v2475 = vpack.c.bf16 %v2474, %v2474
        %s2476 = scalar_lea.vmem %s6, 32
        %v2477 = vld [vmem:[%s2476] sm:$0xf]
        %v2478 = vld [vmem:[%s2476 + $0x4] sm:$0xf]
        %v2479 = vld [vmem:[%s2476 + $0x8] sm:$0xf]
        %v2480 = vld [vmem:[%s2476 + $0xc] sm:$0xf]
        %s2481 = scalar_lea.vmem %s7, 2
        %v2482 = vld [vmem:[%s2481] sm:$0x1]
        %v2484 = vlaneseq
        %v2485 = vshrl.u32 %v2484, 7
        %v2486 = vsub.s32 0, %v2485
        %v2487 = vrot.slane %v2482, %v2486
        %v2493 = vunpack.c.l.b16 %v2477
        %v2494 = vunpack.c.l.b16 %v2478
        %v2495 = vunpack.c.l.b16 %v2479
        %v2496 = vunpack.c.l.b16 %v2480
        %v2497 = vpack.c.b16 %v2494, %v2493
        %v2498 = vpack.c.b16 %v2496, %v2495
        %v2502 = vsel %vm576, %v2475, 0
        %2504 = vmatprep.subr.bf16.mxu0 0
        %2505 = vmatpush1.bf16.msra.mxu0 %v2497
        %2506 = vmatprep.subr.bf16.mxu0 0
        %2507 = vmatpush1.bf16.msra.mxu0 %v2498
        %2508 = vmatprep.subr.bf16.mxu0 0
        %2509 = vmatpush1.bf16.msra.mxu0 0
        %2510 = vmatprep.subr.bf16.mxu0 0
        %2511 = vmatpush1.bf16.msra.mxu0 0
        %2512 = vmatprep.subr.bf16.mxu0 0
        %2513 = vmatpush1.bf16.msra.mxu0 0
        %2514 = vmatprep.subr.bf16.mxu0 0
        %2515 = vmatpush1.bf16.msra.mxu0 0
        %2516 = vmatprep.subr.bf16.mxu0 0
        %2517 = vmatpush1.bf16.msra.mxu0 0
        %2518 = vmatprep.subr.bf16.mxu0 0
        %2519 = vmatpush1.bf16.msra.mxu0 0
        %2520 = vmatprep.subr.bf16.mxu0 0
        %2521 = vmatpush1.bf16.msra.mxu0 0
        %2522 = vmatprep.subr.bf16.mxu0 0
        %2523 = vmatpush1.bf16.msra.mxu0 0
        %2524 = vmatprep.subr.bf16.mxu0 0
        %2525 = vmatpush1.bf16.msra.mxu0 0
        %2526 = vmatprep.subr.bf16.mxu0 0
        %2527 = vmatpush1.bf16.msra.mxu0 0
        %2528 = vmatprep.subr.bf16.mxu0 0
        %2529 = vmatpush1.bf16.msra.mxu0 0
        %2530 = vmatprep.subr.bf16.mxu0 0
        %2531 = vmatpush1.bf16.msra.mxu0 0
        %2532 = vmatprep.subr.bf16.mxu0 0
        %2533 = vmatpush1.bf16.msra.mxu0 0
        %2534 = vmatprep.subr.bf16.mxu0 0
        %2535 = vmatpush1.bf16.msra.mxu0 0
        %2536 = vmatprep.mubr.bf16.mxu0 0
        %2537 = vmatmul.mubr.bf16.gmra.mrb[0].mxu0 %v2502
        %v2538 = vpop.f32.mrb[0].mxu0
        %v2539 = vadd.f32 %v2487, %v2538
        %v2540 = vpop.f32.mrb[0].mxu0
        %v2541 = vpop.f32.mrb[0].mxu0
        %v2542 = vpop.f32.mrb[0].mxu0
        %2543 = vdwg.mxu0
        %v2544 = vadd.f32 %v2034, %v2539
        %s2545 = scalar_lea.vmem %s8, 2
        %v2546 = vld [vmem:[%s2545] sm:$0x1]
        %s2547 = scalar_lea.vmem %s9, 2
        %v2548 = vld [vmem:[%s2547] sm:$0x1]
        %v2549 = vsel %vm576, %v2544, 0.0
        %2550 = vadd.xlane.f32.xlu0 %v2549
        %v2551 = vpop.xlane.xlu0 %2550
        %v2552 = vmul.f32 %v2551, %v580
        %v2553 = vsub.f32 %v2544, %v2552
        %v2554 = vmul.f32 %v2553, %v2553
        %v2555 = vsel %vm576, %v2554, 0.0
        %2556 = vadd.xlane.f32.xlu0 %v2555
        %v2557 = vpop.xlane.xlu0 %2556
        %v2558 = vmul.f32 %v2557, %v580
        %v2559 = vadd.f32 %v2558, 1e-05
        %v2560 = vrsqrt.pop %v2559
        %v2561 = vmul.f32 %v2553, %v2560
        %v2563 = vlaneseq
        %v2564 = vshrl.u32 %v2563, 7
        %v2565 = vsub.s32 0, %v2564
        %v2566 = vrot.slane %v2546, %v2565
        %v2568 = vmul.f32 %v2561, %v2566
        %v2570 = vlaneseq
        %v2571 = vshrl.u32 %v2570, 7
        %v2572 = vsub.s32 0, %v2571
        %v2573 = vrot.slane %v2548, %v2572
        %v2575 = vadd.f32 %v2568, %v2573
        %v2576 = vpack.c.bf16 %v2575, %v2575
        %s2577 = scalar_lea.vmem %s10, 32
        %v2578 = vld [vmem:[%s2577] sm:$0xf]
        %v2579 = vld [vmem:[%s2577 + $0x4] sm:$0xf]
        %v2580 = vld [vmem:[%s2577 + $0x8] sm:$0xf]
        %v2581 = vld [vmem:[%s2577 + $0xc] sm:$0xf]
        %s2582 = scalar_lea.vmem %s11, 2
        %v2583 = vld [vmem:[%s2582] sm:$0x1]
        %v2585 = vlaneseq
        %v2586 = vshrl.u32 %v2585, 7
        %v2587 = vsub.s32 0, %v2586
        %v2588 = vrot.slane %v2583, %v2587
        %v2594 = vunpack.c.l.b16 %v2578
        %v2595 = vunpack.c.l.b16 %v2579
        %v2596 = vunpack.c.l.b16 %v2580
        %v2597 = vunpack.c.l.b16 %v2581
        %v2598 = vpack.c.b16 %v2595, %v2594
        %v2599 = vpack.c.b16 %v2597, %v2596
        %v2603 = vsel %vm576, %v2576, 0
        %2605 = vmatprep.subr.bf16.mxu0 0
        %2606 = vmatpush1.bf16.msra.mxu0 %v2598
        %2607 = vmatprep.subr.bf16.mxu0 0
        %2608 = vmatpush1.bf16.msra.mxu0 %v2599
        %2609 = vmatprep.subr.bf16.mxu0 0
        %2610 = vmatpush1.bf16.msra.mxu0 0
        %2611 = vmatprep.subr.bf16.mxu0 0
        %2612 = vmatpush1.bf16.msra.mxu0 0
        %2613 = vmatprep.subr.bf16.mxu0 0
        %2614 = vmatpush1.bf16.msra.mxu0 0
        %2615 = vmatprep.subr.bf16.mxu0 0
        %2616 = vmatpush1.bf16.msra.mxu0 0
        %2617 = vmatprep.subr.bf16.mxu0 0
        %2618 = vmatpush1.bf16.msra.mxu0 0
        %2619 = vmatprep.subr.bf16.mxu0 0
        %2620 = vmatpush1.bf16.msra.mxu0 0
        %2621 = vmatprep.subr.bf16.mxu0 0
        %2622 = vmatpush1.bf16.msra.mxu0 0
        %2623 = vmatprep.subr.bf16.mxu0 0
        %2624 = vmatpush1.bf16.msra.mxu0 0
        %2625 = vmatprep.subr.bf16.mxu0 0
        %2626 = vmatpush1.bf16.msra.mxu0 0
        %2627 = vmatprep.subr.bf16.mxu0 0
        %2628 = vmatpush1.bf16.msra.mxu0 0
        %2629 = vmatprep.subr.bf16.mxu0 0
        %2630 = vmatpush1.bf16.msra.mxu0 0
        %2631 = vmatprep.subr.bf16.mxu0 0
        %2632 = vmatpush1.bf16.msra.mxu0 0
        %2633 = vmatprep.subr.bf16.mxu0 0
        %2634 = vmatpush1.bf16.msra.mxu0 0
        %2635 = vmatprep.subr.bf16.mxu0 0
        %2636 = vmatpush1.bf16.msra.mxu0 0
        %2637 = vmatprep.mubr.bf16.mxu0 0
        %2638 = vmatmul.mubr.bf16.gmra.mrb[0].mxu0 %v2603
        %v2639 = vpop.f32.mrb[0].mxu0
        %v2640 = vadd.f32 %v2588, %v2639
        %v2641 = vpop.f32.mrb[0].mxu0
        %v2642 = vpop.f32.mrb[0].mxu0
        %v2643 = vpop.f32.mrb[0].mxu0
        %2644 = vdwg.mxu0
        %v2645 = vmul.f32 %v2640, 0.5
        %v2646 = vmul.f32 %v2640, %v2640
        %v2647 = vmul.f32 %v2640, %v2646
        %v2648 = vmul.f32 %v2647, 0.044715
        %v2649 = vadd.f32 %v2640, %v2648
        %v2650 = vmul.f32 %v2649, 0.7978846
        %v2651 = vtanh.pop %v2650
        %v2652 = vadd.f32 %v2651, 1.0
        %v2653 = vmul.f32 %v2645, %v2652
        %v2654 = vpack.c.bf16 %v2653, %v2653
        %s2655 = scalar_lea.vmem %s12, 128
        %v2656 = vld [vmem:[%s2655] sm:$0xf]
        %v2657 = vld [vmem:[%s2655 + $0x4] sm:$0xf]
        %v2658 = vld [vmem:[%s2655 + $0x8] sm:$0xf]
        %v2659 = vld [vmem:[%s2655 + $0xc] sm:$0xf]
        %v2660 = vld [vmem:[%s2655 + $0x10] sm:$0xf]
        %v2661 = vld [vmem:[%s2655 + $0x14] sm:$0xf]
        %v2662 = vld [vmem:[%s2655 + $0x18] sm:$0xf]
        %v2663 = vld [vmem:[%s2655 + $0x1c] sm:$0xf]
        %v2664 = vld [vmem:[%s2655 + $0x20] sm:$0xf]
        %v2665 = vld [vmem:[%s2655 + $0x24] sm:$0xf]
        %v2666 = vld [vmem:[%s2655 + $0x28] sm:$0xf]
        %v2667 = vld [vmem:[%s2655 + $0x2c] sm:$0xf]
        %v2668 = vld [vmem:[%s2655 + $0x30] sm:$0xf]
        %v2669 = vld [vmem:[%s2655 + $0x34] sm:$0xf]
        %v2670 = vld [vmem:[%s2655 + $0x38] sm:$0xf]
        %v2671 = vld [vmem:[%s2655 + $0x3c] sm:$0xf]
        %s2672 = scalar_lea.vmem %s13, 2
        %v2673 = vld [vmem:[%s2672] sm:$0x1]
        %v2675 = vlaneseq
        %v2676 = vshrl.u32 %v2675, 7
        %v2677 = vsub.s32 0, %v2676
        %v2678 = vrot.slane %v2673, %v2677
        %v2696 = vunpack.c.l.b16 %v2656
        %v2697 = vunpack.c.l.b16 %v2657
        %v2698 = vunpack.c.l.b16 %v2658
        %v2699 = vunpack.c.l.b16 %v2659
        %v2700 = vunpack.c.l.b16 %v2660
        %v2701 = vunpack.c.l.b16 %v2661
        %v2702 = vunpack.c.l.b16 %v2662
        %v2703 = vunpack.c.l.b16 %v2663
        %v2704 = vunpack.c.l.b16 %v2664
        %v2705 = vunpack.c.l.b16 %v2665
        %v2706 = vunpack.c.l.b16 %v2666
        %v2707 = vunpack.c.l.b16 %v2667
        %v2708 = vunpack.c.l.b16 %v2668
        %v2709 = vunpack.c.l.b16 %v2669
        %v2710 = vunpack.c.l.b16 %v2670
        %v2711 = vunpack.c.l.b16 %v2671
        %v2712 = vpack.c.b16 %v2697, %v2696
        %v2713 = vpack.c.b16 %v2699, %v2698
        %v2714 = vpack.c.b16 %v2701, %v2700
        %v2715 = vpack.c.b16 %v2703, %v2702
        %v2716 = vpack.c.b16 %v2705, %v2704
        %v2717 = vpack.c.b16 %v2707, %v2706
        %v2718 = vpack.c.b16 %v2709, %v2708
        %v2719 = vpack.c.b16 %v2711, %v2710
        %2728 = vmatprep.subr.bf16.mxu0 0
        %2729 = vmatpush1.bf16.msra.mxu0 %v2712
        %2730 = vmatprep.subr.bf16.mxu0 0
        %2731 = vmatpush1.bf16.msra.mxu0 %v2713
        %2732 = vmatprep.subr.bf16.mxu0 0
        %2733 = vmatpush1.bf16.msra.mxu0 %v2714
        %2734 = vmatprep.subr.bf16.mxu0 0
        %2735 = vmatpush1.bf16.msra.mxu0 %v2715
        %2736 = vmatprep.subr.bf16.mxu0 0
        %2737 = vmatpush1.bf16.msra.mxu0 %v2716
        %2738 = vmatprep.subr.bf16.mxu0 0
        %2739 = vmatpush1.bf16.msra.mxu0 %v2717
        %2740 = vmatprep.subr.bf16.mxu0 0
        %2741 = vmatpush1.bf16.msra.mxu0 %v2718
        %2742 = vmatprep.subr.bf16.mxu0 0
        %2743 = vmatpush1.bf16.msra.mxu0 %v2719
        %2744 = vmatprep.subr.bf16.mxu0 0
        %2745 = vmatpush1.bf16.msra.mxu0 0
        %2746 = vmatprep.subr.bf16.mxu0 0
        %2747 = vmatpush1.bf16.msra.mxu0 0
        %2748 = vmatprep.subr.bf16.mxu0 0
        %2749 = vmatpush1.bf16.msra.mxu0 0
        %2750 = vmatprep.subr.bf16.mxu0 0
        %2751 = vmatpush1.bf16.msra.mxu0 0
        %2752 = vmatprep.subr.bf16.mxu0 0
        %2753 = vmatpush1.bf16.msra.mxu0 0
        %2754 = vmatprep.subr.bf16.mxu0 0
        %2755 = vmatpush1.bf16.msra.mxu0 0
        %2756 = vmatprep.subr.bf16.mxu0 0
        %2757 = vmatpush1.bf16.msra.mxu0 0
        %2758 = vmatprep.subr.bf16.mxu0 0
        %2759 = vmatpush1.bf16.msra.mxu0 0
        %2760 = vmatprep.mubr.bf16.mxu0 0
        %2761 = vmatmul.mubr.bf16.gmra.mrb[0].mxu0 %v2654
        %v2762 = vpop.f32.mrb[0].mxu0
        %v2763 = vadd.f32 %v2678, %v2762
        %v2764 = vpop.f32.mrb[0].mxu0
        %v2765 = vpop.f32.mrb[0].mxu0
        %v2766 = vpop.f32.mrb[0].mxu0
        %2767 = vdwg.mxu0
        %v2768 = vadd.f32 %v2544, %v2763
        %s2769 = scalar_lea.vmem %s2, 3
        %v2770 = vld [vmem:[%s2769] sm:$0x1]
        %s2771 = scalar_lea.vmem %s3, 3
        %v2772 = vld [vmem:[%s2771] sm:$0x1]
        %v2773 = vsel %vm576, %v2768, 0.0
        %2774 = vadd.xlane.f32.xlu0 %v2773
        %v2775 = vpop.xlane.xlu0 %2774
        %v2776 = vmul.f32 %v2775, %v580
        %v2777 = vsub.f32 %v2768, %v2776
        %v2778 = vmul.f32 %v2777, %v2777
        %v2779 = vsel %vm576, %v2778, 0.0
        %2780 = vadd.xlane.f32.xlu0 %v2779
        %v2781 = vpop.xlane.xlu0 %2780
        %v2782 = vmul.f32 %v2781, %v580
        %v2783 = vadd.f32 %v2782, 1e-05
        %v2784 = vrsqrt.pop %v2783
        %v2785 = vmul.f32 %v2777, %v2784
        %v2787 = vlaneseq
        %v2788 = vshrl.u32 %v2787, 7
        %v2789 = vsub.s32 0, %v2788
        %v2790 = vrot.slane %v2770, %v2789
        %v2792 = vmul.f32 %v2785, %v2790
        %v2794 = vlaneseq
        %v2795 = vshrl.u32 %v2794, 7
        %v2796 = vsub.s32 0, %v2795
        %v2797 = vrot.slane %v2772, %v2796
        %v2799 = vadd.f32 %v2792, %v2797
        %v2800 = vpack.c.bf16 %v2799, %v2799
        %s2801 = scalar_lea.vmem %s4, 48
        %v2802 = vld [vmem:[%s2801] sm:$0xf]
        %v2803 = vld [vmem:[%s2801 + $0x4] sm:$0xf]
        %v2804 = vld [vmem:[%s2801 + $0x8] sm:$0xf]
        %v2805 = vld [vmem:[%s2801 + $0xc] sm:$0xf]
        %s2806 = scalar_lea.vmem %s5, 3
        %v2807 = vld [vmem:[%s2806] sm:$0x1]
        %v2809 = vlaneseq
        %v2810 = vshrl.u32 %v2809, 7
        %v2811 = vsub.s32 0, %v2810
        %v2812 = vrot.slane %v2807, %v2811
        %v2818 = vunpack.c.l.b16 %v2802
        %v2819 = vunpack.c.l.b16 %v2803
        %v2820 = vunpack.c.l.b16 %v2804
        %v2821 = vunpack.c.l.b16 %v2805
        %v2822 = vpack.c.b16 %v2819, %v2818
        %v2823 = vpack.c.b16 %v2821, %v2820
        %v2827 = vsel %vm576, %v2800, 0
        %2829 = vmatprep.subr.bf16.mxu0 0
        %2830 = vmatpush1.bf16.msra.mxu0 %v2822
        %2831 = vmatprep.subr.bf16.mxu0 0
        %2832 = vmatpush1.bf16.msra.mxu0 %v2823
        %2833 = vmatprep.subr.bf16.mxu0 0
        %2834 = vmatpush1.bf16.msra.mxu0 0
        %2835 = vmatprep.subr.bf16.mxu0 0
        %2836 = vmatpush1.bf16.msra.mxu0 0
        %2837 = vmatprep.subr.bf16.mxu0 0
        %2838 = vmatpush1.bf16.msra.mxu0 0
        %2839 = vmatprep.subr.bf16.mxu0 0
        %2840 = vmatpush1.bf16.msra.mxu0 0
        %2841 = vmatprep.subr.bf16.mxu0 0
        %2842 = vmatpush1.bf16.msra.mxu0 0
        %2843 = vmatprep.subr.bf16.mxu0 0
        %2844 = vmatpush1.bf16.msra.mxu0 0
        %2845 = vmatprep.subr.bf16.mxu0 0
        %2846 = vmatpush1.bf16.msra.mxu0 0
        %2847 = vmatprep.subr.bf16.mxu0 0
        %2848 = vmatpush1.bf16.msra.mxu0 0
        %2849 = vmatprep.subr.bf16.mxu0 0
        %2850 = vmatpush1.bf16.msra.mxu0 0
        %2851 = vmatprep.subr.bf16.mxu0 0
        %2852 = vmatpush1.bf16.msra.mxu0 0
        %2853 = vmatprep.subr.bf16.mxu0 0
        %2854 = vmatpush1.bf16.msra.mxu0 0
        %2855 = vmatprep.subr.bf16.mxu0 0
        %2856 = vmatpush1.bf16.msra.mxu0 0
        %2857 = vmatprep.subr.bf16.mxu0 0
        %2858 = vmatpush1.bf16.msra.mxu0 0
        %2859 = vmatprep.subr.bf16.mxu0 0
        %2860 = vmatpush1.bf16.msra.mxu0 0
        %2861 = vmatprep.mubr.bf16.mxu0 0
        %2862 = vmatmul.mubr.bf16.gmra.mrb[0].mxu0 %v2827
        %v2863 = vpop.f32.mrb[0].mxu0
        %v2864 = vadd.f32 %v2812, %v2863
        %v2865 = vpop.f32.mrb[0].mxu0
        %v2866 = vpop.f32.mrb[0].mxu0
        %v2867 = vpop.f32.mrb[0].mxu0
        %2868 = vdwg.mxu0
        %2870 = vrot.lane.b32.xlu0 %v2864, 96
        %v2871 = vpop.permute.xlu0 %2870
        %v2872 = vsel %vm675, %v2864, 0
        %v2874 = vsel %vm675, %v2871, 0
        %2876 = vmatprep.subr.mxu0 0.0
        %2877 = vmatpush1.xpose.msra.mxu0 %v2874
        %2878 = vmatprep.subr.mxu0 0.0
        %2879 = vmatpush1.xpose.msra.mxu0 0.0
        %2880 = vmatprep.subr.mxu0 0.0
        %2881 = vmatpush1.xpose.msra.mxu0 0.0
        %2882 = vmatprep.subr.mxu0 0.0
        %2883 = vmatpush1.xpose.msra.mxu0 0.0
        %2884 = vmatprep.subr.mxu0 0.0
        %2885 = vmatpush1.xpose.msra.mxu0 0.0
        %2886 = vmatprep.subr.mxu0 0.0
        %2887 = vmatpush1.xpose.msra.mxu0 0.0
        %2888 = vmatprep.subr.mxu0 0.0
        %2889 = vmatpush1.xpose.msra.mxu0 0.0
        %2890 = vmatprep.subr.mxu0 0.0
        %2891 = vmatpush1.xpose.msra.mxu0 0.0
        %2892 = vmatprep.subr.mxu0 0.0
        %2893 = vmatpush1.xpose.msra.mxu0 0.0
        %2894 = vmatprep.subr.mxu0 0.0
        %2895 = vmatpush1.xpose.msra.mxu0 0.0
        %2896 = vmatprep.subr.mxu0 0.0
        %2897 = vmatpush1.xpose.msra.mxu0 0.0
        %2898 = vmatprep.subr.mxu0 0.0
        %2899 = vmatpush1.xpose.msra.mxu0 0.0
        %2900 = vmatprep.subr.mxu0 0.0
        %2901 = vmatpush1.xpose.msra.mxu0 0.0
        %2902 = vmatprep.subr.mxu0 0.0
        %2903 = vmatpush1.xpose.msra.mxu0 0.0
        %2904 = vmatprep.subr.mxu0 0.0
        %2905 = vmatpush1.xpose.msra.mxu0 0.0
        %2906 = vmatprep.subr.mxu0 0.0
        %2907 = vmatpush1.xpose.msra.mxu0 0.0
        %2908 = vmatprep.subr.mxu0 0.0
        %2909 = vmatpush1.xpose.msra.mxu0 0.0
        %2910 = vmatprep.subr.mxu0 0.0
        %2911 = vmatpush1.xpose.msra.mxu0 0.0
        %2912 = vmatprep.subr.mxu0 0.0
        %2913 = vmatpush1.xpose.msra.mxu0 0.0
        %2914 = vmatprep.subr.mxu0 0.0
        %2915 = vmatpush1.xpose.msra.mxu0 0.0
        %2916 = vmatprep.subr.mxu0 0.0
        %2917 = vmatpush1.xpose.msra.mxu0 0.0
        %2918 = vmatprep.subr.mxu0 0.0
        %2919 = vmatpush1.xpose.msra.mxu0 0.0
        %2920 = vmatprep.subr.mxu0 0.0
        %2921 = vmatpush1.xpose.msra.mxu0 0.0
        %2922 = vmatprep.subr.mxu0 0.0
        %2923 = vmatpush1.xpose.msra.mxu0 0.0
        %2924 = vmatprep.subr.mxu0 0.0
        %2925 = vmatpush1.xpose.msra.mxu0 0.0
        %2926 = vmatprep.subr.mxu0 0.0
        %2927 = vmatpush1.xpose.msra.mxu0 0.0
        %2928 = vmatprep.subr.mxu0 0.0
        %2929 = vmatpush1.xpose.msra.mxu0 0.0
        %2930 = vmatprep.subr.mxu0 0.0
        %2931 = vmatpush1.xpose.msra.mxu0 0.0
        %2932 = vmatprep.subr.mxu0 0.0
        %2933 = vmatpush1.xpose.msra.mxu0 0.0
        %2934 = vmatprep.subr.mxu0 0.0
        %2935 = vmatpush1.xpose.msra.mxu0 0.0
        %2936 = vmatprep.subr.mxu0 0.0
        %2937 = vmatpush1.xpose.msra.mxu0 0.0
        %2938 = vmatprep.subr.mxu0 0.0
        %2939 = vmatpush1.xpose.msra.mxu0 0.0
        %2940 = vmatprep.mubr.f32.mxu0 0.0
        %2941 = vmatmul.mubr.f32.gmra.mrb[0].mxu0 %v2872
        %v2942 = vpop.f32.mrb[0].mxu0
        %v2943 = vadd.f32 0.0, %v2942
        %v2944 = vpop.f32.mrb[0].mxu0
        %2945 = vdwg.mxu0
        %v2946 = vmul.f32 %v2943, 0.25
        %v2947 = vadd.f32 %v2946, %v573
        %v2948 = vsel %vm752, %v2947, -inf
        %2949 = vmax.xlane.f32.xlu0 %v2948
        %v2950 = vpop.xlane.xlu0 %2949
        %v2951 = vsub.f32 %v2947, %v2950
        %v2952 = vmul.f32 %v2951, 1.442695
        %v2953 = vpow.pop %v2952
        %v2954 = vsel %vm752, %v2953, 0.0
        %2955 = vadd.xlane.f32.xlu0 %v2954
        %v2956 = vpop.xlane.xlu0 %2955
        %v2957 = vrcp.pop %v2956
        %v2958 = vmul.f32 %v2953, %v2957
        %2959 = vrot.lane.b32.xlu0 %v2864, 64
        %v2960 = vpop.permute.xlu0 %2959
        %v2963 = vsel %vm752, %v2958, 0
        %2965 = vmatprep.subr.mxu0 0.0
        %2966 = vmatpush1.msra.mxu0 %v2960
        %2967 = vmatprep.subr.mxu0 0.0
        %2968 = vmatpush1.msra.mxu0 0.0
        %2969 = vmatprep.subr.mxu0 0.0
        %2970 = vmatpush1.msra.mxu0 0.0
        %2971 = vmatprep.subr.mxu0 0.0
        %2972 = vmatpush1.msra.mxu0 0.0
        %2973 = vmatprep.subr.mxu0 0.0
        %2974 = vmatpush1.msra.mxu0 0.0
        %2975 = vmatprep.subr.mxu0 0.0
        %2976 = vmatpush1.msra.mxu0 0.0
        %2977 = vmatprep.subr.mxu0 0.0
        %2978 = vmatpush1.msra.mxu0 0.0
        %2979 = vmatprep.subr.mxu0 0.0
        %2980 = vmatpush1.msra.mxu0 0.0
        %2981 = vmatprep.subr.mxu0 0.0
        %2982 = vmatpush1.msra.mxu0 0.0
        %2983 = vmatprep.subr.mxu0 0.0
        %2984 = vmatpush1.msra.mxu0 0.0
        %2985 = vmatprep.subr.mxu0 0.0
        %2986 = vmatpush1.msra.mxu0 0.0
        %2987 = vmatprep.subr.mxu0 0.0
        %2988 = vmatpush1.msra.mxu0 0.0
        %2989 = vmatprep.subr.mxu0 0.0
        %2990 = vmatpush1.msra.mxu0 0.0
        %2991 = vmatprep.subr.mxu0 0.0
        %2992 = vmatpush1.msra.mxu0 0.0
        %2993 = vmatprep.subr.mxu0 0.0
        %2994 = vmatpush1.msra.mxu0 0.0
        %2995 = vmatprep.subr.mxu0 0.0
        %2996 = vmatpush1.msra.mxu0 0.0
        %2997 = vmatprep.subr.mxu0 0.0
        %2998 = vmatpush1.msra.mxu0 0.0
        %2999 = vmatprep.subr.mxu0 0.0
        %3000 = vmatpush1.msra.mxu0 0.0
        %3001 = vmatprep.subr.mxu0 0.0
        %3002 = vmatpush1.msra.mxu0 0.0
        %3003 = vmatprep.subr.mxu0 0.0
        %3004 = vmatpush1.msra.mxu0 0.0
        %3005 = vmatprep.subr.mxu0 0.0
        %3006 = vmatpush1.msra.mxu0 0.0
        %3007 = vmatprep.subr.mxu0 0.0
        %3008 = vmatpush1.msra.mxu0 0.0
        %3009 = vmatprep.subr.mxu0 0.0
        %3010 = vmatpush1.msra.mxu0 0.0
        %3011 = vmatprep.subr.mxu0 0.0
        %3012 = vmatpush1.msra.mxu0 0.0
        %3013 = vmatprep.subr.mxu0 0.0
        %3014 = vmatpush1.msra.mxu0 0.0
        %3015 = vmatprep.subr.mxu0 0.0
        %3016 = vmatpush1.msra.mxu0 0.0
        %3017 = vmatprep.subr.mxu0 0.0
        %3018 = vmatpush1.msra.mxu0 0.0
        %3019 = vmatprep.subr.mxu0 0.0
        %3020 = vmatpush1.msra.mxu0 0.0
        %3021 = vmatprep.subr.mxu0 0.0
        %3022 = vmatpush1.msra.mxu0 0.0
        %3023 = vmatprep.subr.mxu0 0.0
        %3024 = vmatpush1.msra.mxu0 0.0
        %3025 = vmatprep.subr.mxu0 0.0
        %3026 = vmatpush1.msra.mxu0 0.0
        %3027 = vmatprep.subr.mxu0 0.0
        %3028 = vmatpush1.msra.mxu0 0.0
        %3029 = vmatprep.mubr.f32.mxu0 0.0
        %3030 = vmatmul.mubr.f32.gmra.mrb[0].mxu0 %v2963
        %v3031 = vpop.f32.mrb[0].mxu0
        %v3032 = vadd.f32 0.0, %v3031
        %v3033 = vpop.f32.mrb[0].mxu0
        %3034 = vdwg.mxu0
        %3035 = vst.msk [vmem:[#allocation2] sm:$0xff] %vm675, %v3032
        %3036 = vrot.lane.b32.xlu0 %v2864, 112
        %v3037 = vpop.permute.xlu0 %3036
        %3038 = vrot.lane.b32.xlu0 %v2864, 80
        %v3039 = vpop.permute.xlu0 %3038
        %v3040 = vsel %vm675, %v3037, 0
        %v3042 = vsel %vm675, %v3039, 0
        %3044 = vmatprep.subr.mxu0 0.0
        %3045 = vmatpush1.xpose.msra.mxu0 %v3042
        %3046 = vmatprep.subr.mxu0 0.0
        %3047 = vmatpush1.xpose.msra.mxu0 0.0
        %3048 = vmatprep.subr.mxu0 0.0
        %3049 = vmatpush1.xpose.msra.mxu0 0.0
        %3050 = vmatprep.subr.mxu0 0.0
        %3051 = vmatpush1.xpose.msra.mxu0 0.0
        %3052 = vmatprep.subr.mxu0 0.0
        %3053 = vmatpush1.xpose.msra.mxu0 0.0
        %3054 = vmatprep.subr.mxu0 0.0
        %3055 = vmatpush1.xpose.msra.mxu0 0.0
        %3056 = vmatprep.subr.mxu0 0.0
        %3057 = vmatpush1.xpose.msra.mxu0 0.0
        %3058 = vmatprep.subr.mxu0 0.0
        %3059 = vmatpush1.xpose.msra.mxu0 0.0
        %3060 = vmatprep.subr.mxu0 0.0
        %3061 = vmatpush1.xpose.msra.mxu0 0.0
        %3062 = vmatprep.subr.mxu0 0.0
        %3063 = vmatpush1.xpose.msra.mxu0 0.0
        %3064 = vmatprep.subr.mxu0 0.0
        %3065 = vmatpush1.xpose.msra.mxu0 0.0
        %3066 = vmatprep.subr.mxu0 0.0
        %3067 = vmatpush1.xpose.msra.mxu0 0.0
        %3068 = vmatprep.subr.mxu0 0.0
        %3069 = vmatpush1.xpose.msra.mxu0 0.0
        %3070 = vmatprep.subr.mxu0 0.0
        %3071 = vmatpush1.xpose.msra.mxu0 0.0
        %3072 = vmatprep.subr.mxu0 0.0
        %3073 = vmatpush1.xpose.msra.mxu0 0.0
        %3074 = vmatprep.subr.mxu0 0.0
        %3075 = vmatpush1.xpose.msra.mxu0 0.0
        %3076 = vmatprep.subr.mxu0 0.0
        %3077 = vmatpush1.xpose.msra.mxu0 0.0
        %3078 = vmatprep.subr.mxu0 0.0
        %3079 = vmatpush1.xpose.msra.mxu0 0.0
        %3080 = vmatprep.subr.mxu0 0.0
        %3081 = vmatpush1.xpose.msra.mxu0 0.0
        %3082 = vmatprep.subr.mxu0 0.0
        %3083 = vmatpush1.xpose.msra.mxu0 0.0
        %3084 = vmatprep.subr.mxu0 0.0
        %3085 = vmatpush1.xpose.msra.mxu0 0.0
        %3086 = vmatprep.subr.mxu0 0.0
        %3087 = vmatpush1.xpose.msra.mxu0 0.0
        %3088 = vmatprep.subr.mxu0 0.0
        %3089 = vmatpush1.xpose.msra.mxu0 0.0
        %3090 = vmatprep.subr.mxu0 0.0
        %3091 = vmatpush1.xpose.msra.mxu0 0.0
        %3092 = vmatprep.subr.mxu0 0.0
        %3093 = vmatpush1.xpose.msra.mxu0 0.0
        %3094 = vmatprep.subr.mxu0 0.0
        %3095 = vmatpush1.xpose.msra.mxu0 0.0
        %3096 = vmatprep.subr.mxu0 0.0
        %3097 = vmatpush1.xpose.msra.mxu0 0.0
        %3098 = vmatprep.subr.mxu0 0.0
        %3099 = vmatpush1.xpose.msra.mxu0 0.0
        %3100 = vmatprep.subr.mxu0 0.0
        %3101 = vmatpush1.xpose.msra.mxu0 0.0
        %3102 = vmatprep.subr.mxu0 0.0
        %3103 = vmatpush1.xpose.msra.mxu0 0.0
        %3104 = vmatprep.subr.mxu0 0.0
        %3105 = vmatpush1.xpose.msra.mxu0 0.0
        %3106 = vmatprep.subr.mxu0 0.0
        %3107 = vmatpush1.xpose.msra.mxu0 0.0
        %3108 = vmatprep.mubr.f32.mxu0 0.0
        %3109 = vmatmul.mubr.f32.gmra.mrb[0].mxu0 %v3040
        %v3110 = vpop.f32.mrb[0].mxu0
        %v3111 = vadd.f32 0.0, %v3110
        %v3112 = vpop.f32.mrb[0].mxu0
        %3113 = vdwg.mxu0
        %v3114 = vmul.f32 %v3111, 0.25
        %v3115 = vadd.f32 %v3114, %v573
        %v3116 = vsel %vm752, %v3115, -inf
        %3117 = vmax.xlane.f32.xlu0 %v3116
        %v3118 = vpop.xlane.xlu0 %3117
        %v3119 = vsub.f32 %v3115, %v3118
        %v3120 = vmul.f32 %v3119, 1.442695
        %v3121 = vpow.pop %v3120
        %v3122 = vsel %vm752, %v3121, 0.0
        %3123 = vadd.xlane.f32.xlu0 %v3122
        %v3124 = vpop.xlane.xlu0 %3123
        %v3125 = vrcp.pop %v3124
        %v3126 = vmul.f32 %v3121, %v3125
        %3127 = vrot.lane.b32.xlu0 %v2864, 48
        %v3128 = vpop.permute.xlu0 %3127
        %v3131 = vsel %vm752, %v3126, 0
        %3133 = vmatprep.subr.mxu0 0.0
        %3134 = vmatpush1.msra.mxu0 %v3128
        %3135 = vmatprep.subr.mxu0 0.0
        %3136 = vmatpush1.msra.mxu0 0.0
        %3137 = vmatprep.subr.mxu0 0.0
        %3138 = vmatpush1.msra.mxu0 0.0
        %3139 = vmatprep.subr.mxu0 0.0
        %3140 = vmatpush1.msra.mxu0 0.0
        %3141 = vmatprep.subr.mxu0 0.0
        %3142 = vmatpush1.msra.mxu0 0.0
        %3143 = vmatprep.subr.mxu0 0.0
        %3144 = vmatpush1.msra.mxu0 0.0
        %3145 = vmatprep.subr.mxu0 0.0
        %3146 = vmatpush1.msra.mxu0 0.0
        %3147 = vmatprep.subr.mxu0 0.0
        %3148 = vmatpush1.msra.mxu0 0.0
        %3149 = vmatprep.subr.mxu0 0.0
        %3150 = vmatpush1.msra.mxu0 0.0
        %3151 = vmatprep.subr.mxu0 0.0
        %3152 = vmatpush1.msra.mxu0 0.0
        %3153 = vmatprep.subr.mxu0 0.0
        %3154 = vmatpush1.msra.mxu0 0.0
        %3155 = vmatprep.subr.mxu0 0.0
        %3156 = vmatpush1.msra.mxu0 0.0
        %3157 = vmatprep.subr.mxu0 0.0
        %3158 = vmatpush1.msra.mxu0 0.0
        %3159 = vmatprep.subr.mxu0 0.0
        %3160 = vmatpush1.msra.mxu0 0.0
        %3161 = vmatprep.subr.mxu0 0.0
        %3162 = vmatpush1.msra.mxu0 0.0
        %3163 = vmatprep.subr.mxu0 0.0
        %3164 = vmatpush1.msra.mxu0 0.0
        %3165 = vmatprep.subr.mxu0 0.0
        %3166 = vmatpush1.msra.mxu0 0.0
        %3167 = vmatprep.subr.mxu0 0.0
        %3168 = vmatpush1.msra.mxu0 0.0
        %3169 = vmatprep.subr.mxu0 0.0
        %3170 = vmatpush1.msra.mxu0 0.0
        %3171 = vmatprep.subr.mxu0 0.0
        %3172 = vmatpush1.msra.mxu0 0.0
        %3173 = vmatprep.subr.mxu0 0.0
        %3174 = vmatpush1.msra.mxu0 0.0
        %3175 = vmatprep.subr.mxu0 0.0
        %3176 = vmatpush1.msra.mxu0 0.0
        %3177 = vmatprep.subr.mxu0 0.0
        %3178 = vmatpush1.msra.mxu0 0.0
        %3179 = vmatprep.subr.mxu0 0.0
        %3180 = vmatpush1.msra.mxu0 0.0
        %3181 = vmatprep.subr.mxu0 0.0
        %3182 = vmatpush1.msra.mxu0 0.0
        %3183 = vmatprep.subr.mxu0 0.0
        %3184 = vmatpush1.msra.mxu0 0.0
        %3185 = vmatprep.subr.mxu0 0.0
        %3186 = vmatpush1.msra.mxu0 0.0
        %3187 = vmatprep.subr.mxu0 0.0
        %3188 = vmatpush1.msra.mxu0 0.0
        %3189 = vmatprep.subr.mxu0 0.0
        %3190 = vmatpush1.msra.mxu0 0.0
        %3191 = vmatprep.subr.mxu0 0.0
        %3192 = vmatpush1.msra.mxu0 0.0
        %3193 = vmatprep.subr.mxu0 0.0
        %3194 = vmatpush1.msra.mxu0 0.0
        %3195 = vmatprep.subr.mxu0 0.0
        %3196 = vmatpush1.msra.mxu0 0.0
        %3197 = vmatprep.mubr.f32.mxu0 0.0
        %3198 = vmatmul.mubr.f32.gmra.mrb[0].mxu0 %v3131
        %v3199 = vpop.f32.mrb[0].mxu0
        %v3200 = vadd.f32 0.0, %v3199
        %v3201 = vpop.f32.mrb[0].mxu0
        %3202 = vdwg.mxu0
        %3204 = vrot.lane.b32.xlu0 %v3200, 16
        %v3205 = vpop.permute.xlu0 %3204
        %3207 = vst.msk [vmem:[#allocation2] sm:$0xff] %vm1012, %v3205
        %v3208 = vld [vmem:[#allocation2] sm:$0xff]
        %v3209 = vpack.c.bf16 %v3208, %v3208
        %s3210 = scalar_lea.vmem %s6, 48
        %v3211 = vld [vmem:[%s3210] sm:$0xf]
        %v3212 = vld [vmem:[%s3210 + $0x4] sm:$0xf]
        %v3213 = vld [vmem:[%s3210 + $0x8] sm:$0xf]
        %v3214 = vld [vmem:[%s3210 + $0xc] sm:$0xf]
        %s3215 = scalar_lea.vmem %s7, 3
        %v3216 = vld [vmem:[%s3215] sm:$0x1]
        %v3218 = vlaneseq
        %v3219 = vshrl.u32 %v3218, 7
        %v3220 = vsub.s32 0, %v3219
        %v3221 = vrot.slane %v3216, %v3220
        %v3227 = vunpack.c.l.b16 %v3211
        %v3228 = vunpack.c.l.b16 %v3212
        %v3229 = vunpack.c.l.b16 %v3213
        %v3230 = vunpack.c.l.b16 %v3214
        %v3231 = vpack.c.b16 %v3228, %v3227
        %v3232 = vpack.c.b16 %v3230, %v3229
        %v3236 = vsel %vm576, %v3209, 0
        %3238 = vmatprep.subr.bf16.mxu0 0
        %3239 = vmatpush1.bf16.msra.mxu0 %v3231
        %3240 = vmatprep.subr.bf16.mxu0 0
        %3241 = vmatpush1.bf16.msra.mxu0 %v3232
        %3242 = vmatprep.subr.bf16.mxu0 0
        %3243 = vmatpush1.bf16.msra.mxu0 0
        %3244 = vmatprep.subr.bf16.mxu0 0
        %3245 = vmatpush1.bf16.msra.mxu0 0
        %3246 = vmatprep.subr.bf16.mxu0 0
        %3247 = vmatpush1.bf16.msra.mxu0 0
        %3248 = vmatprep.subr.bf16.mxu0 0
        %3249 = vmatpush1.bf16.msra.mxu0 0
        %3250 = vmatprep.subr.bf16.mxu0 0
        %3251 = vmatpush1.bf16.msra.mxu0 0
        %3252 = vmatprep.subr.bf16.mxu0 0
        %3253 = vmatpush1.bf16.msra.mxu0 0
        %3254 = vmatprep.subr.bf16.mxu0 0
        %3255 = vmatpush1.bf16.msra.mxu0 0
        %3256 = vmatprep.subr.bf16.mxu0 0
        %3257 = vmatpush1.bf16.msra.mxu0 0
        %3258 = vmatprep.subr.bf16.mxu0 0
        %3259 = vmatpush1.bf16.msra.mxu0 0
        %3260 = vmatprep.subr.bf16.mxu0 0
        %3261 = vmatpush1.bf16.msra.mxu0 0
        %3262 = vmatprep.subr.bf16.mxu0 0
        %3263 = vmatpush1.bf16.msra.mxu0 0
        %3264 = vmatprep.subr.bf16.mxu0 0
        %3265 = vmatpush1.bf16.msra.mxu0 0
        %3266 = vmatprep.subr.bf16.mxu0 0
        %3267 = vmatpush1.bf16.msra.mxu0 0
        %3268 = vmatprep.subr.bf16.mxu0 0
        %3269 = vmatpush1.bf16.msra.mxu0 0
        %3270 = vmatprep.mubr.bf16.mxu0 0
        %3271 = vmatmul.mubr.bf16.gmra.mrb[0].mxu0 %v3236
        %v3272 = vpop.f32.mrb[0].mxu0
        %v3273 = vadd.f32 %v3221, %v3272
        %v3274 = vpop.f32.mrb[0].mxu0
        %v3275 = vpop.f32.mrb[0].mxu0
        %v3276 = vpop.f32.mrb[0].mxu0
        %3277 = vdwg.mxu0
        %v3278 = vadd.f32 %v2768, %v3273
        %s3279 = scalar_lea.vmem %s8, 3
        %v3280 = vld [vmem:[%s3279] sm:$0x1]
        %s3281 = scalar_lea.vmem %s9, 3
        %v3282 = vld [vmem:[%s3281] sm:$0x1]
        %v3283 = vsel %vm576, %v3278, 0.0
        %3284 = vadd.xlane.f32.xlu0 %v3283
        %v3285 = vpop.xlane.xlu0 %3284
        %v3286 = vmul.f32 %v3285, %v580
        %v3287 = vsub.f32 %v3278, %v3286
        %v3288 = vmul.f32 %v3287, %v3287
        %v3289 = vsel %vm576, %v3288, 0.0
        %3290 = vadd.xlane.f32.xlu0 %v3289
        %v3291 = vpop.xlane.xlu0 %3290
        %v3292 = vmul.f32 %v3291, %v580
        %v3293 = vadd.f32 %v3292, 1e-05
        %v3294 = vrsqrt.pop %v3293
        %v3295 = vmul.f32 %v3287, %v3294
        %v3297 = vlaneseq
        %v3298 = vshrl.u32 %v3297, 7
        %v3299 = vsub.s32 0, %v3298
        %v3300 = vrot.slane %v3280, %v3299
        %v3302 = vmul.f32 %v3295, %v3300
        %v3304 = vlaneseq
        %v3305 = vshrl.u32 %v3304, 7
        %v3306 = vsub.s32 0, %v3305
        %v3307 = vrot.slane %v3282, %v3306
        %v3309 = vadd.f32 %v3302, %v3307
        %v3310 = vpack.c.bf16 %v3309, %v3309
        %s3311 = scalar_lea.vmem %s10, 48
        %v3312 = vld [vmem:[%s3311] sm:$0xf]
        %v3313 = vld [vmem:[%s3311 + $0x4] sm:$0xf]
        %v3314 = vld [vmem:[%s3311 + $0x8] sm:$0xf]
        %v3315 = vld [vmem:[%s3311 + $0xc] sm:$0xf]
        %s3316 = scalar_lea.vmem %s11, 3
        %v3317 = vld [vmem:[%s3316] sm:$0x1]
        %v3319 = vlaneseq
        %v3320 = vshrl.u32 %v3319, 7
        %v3321 = vsub.s32 0, %v3320
        %v3322 = vrot.slane %v3317, %v3321
        %v3328 = vunpack.c.l.b16 %v3312
        %v3329 = vunpack.c.l.b16 %v3313
        %v3330 = vunpack.c.l.b16 %v3314
        %v3331 = vunpack.c.l.b16 %v3315
        %v3332 = vpack.c.b16 %v3329, %v3328
        %v3333 = vpack.c.b16 %v3331, %v3330
        %v3337 = vsel %vm576, %v3310, 0
        %3339 = vmatprep.subr.bf16.mxu0 0
        %3340 = vmatpush1.bf16.msra.mxu0 %v3332
        %3341 = vmatprep.subr.bf16.mxu0 0
        %3342 = vmatpush1.bf16.msra.mxu0 %v3333
        %3343 = vmatprep.subr.bf16.mxu0 0
        %3344 = vmatpush1.bf16.msra.mxu0 0
        %3345 = vmatprep.subr.bf16.mxu0 0
        %3346 = vmatpush1.bf16.msra.mxu0 0
        %3347 = vmatprep.subr.bf16.mxu0 0
        %3348 = vmatpush1.bf16.msra.mxu0 0
        %3349 = vmatprep.subr.bf16.mxu0 0
        %3350 = vmatpush1.bf16.msra.mxu0 0
        %3351 = vmatprep.subr.bf16.mxu0 0
        %3352 = vmatpush1.bf16.msra.mxu0 0
        %3353 = vmatprep.subr.bf16.mxu0 0
        %3354 = vmatpush1.bf16.msra.mxu0 0
        %3355 = vmatprep.subr.bf16.mxu0 0
        %3356 = vmatpush1.bf16.msra.mxu0 0
        %3357 = vmatprep.subr.bf16.mxu0 0
        %3358 = vmatpush1.bf16.msra.mxu0 0
        %3359 = vmatprep.subr.bf16.mxu0 0
        %3360 = vmatpush1.bf16.msra.mxu0 0
        %3361 = vmatprep.subr.bf16.mxu0 0
        %3362 = vmatpush1.bf16.msra.mxu0 0
        %3363 = vmatprep.subr.bf16.mxu0 0
        %3364 = vmatpush1.bf16.msra.mxu0 0
        %3365 = vmatprep.subr.bf16.mxu0 0
        %3366 = vmatpush1.bf16.msra.mxu0 0
        %3367 = vmatprep.subr.bf16.mxu0 0
        %3368 = vmatpush1.bf16.msra.mxu0 0
        %3369 = vmatprep.subr.bf16.mxu0 0
        %3370 = vmatpush1.bf16.msra.mxu0 0
        %3371 = vmatprep.mubr.bf16.mxu0 0
        %3372 = vmatmul.mubr.bf16.gmra.mrb[0].mxu0 %v3337
        %v3373 = vpop.f32.mrb[0].mxu0
        %v3374 = vadd.f32 %v3322, %v3373
        %v3375 = vpop.f32.mrb[0].mxu0
        %v3376 = vpop.f32.mrb[0].mxu0
        %v3377 = vpop.f32.mrb[0].mxu0
        %3378 = vdwg.mxu0
        %v3379 = vmul.f32 %v3374, 0.5
        %v3380 = vmul.f32 %v3374, %v3374
        %v3381 = vmul.f32 %v3374, %v3380
        %v3382 = vmul.f32 %v3381, 0.044715
        %v3383 = vadd.f32 %v3374, %v3382
        %v3384 = vmul.f32 %v3383, 0.7978846
        %v3385 = vtanh.pop %v3384
        %v3386 = vadd.f32 %v3385, 1.0
        %v3387 = vmul.f32 %v3379, %v3386
        %v3388 = vpack.c.bf16 %v3387, %v3387
        %s3389 = scalar_lea.vmem %s12, 192
        %v3390 = vld [vmem:[%s3389] sm:$0xf]
        %v3391 = vld [vmem:[%s3389 + $0x4] sm:$0xf]
        %v3392 = vld [vmem:[%s3389 + $0x8] sm:$0xf]
        %v3393 = vld [vmem:[%s3389 + $0xc] sm:$0xf]
        %v3394 = vld [vmem:[%s3389 + $0x10] sm:$0xf]
        %v3395 = vld [vmem:[%s3389 + $0x14] sm:$0xf]
        %v3396 = vld [vmem:[%s3389 + $0x18] sm:$0xf]
        %v3397 = vld [vmem:[%s3389 + $0x1c] sm:$0xf]
        %v3398 = vld [vmem:[%s3389 + $0x20] sm:$0xf]
        %v3399 = vld [vmem:[%s3389 + $0x24] sm:$0xf]
        %v3400 = vld [vmem:[%s3389 + $0x28] sm:$0xf]
        %v3401 = vld [vmem:[%s3389 + $0x2c] sm:$0xf]
        %v3402 = vld [vmem:[%s3389 + $0x30] sm:$0xf]
        %v3403 = vld [vmem:[%s3389 + $0x34] sm:$0xf]
        %v3404 = vld [vmem:[%s3389 + $0x38] sm:$0xf]
        %v3405 = vld [vmem:[%s3389 + $0x3c] sm:$0xf]
        %s3406 = scalar_lea.vmem %s13, 3
        %v3407 = vld [vmem:[%s3406] sm:$0x1]
        %v3409 = vlaneseq
        %v3410 = vshrl.u32 %v3409, 7
        %v3411 = vsub.s32 0, %v3410
        %v3412 = vrot.slane %v3407, %v3411
        %v3430 = vunpack.c.l.b16 %v3390
        %v3431 = vunpack.c.l.b16 %v3391
        %v3432 = vunpack.c.l.b16 %v3392
        %v3433 = vunpack.c.l.b16 %v3393
        %v3434 = vunpack.c.l.b16 %v3394
        %v3435 = vunpack.c.l.b16 %v3395
        %v3436 = vunpack.c.l.b16 %v3396
        %v3437 = vunpack.c.l.b16 %v3397
        %v3438 = vunpack.c.l.b16 %v3398
        %v3439 = vunpack.c.l.b16 %v3399
        %v3440 = vunpack.c.l.b16 %v3400
        %v3441 = vunpack.c.l.b16 %v3401
        %v3442 = vunpack.c.l.b16 %v3402
        %v3443 = vunpack.c.l.b16 %v3403
        %v3444 = vunpack.c.l.b16 %v3404
        %v3445 = vunpack.c.l.b16 %v3405
        %v3446 = vpack.c.b16 %v3431, %v3430
        %v3447 = vpack.c.b16 %v3433, %v3432
        %v3448 = vpack.c.b16 %v3435, %v3434
        %v3449 = vpack.c.b16 %v3437, %v3436
        %v3450 = vpack.c.b16 %v3439, %v3438
        %v3451 = vpack.c.b16 %v3441, %v3440
        %v3452 = vpack.c.b16 %v3443, %v3442
        %v3453 = vpack.c.b16 %v3445, %v3444
        %3462 = vmatprep.subr.bf16.mxu0 0
        %3463 = vmatpush1.bf16.msra.mxu0 %v3446
        %3464 = vmatprep.subr.bf16.mxu0 0
        %3465 = vmatpush1.bf16.msra.mxu0 %v3447
        %3466 = vmatprep.subr.bf16.mxu0 0
        %3467 = vmatpush1.bf16.msra.mxu0 %v3448
        %3468 = vmatprep.subr.bf16.mxu0 0
        %3469 = vmatpush1.bf16.msra.mxu0 %v3449
        %3470 = vmatprep.subr.bf16.mxu0 0
        %3471 = vmatpush1.bf16.msra.mxu0 %v3450
        %3472 = vmatprep.subr.bf16.mxu0 0
        %3473 = vmatpush1.bf16.msra.mxu0 %v3451
        %3474 = vmatprep.subr.bf16.mxu0 0
        %3475 = vmatpush1.bf16.msra.mxu0 %v3452
        %3476 = vmatprep.subr.bf16.mxu0 0
        %3477 = vmatpush1.bf16.msra.mxu0 %v3453
        %3478 = vmatprep.subr.bf16.mxu0 0
        %3479 = vmatpush1.bf16.msra.mxu0 0
        %3480 = vmatprep.subr.bf16.mxu0 0
        %3481 = vmatpush1.bf16.msra.mxu0 0
        %3482 = vmatprep.subr.bf16.mxu0 0
        %3483 = vmatpush1.bf16.msra.mxu0 0
        %3484 = vmatprep.subr.bf16.mxu0 0
        %3485 = vmatpush1.bf16.msra.mxu0 0
        %3486 = vmatprep.subr.bf16.mxu0 0
        %3487 = vmatpush1.bf16.msra.mxu0 0
        %3488 = vmatprep.subr.bf16.mxu0 0
        %3489 = vmatpush1.bf16.msra.mxu0 0
        %3490 = vmatprep.subr.bf16.mxu0 0
        %3491 = vmatpush1.bf16.msra.mxu0 0
        %3492 = vmatprep.subr.bf16.mxu0 0
        %3493 = vmatpush1.bf16.msra.mxu0 0
        %3494 = vmatprep.mubr.bf16.mxu0 0
        %3495 = vmatmul.mubr.bf16.gmra.mrb[0].mxu0 %v3388
        %v3496 = vpop.f32.mrb[0].mxu0
        %v3497 = vadd.f32 %v3412, %v3496
        %v3498 = vpop.f32.mrb[0].mxu0
        %v3499 = vpop.f32.mrb[0].mxu0
        %v3500 = vpop.f32.mrb[0].mxu0
        %3501 = vdwg.mxu0
        %v3502 = vadd.f32 %v3278, %v3497
        %v3503 = vld [vmem:[%s14] sm:$0x1]
        %v3504 = vld [vmem:[%s15] sm:$0x1]
        %v3505 = vsel %vm576, %v3502, 0.0
        %3506 = vadd.xlane.f32.xlu0 %v3505
        %v3507 = vpop.xlane.xlu0 %3506
        %v3508 = vmul.f32 %v3507, %v580
        %v3509 = vsub.f32 %v3502, %v3508
        %v3510 = vmul.f32 %v3509, %v3509
        %v3511 = vsel %vm576, %v3510, 0.0
        %3512 = vadd.xlane.f32.xlu0 %v3511
        %v3513 = vpop.xlane.xlu0 %3512
        %v3514 = vmul.f32 %v3513, %v580
        %v3515 = vadd.f32 %v3514, 1e-05
        %v3516 = vrsqrt.pop %v3515
        %v3517 = vmul.f32 %v3509, %v3516
        %v3519 = vlaneseq
        %v3520 = vshrl.u32 %v3519, 7
        %v3521 = vsub.s32 0, %v3520
        %v3522 = vrot.slane %v3503, %v3521
        %v3524 = vmul.f32 %v3517, %v3522
        %v3526 = vlaneseq
        %v3527 = vshrl.u32 %v3526, 7
        %v3528 = vsub.s32 0, %v3527
        %v3529 = vrot.slane %v3504, %v3528
        %v3531 = vadd.f32 %v3524, %v3529
        %v3532 = vrot.slane %v2773, 4
        %v3533 = vadd.f32 %v2773, %v3532
        %v3534 = vrot.slane %v3533, 2
        %v3535 = vadd.f32 %v3533, %v3534
        %v3536 = vrot.slane %v3535, 1
        %v3537 = vadd.f32 %v3535, %v3536
        %v3538 = vrcp.pop 8.0
        %v3539 = vmul.f32 %v3537, %v3538
        %vm3540 = vcmask 253952
        %3541 = vst.msk [vmem:[%s555] sm:$0x1] %vm3540, %v3539
        %3543 = vrot.lane.b32.xlu0 %v2768, 32
        %v3544 = vpop.permute.xlu0 %3543
        %3547 = vrot.lane.b32.xlu0 %v2034, 64
        %v3548 = vpop.permute.xlu0 %3547
        %3551 = vrot.lane.b32.xlu0 %v1300, 96
        %v3552 = vpop.permute.xlu0 %3551
        %v3554 = vsel %vm576, %v3531, %v3544
        %vm3555 = vcmask 523264
        %v3556 = vsel %vm3555, %v3554, %v3548
        %vm3557 = vcmask 785408
        %v3558 = vsel %vm3557, %v3556, %v3552
        %3559 = vst [vmem:[%s562] sm:$0xff] %v3558
        %s3560 = sand.u32 %s389, 1
        %s3561 = scalar_lea.sflag [#allocation4], %s3560
        %s3562 = sand.u32 %s389, 1
        %s3563 = scalar_lea.vmem [#allocation3], %s3562
        %s3564 = sand.u32 %s415, 1
        %s3565 = scalar_lea.sflag [#allocation6], %s3564
        %s3566 = sand.u32 %s415, 1
        %s3567 = smul.addr %s3566, 8
        %s3568 = scalar_lea.vmem [#allocation5], %s3567
        // Predicated region
        $region85: #{tpu_custom_call.1} parent=83 // pred_check
          %p3569 = pneg %p399
        $region86: #{tpu_custom_call.1} parent=83 // pred_check_branch
          %3571 = sbr.rel (%p3569) target = $region88
        $region87: #{tpu_custom_call.1} parent=83 // pred_region
          %s3573 = ssub.s32 16, 16
          %3574 = vsyncadd %s3561, %s3573
          %s3575 = smul.addr %s35, 16
          %s3576 = scalar_lea.hbm %s16, %s3575
          %s3578 = sshll.u32 %s3563, 4
          %s3579 = int_to_ptr.vmem [resolvable:$true] %s3578
          %3581 = dma.vmem_to_hbm [thread:$0]  %s3579, 16, %s3576, %s3561
        $region88: #{tpu_custom_call.1} parent=83 // pred_fallthru
          _
        // Predicated region
        $region89: #{tpu_custom_call.1} parent=83 // pred_check
          %p3582 = pneg %p425
        $region90: #{tpu_custom_call.1} parent=83 // pred_check_branch
          %3584 = sbr.rel (%p3582) target = $region92
        $region91: #{tpu_custom_call.1} parent=83 // pred_region
          %s3586 = ssub.s32 128, 128
          %3587 = vsyncadd %s3565, %s3586
          %s3588 = smul.addr %s35, 128
          %s3589 = scalar_lea.hbm %s17, %s3588
          %s3591 = sshll.u32 %s3568, 4
          %s3592 = int_to_ptr.vmem [resolvable:$true] %s3591
          %3594 = dma.vmem_to_hbm [thread:$0]  %s3592, 128, %s3589, %s3565
        $region92: #{tpu_custom_call.1} parent=83 // pred_fallthru
          _
      $region84: #{tpu_custom_call.1} parent=5 // pred_fallthru
        _
      %p3595 = scmp.le.s32.totalorder 2, %s30
      // Predicated region
      $region93: #{tpu_custom_call.1} parent=5 // pred_check
        %p3596 = pneg %p3595
      $region94: #{tpu_custom_call.1} parent=5 // pred_check_branch
        %3598 = sbr.rel (%p3596) target = $region96
      $region95: #{tpu_custom_call.1} parent=5 // pred_region
        %s3599 = ssub.s32 %s30, 2
        // Predicated region
        $region97: #{tpu_custom_call.1} parent=95 // pred_check
          %p3600 = pneg %p405
        $region98: #{tpu_custom_call.1} parent=95 // pred_check_branch
          %3602 = sbr.rel (%p3600) target = $region100
        $region99: #{tpu_custom_call.1} parent=95 // pred_region
          %s3603 = sand.u32 %s390, 1
          %s3604 = scalar_lea.sflag [#allocation4], %s3603
          %s3605 = sand.u32 %s390, 1
          %s3606 = scalar_lea.vmem [#allocation3], %s3605
          %3607 = dma.done %s3604, 16
        $region100: #{tpu_custom_call.1} parent=95 // pred_fallthru
          _
        // Predicated region
        $region101: #{tpu_custom_call.1} parent=95 // pred_check
          %p3608 = pneg %p431
        $region102: #{tpu_custom_call.1} parent=95 // pred_check_branch
          %3610 = sbr.rel (%p3608) target = $region104
        $region103: #{tpu_custom_call.1} parent=95 // pred_region
          %s3611 = sand.u32 %s416, 1
          %s3612 = scalar_lea.sflag [#allocation6], %s3611
          %s3613 = sand.u32 %s416, 1
          %s3614 = smul.addr %s3613, 8
          %s3615 = scalar_lea.vmem [#allocation5], %s3614
          %3616 = dma.done %s3612, 128
        $region104: #{tpu_custom_call.1} parent=95 // pred_fallthru
          _
      $region96: #{tpu_custom_call.1} parent=5 // pred_fallthru
        _
    $region6: #{tpu_custom_call.1} parent=1 // loop_footer
      %s34 = sadd.s32 1, %s30
    $region7: #{tpu_custom_call.1} parent=1 // loop_footer_branch
      %29 = sbr.rel target = $region3
    $region8: #{tpu_custom_call.1} parent=1 // loop_exit
      _
    %3617 = vsyncpa [#allocation4], 1
    %s3618 = scalar_lea.sflag [#allocation4], 1
    %3619 = vsyncpa %s3618, 1
    %3620 = vsyncpa [#allocation6], 1
    %s3621 = scalar_lea.sflag [#allocation6], 1
    %3622 = vsyncpa %s3621, 1

</llo_original>
